<compile_context>
chip_gen: v6e
topology: v6e:2x2x1
jax: 0.10.0
libtpu: 0.0.40
codegen_flags: <defaults>
</compile_context>

<pallas_src>
import jax
import jax.numpy as jnp
from jax import lax
from jax.experimental import pallas as pl
from jax.experimental.pallas import tpu as pltpu

# ---- model config (from the PyTorch `config` dict) ----
OBS_IN = 19                   # obs_input_size
FCST_IN = 11                  # fcst_input_size
IN_TOT = OBS_IN + FCST_IN     # 30
H = 50                        # obs_hidden_size == fcst_hidden_size
H2 = 2 * H                    # 100 = fused hidden (h1 | h2)
G = 128                       # fused hidden padded to one lane block
NG = 4                        # gates: i | f | g | o
RB = 8                        # batch rows padded to one sublane tile
MLP_H = 50                    # linear1 output size
T = 24                        # sequence length implied by .view(-1, 24, ...)
EPS = 1e-6


# ------------------------------------------------------------------ kernel --
def _make_kernel(Tn):
    def kernel(x_ref, wx_ref, b_ref, wh_ref, whd_ref, bhd_ref,
               out_ref, xg_ref, hs_ref):
        # ---- hoisted input projection (+bias) for ALL T*RB rows ------------
        xg_ref[...] = (
            jnp.dot(x_ref[...].astype(jnp.bfloat16), wx_ref[...],
                    preferred_element_type=jnp.float32)
            + b_ref[...])                                    # (T*RB, 4*G) f32

        wh = wh_ref[...]                                     # (G, 4*G) bf16, loop invariant
        # TODO(synk): keep wh weight-stationary on the MXU across the unrolled
        # loop (pltpu.matmul_push_rhs / matmul_acc_lhs / matmul_pop) once the
        # per-chip RHS staging-tile constraints are pinned down.

        h = jnp.zeros((RB, G), jnp.float32)
        c = jnp.zeros((RB, G), jnp.float32)

        # ---- fused, fully-unrolled recurrence -------------------------------
        # Gate columns [i|f|g|o], each one 128-lane block with lstm1 in lanes
        # 0:50, lstm2 in 50:100, pad in 100:128.  Padded lanes have zero
        # pre-activation -> g = tanh(0) = 0, c0 = 0 -> padded c/h stay 0.
        for t in range(Tn):
            r = t * RB                                       # static index
            xg = xg_ref[r:r + RB, :]                         # full (8,512) tile
            if t == 0:
                gates = xg                                   # h == 0: skip h@wh
            else:
                gates = xg + jnp.dot(h.astype(jnp.bfloat16), wh,
                                     preferred_element_type=jnp.float32)
            i_g = jax.nn.sigmoid(gates[:, 0 * G:1 * G])
            f_g = jax.nn.sigmoid(gates[:, 1 * G:2 * G])
            g_g = jnp.tanh(gates[:, 2 * G:3 * G])
            o_g = jax.nn.sigmoid(gates[:, 3 * G:4 * G])
            c = f_g * c + i_g * g_g
            h = o_g * jnp.tanh(c)
            hs_ref[r:r + RB, :] = h                          # full (8,128) tile

        # ---- folded affine head (dropout == identity at inference) ---------
        # Head weight lane-padded to 128 columns; only column 0 is meaningful,
        # so the output store is a full-tile unmasked vst.
        out_ref[...] = (jnp.dot(hs_ref[...], whd_ref[...],
                                preferred_element_type=jnp.float32)
                        + bhd_ref[...])

    return kernel


# ------------------------------------------------------- parameter packing --
def pack_params(params):
    """One-time repack of PyTorch-convention weights into the fused layout.

    Weight-only: call once and reuse across forward calls (hoisted out of the
    per-call jitted path)."""
    f32 = jnp.float32
    wx = jnp.zeros((IN_TOT, NG * G), f32)
    wh = jnp.zeros((G, NG * G), f32)
    b = jnp.zeros((1, NG * G), f32)

    w_ih1t, w_ih2t = params['w_ih1'].T, params['w_ih2'].T    # (19,200), (11,200)
    w_hh1t, w_hh2t = params['w_hh1'].T, params['w_hh2'].T    # (50,200), (50,200)
    b1 = params['b_ih1'] + params['b_hh1']
    b2 = params['b_ih2'] + params['b_hh2']

    for k in range(NG):                       # PyTorch gate order: i | f | g | o
        wx = wx.at[:OBS_IN, k * G:k * G + H].set(w_ih1t[:, k * H:(k + 1) * H])
        wx = wx.at[OBS_IN:, k * G + H:k * G + H2].set(w_ih2t[:, k * H:(k + 1) * H])
        wh = wh.at[:H, k * G:k * G + H].set(w_hh1t[:, k * H:(k + 1) * H])
        wh = wh.at[H:H2, k * G + H:k * G + H2].set(w_hh2t[:, k * H:(k + 1) * H])
        b = b.at[0, k * G:k * G + H].set(b1[k * H:(k + 1) * H])
        b = b.at[0, k * G + H:k * G + H2].set(b2[k * H:(k + 1) * H])

    # Fold linear1 ∘ linear2 into one affine map (no nonlinearity between them;
    # dropout is identity at inference).
    w_head = params['lin1_w'].T @ params['lin2_w'].T                      # (100, 1)
    b_head = params['lin1_b'] @ params['lin2_w'].T + params['lin2_b']     # (1,)
    whd = jnp.zeros((G, G), f32).at[:H2, 0:1].set(w_head)
    bhd = jnp.zeros((1, G), f32).at[0, 0].set(b_head[0])

    # bf16 matmul operands for the recurrence path; biases / head stay f32.
    return (wx.astype(jnp.bfloat16), b, wh.astype(jnp.bfloat16), whd, bhd)


# ----------------------------------------------------------------- wrapper --
@jax.jit
def model_forward(obs, fcst, packed):
    """obs: (B, T, 19), fcst: (B, T, 11), packed = pack_params(...) -> (B, T)."""
    wx, b, wh, whd, bhd = packed
    B, Tn, _ = obs.shape
    assert B <= RB, "for B > 8 add a grid over batch (parallel across TCs)"

    # time-major, fused feature axis, batch rows padded to a full sublane tile
    x = jnp.concatenate([obs, fcst], axis=-1)                 # (B, T, 30)
    x = jnp.transpose(x, (1, 0, 2))                           # (T, B, 30)
    x = jnp.pad(x, ((0, 0), (0, RB - B), (0, 0)))             # (T, 8, 30)
    x = x.reshape(Tn * RB, IN_TOT)                            # row r = t*8 + b

    out = pl.pallas_call(
        _make_kernel(Tn),
        out_shape=jax.ShapeDtypeStruct((Tn * RB, G), jnp.float32),
        in_specs=[pl.BlockSpec(memory_space=pltpu.MemorySpace.VMEM)] * 6,
        out_specs=pl.BlockSpec(memory_space=pltpu.MemorySpace.VMEM),
        scratch_shapes=[
            pltpu.VMEM((Tn * RB, NG * G), jnp.float32),       # hoisted x-gates
            pltpu.VMEM((Tn * RB, G), jnp.float32),            # per-step hidden states
        ],
    )(x, wx, b, wh, whd, bhd)

    # column 0 carries the folded-head prediction; rows with b < B are valid
    return out.reshape(Tn, RB, G)[:, :B, 0].T                 # (B, T)


def rmse_loss(pred, targets):
    # `outputs is not None` branch of forward: sqrt(MSE + eps). Plain-JAX glue.
    return jnp.sqrt(jnp.mean((pred - targets) ** 2) + EPS)


# ------------------------------------------------------ deterministic init --
def init_params(key):
    ks = jax.random.split(key, 12)
    k_lstm = 1.0 / (H ** 0.5)
    k_lin1 = 1.0 / ((2 * H) ** 0.5)
    k_lin2 = 1.0 / (MLP_H ** 0.5)

    def u(k, shape, bound):
        return jax.random.uniform(k, shape, jnp.float32, -bound, bound)

    return {
        # nn.LSTM(obs_input_size=19, hidden=50): gate order i|f|g|o
        'w_ih1': u(ks[0], (4 * H, OBS_IN), k_lstm),
        'w_hh1': u(ks[1], (4 * H, H), k_lstm),
        'b_ih1': u(ks[2], (4 * H,), k_lstm),
        'b_hh1': u(ks[3], (4 * H,), k_lstm),
        # nn.LSTM(fcst_input_size=11, hidden=50)
        'w_ih2': u(ks[4], (4 * H, FCST_IN), k_lstm),
        'w_hh2': u(ks[5], (4 * H, H), k_lstm),
        'b_ih2': u(ks[6], (4 * H,), k_lstm),
        'b_hh2': u(ks[7], (4 * H,), k_lstm),
        # nn.Linear(100, 50)
        'lin1_w': u(ks[8], (MLP_H, 2 * H), k_lin1),
        'lin1_b': u(ks[9], (MLP_H,), k_lin1),
        # nn.Linear(50, 1)
        'lin2_w': u(ks[10], (1, MLP_H), k_lin2),
        'lin2_b': u(ks[11], (1,), k_lin2),
    }


# --------------------------------------------------------- pure-JAX reference
def _lstm_ref(x, w_ih, w_hh, b_ih, b_hh):
    B = x.shape[0]
    hid = w_hh.shape[1]

    def step(carry, xt):
        h, c = carry
        gates = xt @ w_ih.T + h @ w_hh.T + b_ih + b_hh
        i, f, g, o = jnp.split(gates, 4, axis=-1)
        c = jax.nn.sigmoid(f) * c + jax.nn.sigmoid(i) * jnp.tanh(g)
        h = jax.nn.sigmoid(o) * jnp.tanh(c)
        return (h, c), h

    h0 = jnp.zeros((B, hid), jnp.float32)
    (_, _), hs = lax.scan(step, (h0, h0), jnp.transpose(x, (1, 0, 2)))
    return jnp.transpose(hs, (1, 0, 2))        # (B, T, H)


def model_ref(obs, fcst, params):
    o1 = _lstm_ref(obs, params['w_ih1'], params['w_hh1'],
                   params['b_ih1'], params['b_hh1'])
    o2 = _lstm_ref(fcst, params['w_ih2'], params['w_hh2'],
                   params['b_ih2'], params['b_hh2'])
    cat = jnp.concatenate([o1, o2], axis=-1)
    z = cat @ params['lin1_w'].T + params['lin1_b']
    p = z @ params['lin2_w'].T + params['lin2_b']
    return p[..., 0]


# -------------------------------------------------------------------- main --
if __name__ == "__main__":
    key = jax.random.PRNGKey(0)
    kp, ko, kf, kt = jax.random.split(key, 4)
    params = init_params(kp)

    B = 2
    obs_inputs = jax.random.normal(ko, (B, T, OBS_IN), jnp.float32)
    fcst_inputs = jax.random.normal(kf, (B, T, FCST_IN), jnp.float32)
    targets = jax.random.normal(kt, (B, T), jnp.float32)

    # weight packing hoisted out of the per-call forward (done once)
    packed = pack_params(params)

    pred = model_forward(obs_inputs, fcst_inputs, packed)
    pred = jax.block_until_ready(pred)
    assert pred.shape == (B, T), pred.shape

    # verify against pure-JAX f32 reference (bf16 matmul operands in the
    # recurrence give ~1e-3..1e-2 abs deviation)
    ref = model_ref(obs_inputs, fcst_inputs, params)
    max_err = float(jnp.max(jnp.abs(pred - ref)))
    assert max_err < 5e-2, f"mismatch vs reference: {max_err}"

    # exercise the loss branch (plain-JAX glue around the kernel output)
    loss = jax.block_until_ready(rmse_loss(pred, targets))
    assert loss.shape == (), loss.shape

    print("KERNEL_OK")
</pallas_src>

<mosaic_0001>
module attributes {stable_mosaic.version = 11 : i64} {
  func.func @kernel(%arg0: memref<192x30xf32, #tpu.memory_space<vmem>>, %arg1: memref<30x512xbf16, #tpu.memory_space<vmem>>, %arg2: memref<1x512xf32, #tpu.memory_space<vmem>>, %arg3: memref<128x512xbf16, #tpu.memory_space<vmem>>, %arg4: memref<128x128xf32, #tpu.memory_space<vmem>>, %arg5: memref<1x128xf32, #tpu.memory_space<vmem>>, %arg6: memref<192x128xf32, #tpu.memory_space<vmem>>, %arg7: memref<192x512xf32, #tpu.memory_space<vmem>>, %arg8: memref<192x128xf32, #tpu.memory_space<vmem>>) attributes {dimension_semantics = [], scalar_prefetch = 0 : i64, scratch_operands = 2 : i64, tpu.core_type = #tpu.core_type<tc>} {
    %c0 = arith.constant 0 : index
    %c0_0 = arith.constant 0 : index
    %0 = vector.load %arg0[%c0, %c0_0] : memref<192x30xf32, #tpu.memory_space<vmem>>, vector<192x30xf32>
    %1 = arith.truncf %0 : vector<192x30xf32> to vector<192x30xbf16>
    %c0_1 = arith.constant 0 : index
    %c0_2 = arith.constant 0 : index
    %2 = vector.load %arg1[%c0_1, %c0_2] : memref<30x512xbf16, #tpu.memory_space<vmem>>, vector<30x512xbf16>
    %cst = arith.constant dense<0.000000e+00> : vector<192x512xf32>
    %3 = tpu.matmul %1, %2, %cst {dimension_numbers = #tpu.dot_dimension_numbers<[1], [0], [0], [1], [0, 0, 1, 1], [], []>} : vector<192x30xbf16>, vector<30x512xbf16>, vector<192x512xf32> -> vector<192x512xf32>
    %c0_3 = arith.constant 0 : index
    %c0_4 = arith.constant 0 : index
    %4 = vector.load %arg2[%c0_3, %c0_4] : memref<1x512xf32, #tpu.memory_space<vmem>>, vector<1x512xf32>
    %5 = vector.broadcast %4 : vector<1x512xf32> to vector<192x512xf32>
    %6 = arith.addf %3, %5 : vector<192x512xf32>
    %c0_5 = arith.constant 0 : index
    %c0_6 = arith.constant 0 : index
    %7 = vector.load %arg7[%c0_5, %c0_6] : memref<192x512xf32, #tpu.memory_space<vmem>>, vector<192x512xf32>
    tpu.vector_store %arg7[%c0_5, %c0_6], %6 {strides = array<i32>} : memref<192x512xf32, #tpu.memory_space<vmem>>, vector<192x512xf32>,
    %c0_7 = arith.constant 0 : index
    %c0_8 = arith.constant 0 : index
    %8 = vector.load %arg3[%c0_7, %c0_8] : memref<128x512xbf16, #tpu.memory_space<vmem>>, vector<128x512xbf16>
    %cst_9 = arith.constant 0.000000e+00 : f32
    %9 = vector.broadcast %cst_9 : f32 to vector<8x128xf32>
    %c0_10 = arith.constant 0 : index
    %c0_11 = arith.constant 0 : index
    %10 = vector.load %arg7[%c0_10, %c0_11] : memref<192x512xf32, #tpu.memory_space<vmem>>, vector<8x512xf32>
    %11 = vector.extract_strided_slice %10 {offsets = [0, 0], sizes = [8, 128], strides = [1, 1]} : vector<8x512xf32> to vector<8x128xf32>
    %12 = arith.negf %11 : vector<8x128xf32>
    %13 = math.exp %12 : vector<8x128xf32>
    %cst_12 = arith.constant 1.000000e+00 : f32
    %14 = vector.broadcast %cst_12 : f32 to vector<8x128xf32>
    %15 = arith.addf %14, %13 : vector<8x128xf32>
    %16 = arith.divf %14, %15 : vector<8x128xf32>
    %17 = vector.extract_strided_slice %10 {offsets = [0, 128], sizes = [8, 128], strides = [1, 1]} : vector<8x512xf32> to vector<8x128xf32>
    %18 = arith.negf %17 : vector<8x128xf32>
    %19 = math.exp %18 : vector<8x128xf32>
    %cst_13 = arith.constant 1.000000e+00 : f32
    %20 = vector.broadcast %cst_13 : f32 to vector<8x128xf32>
    %21 = arith.addf %20, %19 : vector<8x128xf32>
    %22 = arith.divf %20, %21 : vector<8x128xf32>
    %23 = vector.extract_strided_slice %10 {offsets = [0, 256], sizes = [8, 128], strides = [1, 1]} : vector<8x512xf32> to vector<8x128xf32>
    %24 = math.tanh %23 : vector<8x128xf32>
    %25 = vector.extract_strided_slice %10 {offsets = [0, 384], sizes = [8, 128], strides = [1, 1]} : vector<8x512xf32> to vector<8x128xf32>
    %26 = arith.negf %25 : vector<8x128xf32>
    %27 = math.exp %26 : vector<8x128xf32>
    %cst_14 = arith.constant 1.000000e+00 : f32
    %28 = vector.broadcast %cst_14 : f32 to vector<8x128xf32>
    %29 = arith.addf %28, %27 : vector<8x128xf32>
    %30 = arith.divf %28, %29 : vector<8x128xf32>
    %31 = arith.mulf %22, %9 : vector<8x128xf32>
    %32 = arith.mulf %16, %24 : vector<8x128xf32>
    %33 = arith.addf %31, %32 : vector<8x128xf32>
    %34 = math.tanh %33 : vector<8x128xf32>
    %35 = arith.mulf %30, %34 : vector<8x128xf32>
    %c0_15 = arith.constant 0 : index
    %c0_16 = arith.constant 0 : index
    %36 = vector.load %arg8[%c0_15, %c0_16] : memref<192x128xf32, #tpu.memory_space<vmem>>, vector<8x128xf32>
    tpu.vector_store %arg8[%c0_15, %c0_16], %35 {strides = array<i32>} : memref<192x128xf32, #tpu.memory_space<vmem>>, vector<8x128xf32>,
    %c8 = arith.constant 8 : index
    %c0_17 = arith.constant 0 : index
    %37 = vector.load %arg7[%c8, %c0_17] : memref<192x512xf32, #tpu.memory_space<vmem>>, vector<8x512xf32>
    %38 = arith.truncf %35 : vector<8x128xf32> to vector<8x128xbf16>
    %cst_18 = arith.constant dense<0.000000e+00> : vector<8x512xf32>
    %39 = tpu.matmul %38, %8, %cst_18 {dimension_numbers = #tpu.dot_dimension_numbers<[1], [0], [0], [1], [0, 0, 1, 1], [], []>} : vector<8x128xbf16>, vector<128x512xbf16>, vector<8x512xf32> -> vector<8x512xf32>
    %40 = arith.addf %37, %39 : vector<8x512xf32>
    %41 = vector.extract_strided_slice %40 {offsets = [0, 0], sizes = [8, 128], strides = [1, 1]} : vector<8x512xf32> to vector<8x128xf32>
    %42 = arith.negf %41 : vector<8x128xf32>
    %43 = math.exp %42 : vector<8x128xf32>
    %cst_19 = arith.constant 1.000000e+00 : f32
    %44 = vector.broadcast %cst_19 : f32 to vector<8x128xf32>
    %45 = arith.addf %44, %43 : vector<8x128xf32>
    %46 = arith.divf %44, %45 : vector<8x128xf32>
    %47 = vector.extract_strided_slice %40 {offsets = [0, 128], sizes = [8, 128], strides = [1, 1]} : vector<8x512xf32> to vector<8x128xf32>
    %48 = arith.negf %47 : vector<8x128xf32>
    %49 = math.exp %48 : vector<8x128xf32>
    %cst_20 = arith.constant 1.000000e+00 : f32
    %50 = vector.broadcast %cst_20 : f32 to vector<8x128xf32>
    %51 = arith.addf %50, %49 : vector<8x128xf32>
    %52 = arith.divf %50, %51 : vector<8x128xf32>
    %53 = vector.extract_strided_slice %40 {offsets = [0, 256], sizes = [8, 128], strides = [1, 1]} : vector<8x512xf32> to vector<8x128xf32>
    %54 = math.tanh %53 : vector<8x128xf32>
    %55 = vector.extract_strided_slice %40 {offsets = [0, 384], sizes = [8, 128], strides = [1, 1]} : vector<8x512xf32> to vector<8x128xf32>
    %56 = arith.negf %55 : vector<8x128xf32>
    %57 = math.exp %56 : vector<8x128xf32>
    %cst_21 = arith.constant 1.000000e+00 : f32
    %58 = vector.broadcast %cst_21 : f32 to vector<8x128xf32>
    %59 = arith.addf %58, %57 : vector<8x128xf32>
    %60 = arith.divf %58, %59 : vector<8x128xf32>
    %61 = arith.mulf %52, %33 : vector<8x128xf32>
    %62 = arith.mulf %46, %54 : vector<8x128xf32>
    %63 = arith.addf %61, %62 : vector<8x128xf32>
    %64 = math.tanh %63 : vector<8x128xf32>
    %65 = arith.mulf %60, %64 : vector<8x128xf32>
    %c8_22 = arith.constant 8 : index
    %c0_23 = arith.constant 0 : index
    %66 = vector.load %arg8[%c8_22, %c0_23] : memref<192x128xf32, #tpu.memory_space<vmem>>, vector<8x128xf32>
    tpu.vector_store %arg8[%c8_22, %c0_23], %65 {strides = array<i32>} : memref<192x128xf32, #tpu.memory_space<vmem>>, vector<8x128xf32>,
    %c16 = arith.constant 16 : index
    %c0_24 = arith.constant 0 : index
    %67 = vector.load %arg7[%c16, %c0_24] : memref<192x512xf32, #tpu.memory_space<vmem>>, vector<8x512xf32>
    %68 = arith.truncf %65 : vector<8x128xf32> to vector<8x128xbf16>
    %cst_25 = arith.constant dense<0.000000e+00> : vector<8x512xf32>
    %69 = tpu.matmul %68, %8, %cst_25 {dimension_numbers = #tpu.dot_dimension_numbers<[1], [0], [0], [1], [0, 0, 1, 1], [], []>} : vector<8x128xbf16>, vector<128x512xbf16>, vector<8x512xf32> -> vector<8x512xf32>
    %70 = arith.addf %67, %69 : vector<8x512xf32>
    %71 = vector.extract_strided_slice %70 {offsets = [0, 0], sizes = [8, 128], strides = [1, 1]} : vector<8x512xf32> to vector<8x128xf32>
    %72 = arith.negf %71 : vector<8x128xf32>
    %73 = math.exp %72 : vector<8x128xf32>
    %cst_26 = arith.constant 1.000000e+00 : f32
    %74 = vector.broadcast %cst_26 : f32 to vector<8x128xf32>
    %75 = arith.addf %74, %73 : vector<8x128xf32>
    %76 = arith.divf %74, %75 : vector<8x128xf32>
    %77 = vector.extract_strided_slice %70 {offsets = [0, 128], sizes = [8, 128], strides = [1, 1]} : vector<8x512xf32> to vector<8x128xf32>
    %78 = arith.negf %77 : vector<8x128xf32>
    %79 = math.exp %78 : vector<8x128xf32>
    %cst_27 = arith.constant 1.000000e+00 : f32
    %80 = vector.broadcast %cst_27 : f32 to vector<8x128xf32>
    %81 = arith.addf %80, %79 : vector<8x128xf32>
    %82 = arith.divf %80, %81 : vector<8x128xf32>
    %83 = vector.extract_strided_slice %70 {offsets = [0, 256], sizes = [8, 128], strides = [1, 1]} : vector<8x512xf32> to vector<8x128xf32>
    %84 = math.tanh %83 : vector<8x128xf32>
    %85 = vector.extract_strided_slice %70 {offsets = [0, 384], sizes = [8, 128], strides = [1, 1]} : vector<8x512xf32> to vector<8x128xf32>
    %86 = arith.negf %85 : vector<8x128xf32>
    %87 = math.exp %86 : vector<8x128xf32>
    %cst_28 = arith.constant 1.000000e+00 : f32
    %88 = vector.broadcast %cst_28 : f32 to vector<8x128xf32>
    %89 = arith.addf %88, %87 : vector<8x128xf32>
    %90 = arith.divf %88, %89 : vector<8x128xf32>
    %91 = arith.mulf %82, %63 : vector<8x128xf32>
    %92 = arith.mulf %76, %84 : vector<8x128xf32>
    %93 = arith.addf %91, %92 : vector<8x128xf32>
    %94 = math.tanh %93 : vector<8x128xf32>
    %95 = arith.mulf %90, %94 : vector<8x128xf32>
    %c16_29 = arith.constant 16 : index
    %c0_30 = arith.constant 0 : index
    %96 = vector.load %arg8[%c16_29, %c0_30] : memref<192x128xf32, #tpu.memory_space<vmem>>, vector<8x128xf32>
    tpu.vector_store %arg8[%c16_29, %c0_30], %95 {strides = array<i32>} : memref<192x128xf32, #tpu.memory_space<vmem>>, vector<8x128xf32>,
    %c24 = arith.constant 24 : index
    %c0_31 = arith.constant 0 : index
    %97 = vector.load %arg7[%c24, %c0_31] : memref<192x512xf32, #tpu.memory_space<vmem>>, vector<8x512xf32>
    %98 = arith.truncf %95 : vector<8x128xf32> to vector<8x128xbf16>
    %cst_32 = arith.constant dense<0.000000e+00> : vector<8x512xf32>
    %99 = tpu.matmul %98, %8, %cst_32 {dimension_numbers = #tpu.dot_dimension_numbers<[1], [0], [0], [1], [0, 0, 1, 1], [], []>} : vector<8x128xbf16>, vector<128x512xbf16>, vector<8x512xf32> -> vector<8x512xf32>
    %100 = arith.addf %97, %99 : vector<8x512xf32>
    %101 = vector.extract_strided_slice %100 {offsets = [0, 0], sizes = [8, 128], strides = [1, 1]} : vector<8x512xf32> to vector<8x128xf32>
    %102 = arith.negf %101 : vector<8x128xf32>
    %103 = math.exp %102 : vector<8x128xf32>
    %cst_33 = arith.constant 1.000000e+00 : f32
    %104 = vector.broadcast %cst_33 : f32 to vector<8x128xf32>
    %105 = arith.addf %104, %103 : vector<8x128xf32>
    %106 = arith.divf %104, %105 : vector<8x128xf32>
    %107 = vector.extract_strided_slice %100 {offsets = [0, 128], sizes = [8, 128], strides = [1, 1]} : vector<8x512xf32> to vector<8x128xf32>
    %108 = arith.negf %107 : vector<8x128xf32>
    %109 = math.exp %108 : vector<8x128xf32>
    %cst_34 = arith.constant 1.000000e+00 : f32
    %110 = vector.broadcast %cst_34 : f32 to vector<8x128xf32>
    %111 = arith.addf %110, %109 : vector<8x128xf32>
    %112 = arith.divf %110, %111 : vector<8x128xf32>
    %113 = vector.extract_strided_slice %100 {offsets = [0, 256], sizes = [8, 128], strides = [1, 1]} : vector<8x512xf32> to vector<8x128xf32>
    %114 = math.tanh %113 : vector<8x128xf32>
    %115 = vector.extract_strided_slice %100 {offsets = [0, 384], sizes = [8, 128], strides = [1, 1]} : vector<8x512xf32> to vector<8x128xf32>
    %116 = arith.negf %115 : vector<8x128xf32>
    %117 = math.exp %116 : vector<8x128xf32>
    %cst_35 = arith.constant 1.000000e+00 : f32
    %118 = vector.broadcast %cst_35 : f32 to vector<8x128xf32>
    %119 = arith.addf %118, %117 : vector<8x128xf32>
    %120 = arith.divf %118, %119 : vector<8x128xf32>
    %121 = arith.mulf %112, %93 : vector<8x128xf32>
    %122 = arith.mulf %106, %114 : vector<8x128xf32>
    %123 = arith.addf %121, %122 : vector<8x128xf32>
    %124 = math.tanh %123 : vector<8x128xf32>
    %125 = arith.mulf %120, %124 : vector<8x128xf32>
    %c24_36 = arith.constant 24 : index
    %c0_37 = arith.constant 0 : index
    %126 = vector.load %arg8[%c24_36, %c0_37] : memref<192x128xf32, #tpu.memory_space<vmem>>, vector<8x128xf32>
    tpu.vector_store %arg8[%c24_36, %c0_37], %125 {strides = array<i32>} : memref<192x128xf32, #tpu.memory_space<vmem>>, vector<8x128xf32>,
    %c32 = arith.constant 32 : index
    %c0_38 = arith.constant 0 : index
    %127 = vector.load %arg7[%c32, %c0_38] : memref<192x512xf32, #tpu.memory_space<vmem>>, vector<8x512xf32>
    %128 = arith.truncf %125 : vector<8x128xf32> to vector<8x128xbf16>
    %cst_39 = arith.constant dense<0.000000e+00> : vector<8x512xf32>
    %129 = tpu.matmul %128, %8, %cst_39 {dimension_numbers = #tpu.dot_dimension_numbers<[1], [0], [0], [1], [0, 0, 1, 1], [], []>} : vector<8x128xbf16>, vector<128x512xbf16>, vector<8x512xf32> -> vector<8x512xf32>
    %130 = arith.addf %127, %129 : vector<8x512xf32>
    %131 = vector.extract_strided_slice %130 {offsets = [0, 0], sizes = [8, 128], strides = [1, 1]} : vector<8x512xf32> to vector<8x128xf32>
    %132 = arith.negf %131 : vector<8x128xf32>
    %133 = math.exp %132 : vector<8x128xf32>
    %cst_40 = arith.constant 1.000000e+00 : f32
    %134 = vector.broadcast %cst_40 : f32 to vector<8x128xf32>
    %135 = arith.addf %134, %133 : vector<8x128xf32>
    %136 = arith.divf %134, %135 : vector<8x128xf32>
    %137 = vector.extract_strided_slice %130 {offsets = [0, 128], sizes = [8, 128], strides = [1, 1]} : vector<8x512xf32> to vector<8x128xf32>
    %138 = arith.negf %137 : vector<8x128xf32>
    %139 = math.exp %138 : vector<8x128xf32>
    %cst_41 = arith.constant 1.000000e+00 : f32
    %140 = vector.broadcast %cst_41 : f32 to vector<8x128xf32>
    %141 = arith.addf %140, %139 : vector<8x128xf32>
    %142 = arith.divf %140, %141 : vector<8x128xf32>
    %143 = vector.extract_strided_slice %130 {offsets = [0, 256], sizes = [8, 128], strides = [1, 1]} : vector<8x512xf32> to vector<8x128xf32>
    %144 = math.tanh %143 : vector<8x128xf32>
    %145 = vector.extract_strided_slice %130 {offsets = [0, 384], sizes = [8, 128], strides = [1, 1]} : vector<8x512xf32> to vector<8x128xf32>
    %146 = arith.negf %145 : vector<8x128xf32>
    %147 = math.exp %146 : vector<8x128xf32>
    %cst_42 = arith.constant 1.000000e+00 : f32
    %148 = vector.broadcast %cst_42 : f32 to vector<8x128xf32>
    %149 = arith.addf %148, %147 : vector<8x128xf32>
    %150 = arith.divf %148, %149 : vector<8x128xf32>
    %151 = arith.mulf %142, %123 : vector<8x128xf32>
    %152 = arith.mulf %136, %144 : vector<8x128xf32>
    %153 = arith.addf %151, %152 : vector<8x128xf32>
    %154 = math.tanh %153 : vector<8x128xf32>
    %155 = arith.mulf %150, %154 : vector<8x128xf32>
    %c32_43 = arith.constant 32 : index
    %c0_44 = arith.constant 0 : index
    %156 = vector.load %arg8[%c32_43, %c0_44] : memref<192x128xf32, #tpu.memory_space<vmem>>, vector<8x128xf32>
    tpu.vector_store %arg8[%c32_43, %c0_44], %155 {strides = array<i32>} : memref<192x128xf32, #tpu.memory_space<vmem>>, vector<8x128xf32>,
    %c40 = arith.constant 40 : index
    %c0_45 = arith.constant 0 : index
    %157 = vector.load %arg7[%c40, %c0_45] : memref<192x512xf32, #tpu.memory_space<vmem>>, vector<8x512xf32>
    %158 = arith.truncf %155 : vector<8x128xf32> to vector<8x128xbf16>
    %cst_46 = arith.constant dense<0.000000e+00> : vector<8x512xf32>
    %159 = tpu.matmul %158, %8, %cst_46 {dimension_numbers = #tpu.dot_dimension_numbers<[1], [0], [0], [1], [0, 0, 1, 1], [], []>} : vector<8x128xbf16>, vector<128x512xbf16>, vector<8x512xf32> -> vector<8x512xf32>
    %160 = arith.addf %157, %159 : vector<8x512xf32>
    %161 = vector.extract_strided_slice %160 {offsets = [0, 0], sizes = [8, 128], strides = [1, 1]} : vector<8x512xf32> to vector<8x128xf32>
    %162 = arith.negf %161 : vector<8x128xf32>
    %163 = math.exp %162 : vector<8x128xf32>
    %cst_47 = arith.constant 1.000000e+00 : f32
    %164 = vector.broadcast %cst_47 : f32 to vector<8x128xf32>
    %165 = arith.addf %164, %163 : vector<8x128xf32>
    %166 = arith.divf %164, %165 : vector<8x128xf32>
    %167 = vector.extract_strided_slice %160 {offsets = [0, 128], sizes = [8, 128], strides = [1, 1]} : vector<8x512xf32> to vector<8x128xf32>
    %168 = arith.negf %167 : vector<8x128xf32>
    %169 = math.exp %168 : vector<8x128xf32>
    %cst_48 = arith.constant 1.000000e+00 : f32
    %170 = vector.broadcast %cst_48 : f32 to vector<8x128xf32>
    %171 = arith.addf %170, %169 : vector<8x128xf32>
    %172 = arith.divf %170, %171 : vector<8x128xf32>
    %173 = vector.extract_strided_slice %160 {offsets = [0, 256], sizes = [8, 128], strides = [1, 1]} : vector<8x512xf32> to vector<8x128xf32>
    %174 = math.tanh %173 : vector<8x128xf32>
    %175 = vector.extract_strided_slice %160 {offsets = [0, 384], sizes = [8, 128], strides = [1, 1]} : vector<8x512xf32> to vector<8x128xf32>
    %176 = arith.negf %175 : vector<8x128xf32>
    %177 = math.exp %176 : vector<8x128xf32>
    %cst_49 = arith.constant 1.000000e+00 : f32
    %178 = vector.broadcast %cst_49 : f32 to vector<8x128xf32>
    %179 = arith.addf %178, %177 : vector<8x128xf32>
    %180 = arith.divf %178, %179 : vector<8x128xf32>
    %181 = arith.mulf %172, %153 : vector<8x128xf32>
    %182 = arith.mulf %166, %174 : vector<8x128xf32>
    %183 = arith.addf %181, %182 : vector<8x128xf32>
    %184 = math.tanh %183 : vector<8x128xf32>
    %185 = arith.mulf %180, %184 : vector<8x128xf32>
    %c40_50 = arith.constant 40 : index
    %c0_51 = arith.constant 0 : index
    %186 = vector.load %arg8[%c40_50, %c0_51] : memref<192x128xf32, #tpu.memory_space<vmem>>, vector<8x128xf32>
    tpu.vector_store %arg8[%c40_50, %c0_51], %185 {strides = array<i32>} : memref<192x128xf32, #tpu.memory_space<vmem>>, vector<8x128xf32>,
    %c48 = arith.constant 48 : index
    %c0_52 = arith.constant 0 : index
    %187 = vector.load %arg7[%c48, %c0_52] : memref<192x512xf32, #tpu.memory_space<vmem>>, vector<8x512xf32>
    %188 = arith.truncf %185 : vector<8x128xf32> to vector<8x128xbf16>
    %cst_53 = arith.constant dense<0.000000e+00> : vector<8x512xf32>
    %189 = tpu.matmul %188, %8, %cst_53 {dimension_numbers = #tpu.dot_dimension_numbers<[1], [0], [0], [1], [0, 0, 1, 1], [], []>} : vector<8x128xbf16>, vector<128x512xbf16>, vector<8x512xf32> -> vector<8x512xf32>
    %190 = arith.addf %187, %189 : vector<8x512xf32>
    %191 = vector.extract_strided_slice %190 {offsets = [0, 0], sizes = [8, 128], strides = [1, 1]} : vector<8x512xf32> to vector<8x128xf32>
    %192 = arith.negf %191 : vector<8x128xf32>
    %193 = math.exp %192 : vector<8x128xf32>
    %cst_54 = arith.constant 1.000000e+00 : f32
    %194 = vector.broadcast %cst_54 : f32 to vector<8x128xf32>
    %195 = arith.addf %194, %193 : vector<8x128xf32>
    %196 = arith.divf %194, %195 : vector<8x128xf32>
    %197 = vector.extract_strided_slice %190 {offsets = [0, 128], sizes = [8, 128], strides = [1, 1]} : vector<8x512xf32> to vector<8x128xf32>
    %198 = arith.negf %197 : vector<8x128xf32>
    %199 = math.exp %198 : vector<8x128xf32>
    %cst_55 = arith.constant 1.000000e+00 : f32
    %200 = vector.broadcast %cst_55 : f32 to vector<8x128xf32>
    %201 = arith.addf %200, %199 : vector<8x128xf32>
    %202 = arith.divf %200, %201 : vector<8x128xf32>
    %203 = vector.extract_strided_slice %190 {offsets = [0, 256], sizes = [8, 128], strides = [1, 1]} : vector<8x512xf32> to vector<8x128xf32>
    %204 = math.tanh %203 : vector<8x128xf32>
    %205 = vector.extract_strided_slice %190 {offsets = [0, 384], sizes = [8, 128], strides = [1, 1]} : vector<8x512xf32> to vector<8x128xf32>
    %206 = arith.negf %205 : vector<8x128xf32>
    %207 = math.exp %206 : vector<8x128xf32>
    %cst_56 = arith.constant 1.000000e+00 : f32
    %208 = vector.broadcast %cst_56 : f32 to vector<8x128xf32>
    %209 = arith.addf %208, %207 : vector<8x128xf32>
    %210 = arith.divf %208, %209 : vector<8x128xf32>
    %211 = arith.mulf %202, %183 : vector<8x128xf32>
    %212 = arith.mulf %196, %204 : vector<8x128xf32>
    %213 = arith.addf %211, %212 : vector<8x128xf32>
    %214 = math.tanh %213 : vector<8x128xf32>
    %215 = arith.mulf %210, %214 : vector<8x128xf32>
    %c48_57 = arith.constant 48 : index
    %c0_58 = arith.constant 0 : index
    %216 = vector.load %arg8[%c48_57, %c0_58] : memref<192x128xf32, #tpu.memory_space<vmem>>, vector<8x128xf32>
    tpu.vector_store %arg8[%c48_57, %c0_58], %215 {strides = array<i32>} : memref<192x128xf32, #tpu.memory_space<vmem>>, vector<8x128xf32>,
    %c56 = arith.constant 56 : index
    %c0_59 = arith.constant 0 : index
    %217 = vector.load %arg7[%c56, %c0_59] : memref<192x512xf32, #tpu.memory_space<vmem>>, vector<8x512xf32>
    %218 = arith.truncf %215 : vector<8x128xf32> to vector<8x128xbf16>
    %cst_60 = arith.constant dense<0.000000e+00> : vector<8x512xf32>
    %219 = tpu.matmul %218, %8, %cst_60 {dimension_numbers = #tpu.dot_dimension_numbers<[1], [0], [0], [1], [0, 0, 1, 1], [], []>} : vector<8x128xbf16>, vector<128x512xbf16>, vector<8x512xf32> -> vector<8x512xf32>
    %220 = arith.addf %217, %219 : vector<8x512xf32>
    %221 = vector.extract_strided_slice %220 {offsets = [0, 0], sizes = [8, 128], strides = [1, 1]} : vector<8x512xf32> to vector<8x128xf32>
    %222 = arith.negf %221 : vector<8x128xf32>
    %223 = math.exp %222 : vector<8x128xf32>
    %cst_61 = arith.constant 1.000000e+00 : f32
    %224 = vector.broadcast %cst_61 : f32 to vector<8x128xf32>
    %225 = arith.addf %224, %223 : vector<8x128xf32>
    %226 = arith.divf %224, %225 : vector<8x128xf32>
    %227 = vector.extract_strided_slice %220 {offsets = [0, 128], sizes = [8, 128], strides = [1, 1]} : vector<8x512xf32> to vector<8x128xf32>
    %228 = arith.negf %227 : vector<8x128xf32>
    %229 = math.exp %228 : vector<8x128xf32>
    %cst_62 = arith.constant 1.000000e+00 : f32
    %230 = vector.broadcast %cst_62 : f32 to vector<8x128xf32>
    %231 = arith.addf %230, %229 : vector<8x128xf32>
    %232 = arith.divf %230, %231 : vector<8x128xf32>
    %233 = vector.extract_strided_slice %220 {offsets = [0, 256], sizes = [8, 128], strides = [1, 1]} : vector<8x512xf32> to vector<8x128xf32>
    %234 = math.tanh %233 : vector<8x128xf32>
    %235 = vector.extract_strided_slice %220 {offsets = [0, 384], sizes = [8, 128], strides = [1, 1]} : vector<8x512xf32> to vector<8x128xf32>
    %236 = arith.negf %235 : vector<8x128xf32>
    %237 = math.exp %236 : vector<8x128xf32>
    %cst_63 = arith.constant 1.000000e+00 : f32
    %238 = vector.broadcast %cst_63 : f32 to vector<8x128xf32>
    %239 = arith.addf %238, %237 : vector<8x128xf32>
    %240 = arith.divf %238, %239 : vector<8x128xf32>
    %241 = arith.mulf %232, %213 : vector<8x128xf32>
    %242 = arith.mulf %226, %234 : vector<8x128xf32>
    %243 = arith.addf %241, %242 : vector<8x128xf32>
    %244 = math.tanh %243 : vector<8x128xf32>
    %245 = arith.mulf %240, %244 : vector<8x128xf32>
    %c56_64 = arith.constant 56 : index
    %c0_65 = arith.constant 0 : index
    %246 = vector.load %arg8[%c56_64, %c0_65] : memref<192x128xf32, #tpu.memory_space<vmem>>, vector<8x128xf32>
    tpu.vector_store %arg8[%c56_64, %c0_65], %245 {strides = array<i32>} : memref<192x128xf32, #tpu.memory_space<vmem>>, vector<8x128xf32>,
    %c64 = arith.constant 64 : index
    %c0_66 = arith.constant 0 : index
    %247 = vector.load %arg7[%c64, %c0_66] : memref<192x512xf32, #tpu.memory_space<vmem>>, vector<8x512xf32>
    %248 = arith.truncf %245 : vector<8x128xf32> to vector<8x128xbf16>
    %cst_67 = arith.constant dense<0.000000e+00> : vector<8x512xf32>
    %249 = tpu.matmul %248, %8, %cst_67 {dimension_numbers = #tpu.dot_dimension_numbers<[1], [0], [0], [1], [0, 0, 1, 1], [], []>} : vector<8x128xbf16>, vector<128x512xbf16>, vector<8x512xf32> -> vector<8x512xf32>
    %250 = arith.addf %247, %249 : vector<8x512xf32>
    %251 = vector.extract_strided_slice %250 {offsets = [0, 0], sizes = [8, 128], strides = [1, 1]} : vector<8x512xf32> to vector<8x128xf32>
    %252 = arith.negf %251 : vector<8x128xf32>
    %253 = math.exp %252 : vector<8x128xf32>
    %cst_68 = arith.constant 1.000000e+00 : f32
    %254 = vector.broadcast %cst_68 : f32 to vector<8x128xf32>
    %255 = arith.addf %254, %253 : vector<8x128xf32>
    %256 = arith.divf %254, %255 : vector<8x128xf32>
    %257 = vector.extract_strided_slice %250 {offsets = [0, 128], sizes = [8, 128], strides = [1, 1]} : vector<8x512xf32> to vector<8x128xf32>
    %258 = arith.negf %257 : vector<8x128xf32>
    %259 = math.exp %258 : vector<8x128xf32>
    %cst_69 = arith.constant 1.000000e+00 : f32
    %260 = vector.broadcast %cst_69 : f32 to vector<8x128xf32>
    %261 = arith.addf %260, %259 : vector<8x128xf32>
    %262 = arith.divf %260, %261 : vector<8x128xf32>
    %263 = vector.extract_strided_slice %250 {offsets = [0, 256], sizes = [8, 128], strides = [1, 1]} : vector<8x512xf32> to vector<8x128xf32>
    %264 = math.tanh %263 : vector<8x128xf32>
    %265 = vector.extract_strided_slice %250 {offsets = [0, 384], sizes = [8, 128], strides = [1, 1]} : vector<8x512xf32> to vector<8x128xf32>
    %266 = arith.negf %265 : vector<8x128xf32>
    %267 = math.exp %266 : vector<8x128xf32>
    %cst_70 = arith.constant 1.000000e+00 : f32
    %268 = vector.broadcast %cst_70 : f32 to vector<8x128xf32>
    %269 = arith.addf %268, %267 : vector<8x128xf32>
    %270 = arith.divf %268, %269 : vector<8x128xf32>
    %271 = arith.mulf %262, %243 : vector<8x128xf32>
    %272 = arith.mulf %256, %264 : vector<8x128xf32>
    %273 = arith.addf %271, %272 : vector<8x128xf32>
    %274 = math.tanh %273 : vector<8x128xf32>
    %275 = arith.mulf %270, %274 : vector<8x128xf32>
    %c64_71 = arith.constant 64 : index
    %c0_72 = arith.constant 0 : index
    %276 = vector.load %arg8[%c64_71, %c0_72] : memref<192x128xf32, #tpu.memory_space<vmem>>, vector<8x128xf32>
    tpu.vector_store %arg8[%c64_71, %c0_72], %275 {strides = array<i32>} : memref<192x128xf32, #tpu.memory_space<vmem>>, vector<8x128xf32>,
    %c72 = arith.constant 72 : index
    %c0_73 = arith.constant 0 : index
    %277 = vector.load %arg7[%c72, %c0_73] : memref<192x512xf32, #tpu.memory_space<vmem>>, vector<8x512xf32>
    %278 = arith.truncf %275 : vector<8x128xf32> to vector<8x128xbf16>
    %cst_74 = arith.constant dense<0.000000e+00> : vector<8x512xf32>
    %279 = tpu.matmul %278, %8, %cst_74 {dimension_numbers = #tpu.dot_dimension_numbers<[1], [0], [0], [1], [0, 0, 1, 1], [], []>} : vector<8x128xbf16>, vector<128x512xbf16>, vector<8x512xf32> -> vector<8x512xf32>
    %280 = arith.addf %277, %279 : vector<8x512xf32>
    %281 = vector.extract_strided_slice %280 {offsets = [0, 0], sizes = [8, 128], strides = [1, 1]} : vector<8x512xf32> to vector<8x128xf32>
    %282 = arith.negf %281 : vector<8x128xf32>
    %283 = math.exp %282 : vector<8x128xf32>
    %cst_75 = arith.constant 1.000000e+00 : f32
    %284 = vector.broadcast %cst_75 : f32 to vector<8x128xf32>
    %285 = arith.addf %284, %283 : vector<8x128xf32>
    %286 = arith.divf %284, %285 : vector<8x128xf32>
    %287 = vector.extract_strided_slice %280 {offsets = [0, 128], sizes = [8, 128], strides = [1, 1]} : vector<8x512xf32> to vector<8x128xf32>
    %288 = arith.negf %287 : vector<8x128xf32>
    %289 = math.exp %288 : vector<8x128xf32>
    %cst_76 = arith.constant 1.000000e+00 : f32
    %290 = vector.broadcast %cst_76 : f32 to vector<8x128xf32>
    %291 = arith.addf %290, %289 : vector<8x128xf32>
    %292 = arith.divf %290, %291 : vector<8x128xf32>
    %293 = vector.extract_strided_slice %280 {offsets = [0, 256], sizes = [8, 128], strides = [1, 1]} : vector<8x512xf32> to vector<8x128xf32>
    %294 = math.tanh %293 : vector<8x128xf32>
    %295 = vector.extract_strided_slice %280 {offsets = [0, 384], sizes = [8, 128], strides = [1, 1]} : vector<8x512xf32> to vector<8x128xf32>
    %296 = arith.negf %295 : vector<8x128xf32>
    %297 = math.exp %296 : vector<8x128xf32>
    %cst_77 = arith.constant 1.000000e+00 : f32
    %298 = vector.broadcast %cst_77 : f32 to vector<8x128xf32>
    %299 = arith.addf %298, %297 : vector<8x128xf32>
    %300 = arith.divf %298, %299 : vector<8x128xf32>
    %301 = arith.mulf %292, %273 : vector<8x128xf32>
    %302 = arith.mulf %286, %294 : vector<8x128xf32>
    %303 = arith.addf %301, %302 : vector<8x128xf32>
    %304 = math.tanh %303 : vector<8x128xf32>
    %305 = arith.mulf %300, %304 : vector<8x128xf32>
    %c72_78 = arith.constant 72 : index
    %c0_79 = arith.constant 0 : index
    %306 = vector.load %arg8[%c72_78, %c0_79] : memref<192x128xf32, #tpu.memory_space<vmem>>, vector<8x128xf32>
    tpu.vector_store %arg8[%c72_78, %c0_79], %305 {strides = array<i32>} : memref<192x128xf32, #tpu.memory_space<vmem>>, vector<8x128xf32>,
    %c80 = arith.constant 80 : index
    %c0_80 = arith.constant 0 : index
    %307 = vector.load %arg7[%c80, %c0_80] : memref<192x512xf32, #tpu.memory_space<vmem>>, vector<8x512xf32>
    %308 = arith.truncf %305 : vector<8x128xf32> to vector<8x128xbf16>
    %cst_81 = arith.constant dense<0.000000e+00> : vector<8x512xf32>
    %309 = tpu.matmul %308, %8, %cst_81 {dimension_numbers = #tpu.dot_dimension_numbers<[1], [0], [0], [1], [0, 0, 1, 1], [], []>} : vector<8x128xbf16>, vector<128x512xbf16>, vector<8x512xf32> -> vector<8x512xf32>
    %310 = arith.addf %307, %309 : vector<8x512xf32>
    %311 = vector.extract_strided_slice %310 {offsets = [0, 0], sizes = [8, 128], strides = [1, 1]} : vector<8x512xf32> to vector<8x128xf32>
    %312 = arith.negf %311 : vector<8x128xf32>
    %313 = math.exp %312 : vector<8x128xf32>
    %cst_82 = arith.constant 1.000000e+00 : f32
    %314 = vector.broadcast %cst_82 : f32 to vector<8x128xf32>
    %315 = arith.addf %314, %313 : vector<8x128xf32>
    %316 = arith.divf %314, %315 : vector<8x128xf32>
    %317 = vector.extract_strided_slice %310 {offsets = [0, 128], sizes = [8, 128], strides = [1, 1]} : vector<8x512xf32> to vector<8x128xf32>
    %318 = arith.negf %317 : vector<8x128xf32>
    %319 = math.exp %318 : vector<8x128xf32>
    %cst_83 = arith.constant 1.000000e+00 : f32
    %320 = vector.broadcast %cst_83 : f32 to vector<8x128xf32>
    %321 = arith.addf %320, %319 : vector<8x128xf32>
    %322 = arith.divf %320, %321 : vector<8x128xf32>
    %323 = vector.extract_strided_slice %310 {offsets = [0, 256], sizes = [8, 128], strides = [1, 1]} : vector<8x512xf32> to vector<8x128xf32>
    %324 = math.tanh %323 : vector<8x128xf32>
    %325 = vector.extract_strided_slice %310 {offsets = [0, 384], sizes = [8, 128], strides = [1, 1]} : vector<8x512xf32> to vector<8x128xf32>
    %326 = arith.negf %325 : vector<8x128xf32>
    %327 = math.exp %326 : vector<8x128xf32>
    %cst_84 = arith.constant 1.000000e+00 : f32
    %328 = vector.broadcast %cst_84 : f32 to vector<8x128xf32>
    %329 = arith.addf %328, %327 : vector<8x128xf32>
    %330 = arith.divf %328, %329 : vector<8x128xf32>
    %331 = arith.mulf %322, %303 : vector<8x128xf32>
    %332 = arith.mulf %316, %324 : vector<8x128xf32>
    %333 = arith.addf %331, %332 : vector<8x128xf32>
    %334 = math.tanh %333 : vector<8x128xf32>
    %335 = arith.mulf %330, %334 : vector<8x128xf32>
    %c80_85 = arith.constant 80 : index
    %c0_86 = arith.constant 0 : index
    %336 = vector.load %arg8[%c80_85, %c0_86] : memref<192x128xf32, #tpu.memory_space<vmem>>, vector<8x128xf32>
    tpu.vector_store %arg8[%c80_85, %c0_86], %335 {strides = array<i32>} : memref<192x128xf32, #tpu.memory_space<vmem>>, vector<8x128xf32>,
    %c88 = arith.constant 88 : index
    %c0_87 = arith.constant 0 : index
    %337 = vector.load %arg7[%c88, %c0_87] : memref<192x512xf32, #tpu.memory_space<vmem>>, vector<8x512xf32>
    %338 = arith.truncf %335 : vector<8x128xf32> to vector<8x128xbf16>
    %cst_88 = arith.constant dense<0.000000e+00> : vector<8x512xf32>
    %339 = tpu.matmul %338, %8, %cst_88 {dimension_numbers = #tpu.dot_dimension_numbers<[1], [0], [0], [1], [0, 0, 1, 1], [], []>} : vector<8x128xbf16>, vector<128x512xbf16>, vector<8x512xf32> -> vector<8x512xf32>
    %340 = arith.addf %337, %339 : vector<8x512xf32>
    %341 = vector.extract_strided_slice %340 {offsets = [0, 0], sizes = [8, 128], strides = [1, 1]} : vector<8x512xf32> to vector<8x128xf32>
    %342 = arith.negf %341 : vector<8x128xf32>
    %343 = math.exp %342 : vector<8x128xf32>
    %cst_89 = arith.constant 1.000000e+00 : f32
    %344 = vector.broadcast %cst_89 : f32 to vector<8x128xf32>
    %345 = arith.addf %344, %343 : vector<8x128xf32>
    %346 = arith.divf %344, %345 : vector<8x128xf32>
    %347 = vector.extract_strided_slice %340 {offsets = [0, 128], sizes = [8, 128], strides = [1, 1]} : vector<8x512xf32> to vector<8x128xf32>
    %348 = arith.negf %347 : vector<8x128xf32>
    %349 = math.exp %348 : vector<8x128xf32>
    %cst_90 = arith.constant 1.000000e+00 : f32
    %350 = vector.broadcast %cst_90 : f32 to vector<8x128xf32>
    %351 = arith.addf %350, %349 : vector<8x128xf32>
    %352 = arith.divf %350, %351 : vector<8x128xf32>
    %353 = vector.extract_strided_slice %340 {offsets = [0, 256], sizes = [8, 128], strides = [1, 1]} : vector<8x512xf32> to vector<8x128xf32>
    %354 = math.tanh %353 : vector<8x128xf32>
    %355 = vector.extract_strided_slice %340 {offsets = [0, 384], sizes = [8, 128], strides = [1, 1]} : vector<8x512xf32> to vector<8x128xf32>
    %356 = arith.negf %355 : vector<8x128xf32>
    %357 = math.exp %356 : vector<8x128xf32>
    %cst_91 = arith.constant 1.000000e+00 : f32
    %358 = vector.broadcast %cst_91 : f32 to vector<8x128xf32>
    %359 = arith.addf %358, %357 : vector<8x128xf32>
    %360 = arith.divf %358, %359 : vector<8x128xf32>
    %361 = arith.mulf %352, %333 : vector<8x128xf32>
    %362 = arith.mulf %346, %354 : vector<8x128xf32>
    %363 = arith.addf %361, %362 : vector<8x128xf32>
    %364 = math.tanh %363 : vector<8x128xf32>
    %365 = arith.mulf %360, %364 : vector<8x128xf32>
    %c88_92 = arith.constant 88 : index
    %c0_93 = arith.constant 0 : index
    %366 = vector.load %arg8[%c88_92, %c0_93] : memref<192x128xf32, #tpu.memory_space<vmem>>, vector<8x128xf32>
    tpu.vector_store %arg8[%c88_92, %c0_93], %365 {strides = array<i32>} : memref<192x128xf32, #tpu.memory_space<vmem>>, vector<8x128xf32>,
    %c96 = arith.constant 96 : index
    %c0_94 = arith.constant 0 : index
    %367 = vector.load %arg7[%c96, %c0_94] : memref<192x512xf32, #tpu.memory_space<vmem>>, vector<8x512xf32>
    %368 = arith.truncf %365 : vector<8x128xf32> to vector<8x128xbf16>
    %cst_95 = arith.constant dense<0.000000e+00> : vector<8x512xf32>
    %369 = tpu.matmul %368, %8, %cst_95 {dimension_numbers = #tpu.dot_dimension_numbers<[1], [0], [0], [1], [0, 0, 1, 1], [], []>} : vector<8x128xbf16>, vector<128x512xbf16>, vector<8x512xf32> -> vector<8x512xf32>
    %370 = arith.addf %367, %369 : vector<8x512xf32>
    %371 = vector.extract_strided_slice %370 {offsets = [0, 0], sizes = [8, 128], strides = [1, 1]} : vector<8x512xf32> to vector<8x128xf32>
    %372 = arith.negf %371 : vector<8x128xf32>
    %373 = math.exp %372 : vector<8x128xf32>
    %cst_96 = arith.constant 1.000000e+00 : f32
    %374 = vector.broadcast %cst_96 : f32 to vector<8x128xf32>
    %375 = arith.addf %374, %373 : vector<8x128xf32>
    %376 = arith.divf %374, %375 : vector<8x128xf32>
    %377 = vector.extract_strided_slice %370 {offsets = [0, 128], sizes = [8, 128], strides = [1, 1]} : vector<8x512xf32> to vector<8x128xf32>
    %378 = arith.negf %377 : vector<8x128xf32>
    %379 = math.exp %378 : vector<8x128xf32>
    %cst_97 = arith.constant 1.000000e+00 : f32
    %380 = vector.broadcast %cst_97 : f32 to vector<8x128xf32>
    %381 = arith.addf %380, %379 : vector<8x128xf32>
    %382 = arith.divf %380, %381 : vector<8x128xf32>
    %383 = vector.extract_strided_slice %370 {offsets = [0, 256], sizes = [8, 128], strides = [1, 1]} : vector<8x512xf32> to vector<8x128xf32>
    %384 = math.tanh %383 : vector<8x128xf32>
    %385 = vector.extract_strided_slice %370 {offsets = [0, 384], sizes = [8, 128], strides = [1, 1]} : vector<8x512xf32> to vector<8x128xf32>
    %386 = arith.negf %385 : vector<8x128xf32>
    %387 = math.exp %386 : vector<8x128xf32>
    %cst_98 = arith.constant 1.000000e+00 : f32
    %388 = vector.broadcast %cst_98 : f32 to vector<8x128xf32>
    %389 = arith.addf %388, %387 : vector<8x128xf32>
    %390 = arith.divf %388, %389 : vector<8x128xf32>
    %391 = arith.mulf %382, %363 : vector<8x128xf32>
    %392 = arith.mulf %376, %384 : vector<8x128xf32>
    %393 = arith.addf %391, %392 : vector<8x128xf32>
    %394 = math.tanh %393 : vector<8x128xf32>
    %395 = arith.mulf %390, %394 : vector<8x128xf32>
    %c96_99 = arith.constant 96 : index
    %c0_100 = arith.constant 0 : index
    %396 = vector.load %arg8[%c96_99, %c0_100] : memref<192x128xf32, #tpu.memory_space<vmem>>, vector<8x128xf32>
    tpu.vector_store %arg8[%c96_99, %c0_100], %395 {strides = array<i32>} : memref<192x128xf32, #tpu.memory_space<vmem>>, vector<8x128xf32>,
    %c104 = arith.constant 104 : index
    %c0_101 = arith.constant 0 : index
    %397 = vector.load %arg7[%c104, %c0_101] : memref<192x512xf32, #tpu.memory_space<vmem>>, vector<8x512xf32>
    %398 = arith.truncf %395 : vector<8x128xf32> to vector<8x128xbf16>
    %cst_102 = arith.constant dense<0.000000e+00> : vector<8x512xf32>
    %399 = tpu.matmul %398, %8, %cst_102 {dimension_numbers = #tpu.dot_dimension_numbers<[1], [0], [0], [1], [0, 0, 1, 1], [], []>} : vector<8x128xbf16>, vector<128x512xbf16>, vector<8x512xf32> -> vector<8x512xf32>
    %400 = arith.addf %397, %399 : vector<8x512xf32>
    %401 = vector.extract_strided_slice %400 {offsets = [0, 0], sizes = [8, 128], strides = [1, 1]} : vector<8x512xf32> to vector<8x128xf32>
    %402 = arith.negf %401 : vector<8x128xf32>
    %403 = math.exp %402 : vector<8x128xf32>
    %cst_103 = arith.constant 1.000000e+00 : f32
    %404 = vector.broadcast %cst_103 : f32 to vector<8x128xf32>
    %405 = arith.addf %404, %403 : vector<8x128xf32>
    %406 = arith.divf %404, %405 : vector<8x128xf32>
    %407 = vector.extract_strided_slice %400 {offsets = [0, 128], sizes = [8, 128], strides = [1, 1]} : vector<8x512xf32> to vector<8x128xf32>
    %408 = arith.negf %407 : vector<8x128xf32>
    %409 = math.exp %408 : vector<8x128xf32>
    %cst_104 = arith.constant 1.000000e+00 : f32
    %410 = vector.broadcast %cst_104 : f32 to vector<8x128xf32>
    %411 = arith.addf %410, %409 : vector<8x128xf32>
    %412 = arith.divf %410, %411 : vector<8x128xf32>
    %413 = vector.extract_strided_slice %400 {offsets = [0, 256], sizes = [8, 128], strides = [1, 1]} : vector<8x512xf32> to vector<8x128xf32>
    %414 = math.tanh %413 : vector<8x128xf32>
    %415 = vector.extract_strided_slice %400 {offsets = [0, 384], sizes = [8, 128], strides = [1, 1]} : vector<8x512xf32> to vector<8x128xf32>
    %416 = arith.negf %415 : vector<8x128xf32>
    %417 = math.exp %416 : vector<8x128xf32>
    %cst_105 = arith.constant 1.000000e+00 : f32
    %418 = vector.broadcast %cst_105 : f32 to vector<8x128xf32>
    %419 = arith.addf %418, %417 : vector<8x128xf32>
    %420 = arith.divf %418, %419 : vector<8x128xf32>
    %421 = arith.mulf %412, %393 : vector<8x128xf32>
    %422 = arith.mulf %406, %414 : vector<8x128xf32>
    %423 = arith.addf %421, %422 : vector<8x128xf32>
    %424 = math.tanh %423 : vector<8x128xf32>
    %425 = arith.mulf %420, %424 : vector<8x128xf32>
    %c104_106 = arith.constant 104 : index
    %c0_107 = arith.constant 0 : index
    %426 = vector.load %arg8[%c104_106, %c0_107] : memref<192x128xf32, #tpu.memory_space<vmem>>, vector<8x128xf32>
    tpu.vector_store %arg8[%c104_106, %c0_107], %425 {strides = array<i32>} : memref<192x128xf32, #tpu.memory_space<vmem>>, vector<8x128xf32>,
    %c112 = arith.constant 112 : index
    %c0_108 = arith.constant 0 : index
    %427 = vector.load %arg7[%c112, %c0_108] : memref<192x512xf32, #tpu.memory_space<vmem>>, vector<8x512xf32>
    %428 = arith.truncf %425 : vector<8x128xf32> to vector<8x128xbf16>
    %cst_109 = arith.constant dense<0.000000e+00> : vector<8x512xf32>
    %429 = tpu.matmul %428, %8, %cst_109 {dimension_numbers = #tpu.dot_dimension_numbers<[1], [0], [0], [1], [0, 0, 1, 1], [], []>} : vector<8x128xbf16>, vector<128x512xbf16>, vector<8x512xf32> -> vector<8x512xf32>
    %430 = arith.addf %427, %429 : vector<8x512xf32>
    %431 = vector.extract_strided_slice %430 {offsets = [0, 0], sizes = [8, 128], strides = [1, 1]} : vector<8x512xf32> to vector<8x128xf32>
    %432 = arith.negf %431 : vector<8x128xf32>
    %433 = math.exp %432 : vector<8x128xf32>
    %cst_110 = arith.constant 1.000000e+00 : f32
    %434 = vector.broadcast %cst_110 : f32 to vector<8x128xf32>
    %435 = arith.addf %434, %433 : vector<8x128xf32>
    %436 = arith.divf %434, %435 : vector<8x128xf32>
    %437 = vector.extract_strided_slice %430 {offsets = [0, 128], sizes = [8, 128], strides = [1, 1]} : vector<8x512xf32> to vector<8x128xf32>
    %438 = arith.negf %437 : vector<8x128xf32>
    %439 = math.exp %438 : vector<8x128xf32>
    %cst_111 = arith.constant 1.000000e+00 : f32
    %440 = vector.broadcast %cst_111 : f32 to vector<8x128xf32>
    %441 = arith.addf %440, %439 : vector<8x128xf32>
    %442 = arith.divf %440, %441 : vector<8x128xf32>
    %443 = vector.extract_strided_slice %430 {offsets = [0, 256], sizes = [8, 128], strides = [1, 1]} : vector<8x512xf32> to vector<8x128xf32>
    %444 = math.tanh %443 : vector<8x128xf32>
    %445 = vector.extract_strided_slice %430 {offsets = [0, 384], sizes = [8, 128], strides = [1, 1]} : vector<8x512xf32> to vector<8x128xf32>
    %446 = arith.negf %445 : vector<8x128xf32>
    %447 = math.exp %446 : vector<8x128xf32>
    %cst_112 = arith.constant 1.000000e+00 : f32
    %448 = vector.broadcast %cst_112 : f32 to vector<8x128xf32>
    %449 = arith.addf %448, %447 : vector<8x128xf32>
    %450 = arith.divf %448, %449 : vector<8x128xf32>
    %451 = arith.mulf %442, %423 : vector<8x128xf32>
    %452 = arith.mulf %436, %444 : vector<8x128xf32>
    %453 = arith.addf %451, %452 : vector<8x128xf32>
    %454 = math.tanh %453 : vector<8x128xf32>
    %455 = arith.mulf %450, %454 : vector<8x128xf32>
    %c112_113 = arith.constant 112 : index
    %c0_114 = arith.constant 0 : index
    %456 = vector.load %arg8[%c112_113, %c0_114] : memref<192x128xf32, #tpu.memory_space<vmem>>, vector<8x128xf32>
    tpu.vector_store %arg8[%c112_113, %c0_114], %455 {strides = array<i32>} : memref<192x128xf32, #tpu.memory_space<vmem>>, vector<8x128xf32>,
    %c120 = arith.constant 120 : index
    %c0_115 = arith.constant 0 : index
    %457 = vector.load %arg7[%c120, %c0_115] : memref<192x512xf32, #tpu.memory_space<vmem>>, vector<8x512xf32>
    %458 = arith.truncf %455 : vector<8x128xf32> to vector<8x128xbf16>
    %cst_116 = arith.constant dense<0.000000e+00> : vector<8x512xf32>
    %459 = tpu.matmul %458, %8, %cst_116 {dimension_numbers = #tpu.dot_dimension_numbers<[1], [0], [0], [1], [0, 0, 1, 1], [], []>} : vector<8x128xbf16>, vector<128x512xbf16>, vector<8x512xf32> -> vector<8x512xf32>
    %460 = arith.addf %457, %459 : vector<8x512xf32>
    %461 = vector.extract_strided_slice %460 {offsets = [0, 0], sizes = [8, 128], strides = [1, 1]} : vector<8x512xf32> to vector<8x128xf32>
    %462 = arith.negf %461 : vector<8x128xf32>
    %463 = math.exp %462 : vector<8x128xf32>
    %cst_117 = arith.constant 1.000000e+00 : f32
    %464 = vector.broadcast %cst_117 : f32 to vector<8x128xf32>
    %465 = arith.addf %464, %463 : vector<8x128xf32>
    %466 = arith.divf %464, %465 : vector<8x128xf32>
    %467 = vector.extract_strided_slice %460 {offsets = [0, 128], sizes = [8, 128], strides = [1, 1]} : vector<8x512xf32> to vector<8x128xf32>
    %468 = arith.negf %467 : vector<8x128xf32>
    %469 = math.exp %468 : vector<8x128xf32>
    %cst_118 = arith.constant 1.000000e+00 : f32
    %470 = vector.broadcast %cst_118 : f32 to vector<8x128xf32>
    %471 = arith.addf %470, %469 : vector<8x128xf32>
    %472 = arith.divf %470, %471 : vector<8x128xf32>
    %473 = vector.extract_strided_slice %460 {offsets = [0, 256], sizes = [8, 128], strides = [1, 1]} : vector<8x512xf32> to vector<8x128xf32>
    %474 = math.tanh %473 : vector<8x128xf32>
    %475 = vector.extract_strided_slice %460 {offsets = [0, 384], sizes = [8, 128], strides = [1, 1]} : vector<8x512xf32> to vector<8x128xf32>
    %476 = arith.negf %475 : vector<8x128xf32>
    %477 = math.exp %476 : vector<8x128xf32>
    %cst_119 = arith.constant 1.000000e+00 : f32
    %478 = vector.broadcast %cst_119 : f32 to vector<8x128xf32>
    %479 = arith.addf %478, %477 : vector<8x128xf32>
    %480 = arith.divf %478, %479 : vector<8x128xf32>
    %481 = arith.mulf %472, %453 : vector<8x128xf32>
    %482 = arith.mulf %466, %474 : vector<8x128xf32>
    %483 = arith.addf %481, %482 : vector<8x128xf32>
    %484 = math.tanh %483 : vector<8x128xf32>
    %485 = arith.mulf %480, %484 : vector<8x128xf32>
    %c120_120 = arith.constant 120 : index
    %c0_121 = arith.constant 0 : index
    %486 = vector.load %arg8[%c120_120, %c0_121] : memref<192x128xf32, #tpu.memory_space<vmem>>, vector<8x128xf32>
    tpu.vector_store %arg8[%c120_120, %c0_121], %485 {strides = array<i32>} : memref<192x128xf32, #tpu.memory_space<vmem>>, vector<8x128xf32>,
    %c128 = arith.constant 128 : index
    %c0_122 = arith.constant 0 : index
    %487 = vector.load %arg7[%c128, %c0_122] : memref<192x512xf32, #tpu.memory_space<vmem>>, vector<8x512xf32>
    %488 = arith.truncf %485 : vector<8x128xf32> to vector<8x128xbf16>
    %cst_123 = arith.constant dense<0.000000e+00> : vector<8x512xf32>
    %489 = tpu.matmul %488, %8, %cst_123 {dimension_numbers = #tpu.dot_dimension_numbers<[1], [0], [0], [1], [0, 0, 1, 1], [], []>} : vector<8x128xbf16>, vector<128x512xbf16>, vector<8x512xf32> -> vector<8x512xf32>
    %490 = arith.addf %487, %489 : vector<8x512xf32>
    %491 = vector.extract_strided_slice %490 {offsets = [0, 0], sizes = [8, 128], strides = [1, 1]} : vector<8x512xf32> to vector<8x128xf32>
    %492 = arith.negf %491 : vector<8x128xf32>
    %493 = math.exp %492 : vector<8x128xf32>
    %cst_124 = arith.constant 1.000000e+00 : f32
    %494 = vector.broadcast %cst_124 : f32 to vector<8x128xf32>
    %495 = arith.addf %494, %493 : vector<8x128xf32>
    %496 = arith.divf %494, %495 : vector<8x128xf32>
    %497 = vector.extract_strided_slice %490 {offsets = [0, 128], sizes = [8, 128], strides = [1, 1]} : vector<8x512xf32> to vector<8x128xf32>
    %498 = arith.negf %497 : vector<8x128xf32>
    %499 = math.exp %498 : vector<8x128xf32>
    %cst_125 = arith.constant 1.000000e+00 : f32
    %500 = vector.broadcast %cst_125 : f32 to vector<8x128xf32>
    %501 = arith.addf %500, %499 : vector<8x128xf32>
    %502 = arith.divf %500, %501 : vector<8x128xf32>
    %503 = vector.extract_strided_slice %490 {offsets = [0, 256], sizes = [8, 128], strides = [1, 1]} : vector<8x512xf32> to vector<8x128xf32>
    %504 = math.tanh %503 : vector<8x128xf32>
    %505 = vector.extract_strided_slice %490 {offsets = [0, 384], sizes = [8, 128], strides = [1, 1]} : vector<8x512xf32> to vector<8x128xf32>
    %506 = arith.negf %505 : vector<8x128xf32>
    %507 = math.exp %506 : vector<8x128xf32>
    %cst_126 = arith.constant 1.000000e+00 : f32
    %508 = vector.broadcast %cst_126 : f32 to vector<8x128xf32>
    %509 = arith.addf %508, %507 : vector<8x128xf32>
    %510 = arith.divf %508, %509 : vector<8x128xf32>
    %511 = arith.mulf %502, %483 : vector<8x128xf32>
    %512 = arith.mulf %496, %504 : vector<8x128xf32>
    %513 = arith.addf %511, %512 : vector<8x128xf32>
    %514 = math.tanh %513 : vector<8x128xf32>
    %515 = arith.mulf %510, %514 : vector<8x128xf32>
    %c128_127 = arith.constant 128 : index
    %c0_128 = arith.constant 0 : index
    %516 = vector.load %arg8[%c128_127, %c0_128] : memref<192x128xf32, #tpu.memory_space<vmem>>, vector<8x128xf32>
    tpu.vector_store %arg8[%c128_127, %c0_128], %515 {strides = array<i32>} : memref<192x128xf32, #tpu.memory_space<vmem>>, vector<8x128xf32>,
    %c136 = arith.constant 136 : index
    %c0_129 = arith.constant 0 : index
    %517 = vector.load %arg7[%c136, %c0_129] : memref<192x512xf32, #tpu.memory_space<vmem>>, vector<8x512xf32>
    %518 = arith.truncf %515 : vector<8x128xf32> to vector<8x128xbf16>
    %cst_130 = arith.constant dense<0.000000e+00> : vector<8x512xf32>
    %519 = tpu.matmul %518, %8, %cst_130 {dimension_numbers = #tpu.dot_dimension_numbers<[1], [0], [0], [1], [0, 0, 1, 1], [], []>} : vector<8x128xbf16>, vector<128x512xbf16>, vector<8x512xf32> -> vector<8x512xf32>
    %520 = arith.addf %517, %519 : vector<8x512xf32>
    %521 = vector.extract_strided_slice %520 {offsets = [0, 0], sizes = [8, 128], strides = [1, 1]} : vector<8x512xf32> to vector<8x128xf32>
    %522 = arith.negf %521 : vector<8x128xf32>
    %523 = math.exp %522 : vector<8x128xf32>
    %cst_131 = arith.constant 1.000000e+00 : f32
    %524 = vector.broadcast %cst_131 : f32 to vector<8x128xf32>
    %525 = arith.addf %524, %523 : vector<8x128xf32>
    %526 = arith.divf %524, %525 : vector<8x128xf32>
    %527 = vector.extract_strided_slice %520 {offsets = [0, 128], sizes = [8, 128], strides = [1, 1]} : vector<8x512xf32> to vector<8x128xf32>
    %528 = arith.negf %527 : vector<8x128xf32>
    %529 = math.exp %528 : vector<8x128xf32>
    %cst_132 = arith.constant 1.000000e+00 : f32
    %530 = vector.broadcast %cst_132 : f32 to vector<8x128xf32>
    %531 = arith.addf %530, %529 : vector<8x128xf32>
    %532 = arith.divf %530, %531 : vector<8x128xf32>
    %533 = vector.extract_strided_slice %520 {offsets = [0, 256], sizes = [8, 128], strides = [1, 1]} : vector<8x512xf32> to vector<8x128xf32>
    %534 = math.tanh %533 : vector<8x128xf32>
    %535 = vector.extract_strided_slice %520 {offsets = [0, 384], sizes = [8, 128], strides = [1, 1]} : vector<8x512xf32> to vector<8x128xf32>
    %536 = arith.negf %535 : vector<8x128xf32>
    %537 = math.exp %536 : vector<8x128xf32>
    %cst_133 = arith.constant 1.000000e+00 : f32
    %538 = vector.broadcast %cst_133 : f32 to vector<8x128xf32>
    %539 = arith.addf %538, %537 : vector<8x128xf32>
    %540 = arith.divf %538, %539 : vector<8x128xf32>
    %541 = arith.mulf %532, %513 : vector<8x128xf32>
    %542 = arith.mulf %526, %534 : vector<8x128xf32>
    %543 = arith.addf %541, %542 : vector<8x128xf32>
    %544 = math.tanh %543 : vector<8x128xf32>
    %545 = arith.mulf %540, %544 : vector<8x128xf32>
    %c136_134 = arith.constant 136 : index
    %c0_135 = arith.constant 0 : index
    %546 = vector.load %arg8[%c136_134, %c0_135] : memref<192x128xf32, #tpu.memory_space<vmem>>, vector<8x128xf32>
    tpu.vector_store %arg8[%c136_134, %c0_135], %545 {strides = array<i32>} : memref<192x128xf32, #tpu.memory_space<vmem>>, vector<8x128xf32>,
    %c144 = arith.constant 144 : index
    %c0_136 = arith.constant 0 : index
    %547 = vector.load %arg7[%c144, %c0_136] : memref<192x512xf32, #tpu.memory_space<vmem>>, vector<8x512xf32>
    %548 = arith.truncf %545 : vector<8x128xf32> to vector<8x128xbf16>
    %cst_137 = arith.constant dense<0.000000e+00> : vector<8x512xf32>
    %549 = tpu.matmul %548, %8, %cst_137 {dimension_numbers = #tpu.dot_dimension_numbers<[1], [0], [0], [1], [0, 0, 1, 1], [], []>} : vector<8x128xbf16>, vector<128x512xbf16>, vector<8x512xf32> -> vector<8x512xf32>
    %550 = arith.addf %547, %549 : vector<8x512xf32>
    %551 = vector.extract_strided_slice %550 {offsets = [0, 0], sizes = [8, 128], strides = [1, 1]} : vector<8x512xf32> to vector<8x128xf32>
    %552 = arith.negf %551 : vector<8x128xf32>
    %553 = math.exp %552 : vector<8x128xf32>
    %cst_138 = arith.constant 1.000000e+00 : f32
    %554 = vector.broadcast %cst_138 : f32 to vector<8x128xf32>
    %555 = arith.addf %554, %553 : vector<8x128xf32>
    %556 = arith.divf %554, %555 : vector<8x128xf32>
    %557 = vector.extract_strided_slice %550 {offsets = [0, 128], sizes = [8, 128], strides = [1, 1]} : vector<8x512xf32> to vector<8x128xf32>
    %558 = arith.negf %557 : vector<8x128xf32>
    %559 = math.exp %558 : vector<8x128xf32>
    %cst_139 = arith.constant 1.000000e+00 : f32
    %560 = vector.broadcast %cst_139 : f32 to vector<8x128xf32>
    %561 = arith.addf %560, %559 : vector<8x128xf32>
    %562 = arith.divf %560, %561 : vector<8x128xf32>
    %563 = vector.extract_strided_slice %550 {offsets = [0, 256], sizes = [8, 128], strides = [1, 1]} : vector<8x512xf32> to vector<8x128xf32>
    %564 = math.tanh %563 : vector<8x128xf32>
    %565 = vector.extract_strided_slice %550 {offsets = [0, 384], sizes = [8, 128], strides = [1, 1]} : vector<8x512xf32> to vector<8x128xf32>
    %566 = arith.negf %565 : vector<8x128xf32>
    %567 = math.exp %566 : vector<8x128xf32>
    %cst_140 = arith.constant 1.000000e+00 : f32
    %568 = vector.broadcast %cst_140 : f32 to vector<8x128xf32>
    %569 = arith.addf %568, %567 : vector<8x128xf32>
    %570 = arith.divf %568, %569 : vector<8x128xf32>
    %571 = arith.mulf %562, %543 : vector<8x128xf32>
    %572 = arith.mulf %556, %564 : vector<8x128xf32>
    %573 = arith.addf %571, %572 : vector<8x128xf32>
    %574 = math.tanh %573 : vector<8x128xf32>
    %575 = arith.mulf %570, %574 : vector<8x128xf32>
    %c144_141 = arith.constant 144 : index
    %c0_142 = arith.constant 0 : index
    %576 = vector.load %arg8[%c144_141, %c0_142] : memref<192x128xf32, #tpu.memory_space<vmem>>, vector<8x128xf32>
    tpu.vector_store %arg8[%c144_141, %c0_142], %575 {strides = array<i32>} : memref<192x128xf32, #tpu.memory_space<vmem>>, vector<8x128xf32>,
    %c152 = arith.constant 152 : index
    %c0_143 = arith.constant 0 : index
    %577 = vector.load %arg7[%c152, %c0_143] : memref<192x512xf32, #tpu.memory_space<vmem>>, vector<8x512xf32>
    %578 = arith.truncf %575 : vector<8x128xf32> to vector<8x128xbf16>
    %cst_144 = arith.constant dense<0.000000e+00> : vector<8x512xf32>
    %579 = tpu.matmul %578, %8, %cst_144 {dimension_numbers = #tpu.dot_dimension_numbers<[1], [0], [0], [1], [0, 0, 1, 1], [], []>} : vector<8x128xbf16>, vector<128x512xbf16>, vector<8x512xf32> -> vector<8x512xf32>
    %580 = arith.addf %577, %579 : vector<8x512xf32>
    %581 = vector.extract_strided_slice %580 {offsets = [0, 0], sizes = [8, 128], strides = [1, 1]} : vector<8x512xf32> to vector<8x128xf32>
    %582 = arith.negf %581 : vector<8x128xf32>
    %583 = math.exp %582 : vector<8x128xf32>
    %cst_145 = arith.constant 1.000000e+00 : f32
    %584 = vector.broadcast %cst_145 : f32 to vector<8x128xf32>
    %585 = arith.addf %584, %583 : vector<8x128xf32>
    %586 = arith.divf %584, %585 : vector<8x128xf32>
    %587 = vector.extract_strided_slice %580 {offsets = [0, 128], sizes = [8, 128], strides = [1, 1]} : vector<8x512xf32> to vector<8x128xf32>
    %588 = arith.negf %587 : vector<8x128xf32>
    %589 = math.exp %588 : vector<8x128xf32>
    %cst_146 = arith.constant 1.000000e+00 : f32
    %590 = vector.broadcast %cst_146 : f32 to vector<8x128xf32>
    %591 = arith.addf %590, %589 : vector<8x128xf32>
    %592 = arith.divf %590, %591 : vector<8x128xf32>
    %593 = vector.extract_strided_slice %580 {offsets = [0, 256], sizes = [8, 128], strides = [1, 1]} : vector<8x512xf32> to vector<8x128xf32>
    %594 = math.tanh %593 : vector<8x128xf32>
    %595 = vector.extract_strided_slice %580 {offsets = [0, 384], sizes = [8, 128], strides = [1, 1]} : vector<8x512xf32> to vector<8x128xf32>
    %596 = arith.negf %595 : vector<8x128xf32>
    %597 = math.exp %596 : vector<8x128xf32>
    %cst_147 = arith.constant 1.000000e+00 : f32
    %598 = vector.broadcast %cst_147 : f32 to vector<8x128xf32>
    %599 = arith.addf %598, %597 : vector<8x128xf32>
    %600 = arith.divf %598, %599 : vector<8x128xf32>
    %601 = arith.mulf %592, %573 : vector<8x128xf32>
    %602 = arith.mulf %586, %594 : vector<8x128xf32>
    %603 = arith.addf %601, %602 : vector<8x128xf32>
    %604 = math.tanh %603 : vector<8x128xf32>
    %605 = arith.mulf %600, %604 : vector<8x128xf32>
    %c152_148 = arith.constant 152 : index
    %c0_149 = arith.constant 0 : index
    %606 = vector.load %arg8[%c152_148, %c0_149] : memref<192x128xf32, #tpu.memory_space<vmem>>, vector<8x128xf32>
    tpu.vector_store %arg8[%c152_148, %c0_149], %605 {strides = array<i32>} : memref<192x128xf32, #tpu.memory_space<vmem>>, vector<8x128xf32>,
    %c160 = arith.constant 160 : index
    %c0_150 = arith.constant 0 : index
    %607 = vector.load %arg7[%c160, %c0_150] : memref<192x512xf32, #tpu.memory_space<vmem>>, vector<8x512xf32>
    %608 = arith.truncf %605 : vector<8x128xf32> to vector<8x128xbf16>
    %cst_151 = arith.constant dense<0.000000e+00> : vector<8x512xf32>
    %609 = tpu.matmul %608, %8, %cst_151 {dimension_numbers = #tpu.dot_dimension_numbers<[1], [0], [0], [1], [0, 0, 1, 1], [], []>} : vector<8x128xbf16>, vector<128x512xbf16>, vector<8x512xf32> -> vector<8x512xf32>
    %610 = arith.addf %607, %609 : vector<8x512xf32>
    %611 = vector.extract_strided_slice %610 {offsets = [0, 0], sizes = [8, 128], strides = [1, 1]} : vector<8x512xf32> to vector<8x128xf32>
    %612 = arith.negf %611 : vector<8x128xf32>
    %613 = math.exp %612 : vector<8x128xf32>
    %cst_152 = arith.constant 1.000000e+00 : f32
    %614 = vector.broadcast %cst_152 : f32 to vector<8x128xf32>
    %615 = arith.addf %614, %613 : vector<8x128xf32>
    %616 = arith.divf %614, %615 : vector<8x128xf32>
    %617 = vector.extract_strided_slice %610 {offsets = [0, 128], sizes = [8, 128], strides = [1, 1]} : vector<8x512xf32> to vector<8x128xf32>
    %618 = arith.negf %617 : vector<8x128xf32>
    %619 = math.exp %618 : vector<8x128xf32>
    %cst_153 = arith.constant 1.000000e+00 : f32
    %620 = vector.broadcast %cst_153 : f32 to vector<8x128xf32>
    %621 = arith.addf %620, %619 : vector<8x128xf32>
    %622 = arith.divf %620, %621 : vector<8x128xf32>
    %623 = vector.extract_strided_slice %610 {offsets = [0, 256], sizes = [8, 128], strides = [1, 1]} : vector<8x512xf32> to vector<8x128xf32>
    %624 = math.tanh %623 : vector<8x128xf32>
    %625 = vector.extract_strided_slice %610 {offsets = [0, 384], sizes = [8, 128], strides = [1, 1]} : vector<8x512xf32> to vector<8x128xf32>
    %626 = arith.negf %625 : vector<8x128xf32>
    %627 = math.exp %626 : vector<8x128xf32>
    %cst_154 = arith.constant 1.000000e+00 : f32
    %628 = vector.broadcast %cst_154 : f32 to vector<8x128xf32>
    %629 = arith.addf %628, %627 : vector<8x128xf32>
    %630 = arith.divf %628, %629 : vector<8x128xf32>
    %631 = arith.mulf %622, %603 : vector<8x128xf32>
    %632 = arith.mulf %616, %624 : vector<8x128xf32>
    %633 = arith.addf %631, %632 : vector<8x128xf32>
    %634 = math.tanh %633 : vector<8x128xf32>
    %635 = arith.mulf %630, %634 : vector<8x128xf32>
    %c160_155 = arith.constant 160 : index
    %c0_156 = arith.constant 0 : index
    %636 = vector.load %arg8[%c160_155, %c0_156] : memref<192x128xf32, #tpu.memory_space<vmem>>, vector<8x128xf32>
    tpu.vector_store %arg8[%c160_155, %c0_156], %635 {strides = array<i32>} : memref<192x128xf32, #tpu.memory_space<vmem>>, vector<8x128xf32>,
    %c168 = arith.constant 168 : index
    %c0_157 = arith.constant 0 : index
    %637 = vector.load %arg7[%c168, %c0_157] : memref<192x512xf32, #tpu.memory_space<vmem>>, vector<8x512xf32>
    %638 = arith.truncf %635 : vector<8x128xf32> to vector<8x128xbf16>
    %cst_158 = arith.constant dense<0.000000e+00> : vector<8x512xf32>
    %639 = tpu.matmul %638, %8, %cst_158 {dimension_numbers = #tpu.dot_dimension_numbers<[1], [0], [0], [1], [0, 0, 1, 1], [], []>} : vector<8x128xbf16>, vector<128x512xbf16>, vector<8x512xf32> -> vector<8x512xf32>
    %640 = arith.addf %637, %639 : vector<8x512xf32>
    %641 = vector.extract_strided_slice %640 {offsets = [0, 0], sizes = [8, 128], strides = [1, 1]} : vector<8x512xf32> to vector<8x128xf32>
    %642 = arith.negf %641 : vector<8x128xf32>
    %643 = math.exp %642 : vector<8x128xf32>
    %cst_159 = arith.constant 1.000000e+00 : f32
    %644 = vector.broadcast %cst_159 : f32 to vector<8x128xf32>
    %645 = arith.addf %644, %643 : vector<8x128xf32>
    %646 = arith.divf %644, %645 : vector<8x128xf32>
    %647 = vector.extract_strided_slice %640 {offsets = [0, 128], sizes = [8, 128], strides = [1, 1]} : vector<8x512xf32> to vector<8x128xf32>
    %648 = arith.negf %647 : vector<8x128xf32>
    %649 = math.exp %648 : vector<8x128xf32>
    %cst_160 = arith.constant 1.000000e+00 : f32
    %650 = vector.broadcast %cst_160 : f32 to vector<8x128xf32>
    %651 = arith.addf %650, %649 : vector<8x128xf32>
    %652 = arith.divf %650, %651 : vector<8x128xf32>
    %653 = vector.extract_strided_slice %640 {offsets = [0, 256], sizes = [8, 128], strides = [1, 1]} : vector<8x512xf32> to vector<8x128xf32>
    %654 = math.tanh %653 : vector<8x128xf32>
    %655 = vector.extract_strided_slice %640 {offsets = [0, 384], sizes = [8, 128], strides = [1, 1]} : vector<8x512xf32> to vector<8x128xf32>
    %656 = arith.negf %655 : vector<8x128xf32>
    %657 = math.exp %656 : vector<8x128xf32>
    %cst_161 = arith.constant 1.000000e+00 : f32
    %658 = vector.broadcast %cst_161 : f32 to vector<8x128xf32>
    %659 = arith.addf %658, %657 : vector<8x128xf32>
    %660 = arith.divf %658, %659 : vector<8x128xf32>
    %661 = arith.mulf %652, %633 : vector<8x128xf32>
    %662 = arith.mulf %646, %654 : vector<8x128xf32>
    %663 = arith.addf %661, %662 : vector<8x128xf32>
    %664 = math.tanh %663 : vector<8x128xf32>
    %665 = arith.mulf %660, %664 : vector<8x128xf32>
    %c168_162 = arith.constant 168 : index
    %c0_163 = arith.constant 0 : index
    %666 = vector.load %arg8[%c168_162, %c0_163] : memref<192x128xf32, #tpu.memory_space<vmem>>, vector<8x128xf32>
    tpu.vector_store %arg8[%c168_162, %c0_163], %665 {strides = array<i32>} : memref<192x128xf32, #tpu.memory_space<vmem>>, vector<8x128xf32>,
    %c176 = arith.constant 176 : index
    %c0_164 = arith.constant 0 : index
    %667 = vector.load %arg7[%c176, %c0_164] : memref<192x512xf32, #tpu.memory_space<vmem>>, vector<8x512xf32>
    %668 = arith.truncf %665 : vector<8x128xf32> to vector<8x128xbf16>
    %cst_165 = arith.constant dense<0.000000e+00> : vector<8x512xf32>
    %669 = tpu.matmul %668, %8, %cst_165 {dimension_numbers = #tpu.dot_dimension_numbers<[1], [0], [0], [1], [0, 0, 1, 1], [], []>} : vector<8x128xbf16>, vector<128x512xbf16>, vector<8x512xf32> -> vector<8x512xf32>
    %670 = arith.addf %667, %669 : vector<8x512xf32>
    %671 = vector.extract_strided_slice %670 {offsets = [0, 0], sizes = [8, 128], strides = [1, 1]} : vector<8x512xf32> to vector<8x128xf32>
    %672 = arith.negf %671 : vector<8x128xf32>
    %673 = math.exp %672 : vector<8x128xf32>
    %cst_166 = arith.constant 1.000000e+00 : f32
    %674 = vector.broadcast %cst_166 : f32 to vector<8x128xf32>
    %675 = arith.addf %674, %673 : vector<8x128xf32>
    %676 = arith.divf %674, %675 : vector<8x128xf32>
    %677 = vector.extract_strided_slice %670 {offsets = [0, 128], sizes = [8, 128], strides = [1, 1]} : vector<8x512xf32> to vector<8x128xf32>
    %678 = arith.negf %677 : vector<8x128xf32>
    %679 = math.exp %678 : vector<8x128xf32>
    %cst_167 = arith.constant 1.000000e+00 : f32
    %680 = vector.broadcast %cst_167 : f32 to vector<8x128xf32>
    %681 = arith.addf %680, %679 : vector<8x128xf32>
    %682 = arith.divf %680, %681 : vector<8x128xf32>
    %683 = vector.extract_strided_slice %670 {offsets = [0, 256], sizes = [8, 128], strides = [1, 1]} : vector<8x512xf32> to vector<8x128xf32>
    %684 = math.tanh %683 : vector<8x128xf32>
    %685 = vector.extract_strided_slice %670 {offsets = [0, 384], sizes = [8, 128], strides = [1, 1]} : vector<8x512xf32> to vector<8x128xf32>
    %686 = arith.negf %685 : vector<8x128xf32>
    %687 = math.exp %686 : vector<8x128xf32>
    %cst_168 = arith.constant 1.000000e+00 : f32
    %688 = vector.broadcast %cst_168 : f32 to vector<8x128xf32>
    %689 = arith.addf %688, %687 : vector<8x128xf32>
    %690 = arith.divf %688, %689 : vector<8x128xf32>
    %691 = arith.mulf %682, %663 : vector<8x128xf32>
    %692 = arith.mulf %676, %684 : vector<8x128xf32>
    %693 = arith.addf %691, %692 : vector<8x128xf32>
    %694 = math.tanh %693 : vector<8x128xf32>
    %695 = arith.mulf %690, %694 : vector<8x128xf32>
    %c176_169 = arith.constant 176 : index
    %c0_170 = arith.constant 0 : index
    %696 = vector.load %arg8[%c176_169, %c0_170] : memref<192x128xf32, #tpu.memory_space<vmem>>, vector<8x128xf32>
    tpu.vector_store %arg8[%c176_169, %c0_170], %695 {strides = array<i32>} : memref<192x128xf32, #tpu.memory_space<vmem>>, vector<8x128xf32>,
    %c184 = arith.constant 184 : index
    %c0_171 = arith.constant 0 : index
    %697 = vector.load %arg7[%c184, %c0_171] : memref<192x512xf32, #tpu.memory_space<vmem>>, vector<8x512xf32>
    %698 = arith.truncf %695 : vector<8x128xf32> to vector<8x128xbf16>
    %cst_172 = arith.constant dense<0.000000e+00> : vector<8x512xf32>
    %699 = tpu.matmul %698, %8, %cst_172 {dimension_numbers = #tpu.dot_dimension_numbers<[1], [0], [0], [1], [0, 0, 1, 1], [], []>} : vector<8x128xbf16>, vector<128x512xbf16>, vector<8x512xf32> -> vector<8x512xf32>
    %700 = arith.addf %697, %699 : vector<8x512xf32>
    %701 = vector.extract_strided_slice %700 {offsets = [0, 0], sizes = [8, 128], strides = [1, 1]} : vector<8x512xf32> to vector<8x128xf32>
    %702 = arith.negf %701 : vector<8x128xf32>
    %703 = math.exp %702 : vector<8x128xf32>
    %cst_173 = arith.constant 1.000000e+00 : f32
    %704 = vector.broadcast %cst_173 : f32 to vector<8x128xf32>
    %705 = arith.addf %704, %703 : vector<8x128xf32>
    %706 = arith.divf %704, %705 : vector<8x128xf32>
    %707 = vector.extract_strided_slice %700 {offsets = [0, 128], sizes = [8, 128], strides = [1, 1]} : vector<8x512xf32> to vector<8x128xf32>
    %708 = arith.negf %707 : vector<8x128xf32>
    %709 = math.exp %708 : vector<8x128xf32>
    %cst_174 = arith.constant 1.000000e+00 : f32
    %710 = vector.broadcast %cst_174 : f32 to vector<8x128xf32>
    %711 = arith.addf %710, %709 : vector<8x128xf32>
    %712 = arith.divf %710, %711 : vector<8x128xf32>
    %713 = vector.extract_strided_slice %700 {offsets = [0, 256], sizes = [8, 128], strides = [1, 1]} : vector<8x512xf32> to vector<8x128xf32>
    %714 = math.tanh %713 : vector<8x128xf32>
    %715 = vector.extract_strided_slice %700 {offsets = [0, 384], sizes = [8, 128], strides = [1, 1]} : vector<8x512xf32> to vector<8x128xf32>
    %716 = arith.negf %715 : vector<8x128xf32>
    %717 = math.exp %716 : vector<8x128xf32>
    %cst_175 = arith.constant 1.000000e+00 : f32
    %718 = vector.broadcast %cst_175 : f32 to vector<8x128xf32>
    %719 = arith.addf %718, %717 : vector<8x128xf32>
    %720 = arith.divf %718, %719 : vector<8x128xf32>
    %721 = arith.mulf %712, %693 : vector<8x128xf32>
    %722 = arith.mulf %706, %714 : vector<8x128xf32>
    %723 = arith.addf %721, %722 : vector<8x128xf32>
    %724 = math.tanh %723 : vector<8x128xf32>
    %725 = arith.mulf %720, %724 : vector<8x128xf32>
    %c184_176 = arith.constant 184 : index
    %c0_177 = arith.constant 0 : index
    %726 = vector.load %arg8[%c184_176, %c0_177] : memref<192x128xf32, #tpu.memory_space<vmem>>, vector<8x128xf32>
    tpu.vector_store %arg8[%c184_176, %c0_177], %725 {strides = array<i32>} : memref<192x128xf32, #tpu.memory_space<vmem>>, vector<8x128xf32>,
    %c0_178 = arith.constant 0 : index
    %c0_179 = arith.constant 0 : index
    %727 = vector.load %arg8[%c0_178, %c0_179] : memref<192x128xf32, #tpu.memory_space<vmem>>, vector<192x128xf32>
    %c0_180 = arith.constant 0 : index
    %c0_181 = arith.constant 0 : index
    %728 = vector.load %arg4[%c0_180, %c0_181] : memref<128x128xf32, #tpu.memory_space<vmem>>, vector<128x128xf32>
    %cst_182 = arith.constant dense<0.000000e+00> : vector<192x128xf32>
    %729 = tpu.matmul %727, %728, %cst_182 {dimension_numbers = #tpu.dot_dimension_numbers<[1], [0], [0], [1], [0, 0, 1, 1], [], []>} : vector<192x128xf32>, vector<128x128xf32>, vector<192x128xf32> -> vector<192x128xf32>
    %c0_183 = arith.constant 0 : index
    %c0_184 = arith.constant 0 : index
    %730 = vector.load %arg5[%c0_183, %c0_184] : memref<1x128xf32, #tpu.memory_space<vmem>>, vector<1x128xf32>
    %731 = vector.broadcast %730 : vector<1x128xf32> to vector<192x128xf32>
    %732 = arith.addf %729, %731 : vector<192x128xf32>
    %c0_185 = arith.constant 0 : index
    %c0_186 = arith.constant 0 : index
    %733 = vector.load %arg6[%c0_185, %c0_186] : memref<192x128xf32, #tpu.memory_space<vmem>>, vector<192x128xf32>
    tpu.vector_store %arg6[%c0_185, %c0_186], %732 {strides = array<i32>} : memref<192x128xf32, #tpu.memory_space<vmem>>, vector<192x128xf32>,
    return
  }
}

</mosaic_0001>

<llo_original>
// kernel: model_forward.1
$region0: #{model_forward.1}
  #allocation0 [shape = 'u32[]', space=smem, size = 0x4, offset = 0x4, fixed_abs, tag = 'smem constant byte address 0x4 - core index']
  #allocation1 [shape = 'u32[144,128]{1,0:T(1,128)}', space=vmem, size = 0x12000, scoped, tag = 'internal scratch']
  #allocation2 [shape = 'f32[192,512]{1,0:T(8,128)}', space=vmem, size = 0x60000, scoped, tag = 'scratch operand']
  #allocation3 [shape = 'f32[192,128]{1,0:T(8,128)}', space=vmem, size = 0x18000, scoped, tag = 'scratch operand']
  %s0 = inlined_call_operand.vmem [shape: f32[192,30], index: 0, kind: input, shape index: {}]
  %s1 = inlined_call_operand.vmem [shape: bf16[30,512], index: 1, kind: input, shape index: {}]
  %s2 = inlined_call_operand.vmem [shape: f32[1,512], index: 2, kind: input, shape index: {}]
  %s3 = inlined_call_operand.vmem [shape: bf16[128,512], index: 3, kind: input, shape index: {}]
  %s4 = inlined_call_operand.vmem [shape: f32[128,128], index: 4, kind: input, shape index: {}]
  %s5 = inlined_call_operand.vmem [shape: f32[1,128], index: 5, kind: input, shape index: {}]
  %s6 = inlined_call_operand.vmem [shape: f32[192,128], index: 6, kind: output, shape index: {}]
  %s7 = sld [smem:[#allocation0]]
  $region34: #{model_forward.1} parent=0
    _
  %s9 = ssub.s32 1, %s7
  %s10 = scalar_select 0, %s9, %s7
  // Predicated region
  $region2: #{model_forward.1} parent=0 // pred_check
    _
  $region3: #{model_forward.1} parent=0 // pred_check_branch
    %12 = sbr.rel (0) target = $region5
  $region4: #{model_forward.1} parent=0 // pred_region
    _
  $region5: #{model_forward.1} parent=0 // pred_fallthru
    _
  // Predicated region
  $region6: #{model_forward.1} parent=0 // pred_check
    _
  $region7: #{model_forward.1} parent=0 // pred_check_branch
    %14 = sbr.rel (0) target = $region9
  $region8: #{model_forward.1} parent=0 // pred_region
    _
  $region9: #{model_forward.1} parent=0 // pred_fallthru
    _
  // Predicated region
  $region10: #{model_forward.1} parent=0 // pred_check
    _
  $region11: #{model_forward.1} parent=0 // pred_check_branch
    %16 = sbr.rel (0) target = $region13
  $region12: #{model_forward.1} parent=0 // pred_region
    _
  $region13: #{model_forward.1} parent=0 // pred_fallthru
    _
  // Predicated region
  $region14: #{model_forward.1} parent=0 // pred_check
    _
  $region15: #{model_forward.1} parent=0 // pred_check_branch
    %18 = sbr.rel (0) target = $region17
  $region16: #{model_forward.1} parent=0 // pred_region
    _
  $region17: #{model_forward.1} parent=0 // pred_fallthru
    _
  // Predicated region
  $region18: #{model_forward.1} parent=0 // pred_check
    _
  $region19: #{model_forward.1} parent=0 // pred_check_branch
    %20 = sbr.rel (0) target = $region21
  $region20: #{model_forward.1} parent=0 // pred_region
    _
  $region21: #{model_forward.1} parent=0 // pred_fallthru
    _
  // Predicated region
  $region22: #{model_forward.1} parent=0 // pred_check
    _
  $region23: #{model_forward.1} parent=0 // pred_check_branch
    %22 = sbr.rel (0) target = $region25
  $region24: #{model_forward.1} parent=0 // pred_region
    _
  $region25: #{model_forward.1} parent=0 // pred_fallthru
    _
  %v24 = vld [vmem:[%s0] sm:$0xff]
  %v25 = vld [vmem:[%s0 + $0x8] sm:$0xff]
  %v26 = vld [vmem:[%s0 + $0x10] sm:$0xff]
  %v27 = vld [vmem:[%s0 + $0x18] sm:$0xff]
  %v28 = vld [vmem:[%s0 + $0x20] sm:$0xff]
  %v29 = vld [vmem:[%s0 + $0x28] sm:$0xff]
  %v30 = vld [vmem:[%s0 + $0x30] sm:$0xff]
  %v31 = vld [vmem:[%s0 + $0x38] sm:$0xff]
  %v32 = vld [vmem:[%s0 + $0x40] sm:$0xff]
  %v33 = vld [vmem:[%s0 + $0x48] sm:$0xff]
  %v34 = vld [vmem:[%s0 + $0x50] sm:$0xff]
  %v35 = vld [vmem:[%s0 + $0x58] sm:$0xff]
  %v36 = vld [vmem:[%s0 + $0x60] sm:$0xff]
  %v37 = vld [vmem:[%s0 + $0x68] sm:$0xff]
  %v38 = vld [vmem:[%s0 + $0x70] sm:$0xff]
  %v39 = vld [vmem:[%s0 + $0x78] sm:$0xff]
  %v40 = vld [vmem:[%s0 + $0x80] sm:$0xff]
  %v41 = vld [vmem:[%s0 + $0x88] sm:$0xff]
  %v42 = vld [vmem:[%s0 + $0x90] sm:$0xff]
  %v43 = vld [vmem:[%s0 + $0x98] sm:$0xff]
  %v44 = vld [vmem:[%s0 + $0xa0] sm:$0xff]
  %v45 = vld [vmem:[%s0 + $0xa8] sm:$0xff]
  %v46 = vld [vmem:[%s0 + $0xb0] sm:$0xff]
  %v47 = vld [vmem:[%s0 + $0xb8] sm:$0xff]
  %v48 = vpack.c.bf16 %v25, %v24
  %v49 = vpack.c.bf16 %v27, %v26
  %v50 = vpack.c.bf16 %v29, %v28
  %v51 = vpack.c.bf16 %v31, %v30
  %v52 = vpack.c.bf16 %v33, %v32
  %v53 = vpack.c.bf16 %v35, %v34
  %v54 = vpack.c.bf16 %v37, %v36
  %v55 = vpack.c.bf16 %v39, %v38
  %v56 = vpack.c.bf16 %v41, %v40
  %v57 = vpack.c.bf16 %v43, %v42
  %v58 = vpack.c.bf16 %v45, %v44
  %v59 = vpack.c.bf16 %v47, %v46
  %v60 = vld [vmem:[%s1] sm:$0xff]
  %v61 = vld [vmem:[%s1 + $0x8] sm:$0xff]
  %v62 = vld [vmem:[%s1 + $0x10] sm:$0xff]
  %v63 = vld [vmem:[%s1 + $0x18] sm:$0xff]
  %v64 = vld [vmem:[%s1 + $0x20] sm:$0xff]
  %v65 = vld [vmem:[%s1 + $0x28] sm:$0xff]
  %v66 = vld [vmem:[%s1 + $0x30] sm:$0x77]
  %v67 = vld [vmem:[%s1 + $0x38] sm:$0x77]
  %v68 = vld [vmem:[%s2] sm:$0xf]
  %v70 = vlaneseq
  %v71 = vshrl.u32 %v70, 7
  %v72 = vsub.s32 0, %v71
  %v73 = vrot.slane %v68, %v72
  %v74 = vlaneseq
  %v75 = vshrl.u32 %v74, 7
  %v76 = vsub.s32 1, %v75
  %v77 = vrot.slane %v68, %v76
  %v78 = vlaneseq
  %v79 = vshrl.u32 %v78, 7
  %v80 = vsub.s32 2, %v79
  %v81 = vrot.slane %v68, %v80
  %v82 = vlaneseq
  %v83 = vshrl.u32 %v82, 7
  %v84 = vsub.s32 3, %v83
  %v85 = vrot.slane %v68, %v84
  %v98 = vunpack.c.l.b16 %v60
  %v99 = vunpack.c.h.b16 %v60
  %v100 = vunpack.c.l.b16 %v61
  %v101 = vunpack.c.h.b16 %v61
  %v102 = vunpack.c.l.b16 %v62
  %v103 = vunpack.c.h.b16 %v62
  %v104 = vunpack.c.l.b16 %v63
  %v105 = vunpack.c.h.b16 %v63
  %v106 = vunpack.c.l.b16 %v64
  %v107 = vunpack.c.h.b16 %v64
  %v108 = vunpack.c.l.b16 %v65
  %v109 = vunpack.c.h.b16 %v65
  %v110 = vunpack.c.l.b16 %v66
  %v111 = vunpack.c.h.b16 %v66
  %v112 = vunpack.c.l.b16 %v67
  %v113 = vunpack.c.h.b16 %v67
  %v114 = vpack.c.b16 %v102, %v98
  %v115 = vpack.c.b16 %v103, %v99
  %v116 = vpack.c.b16 %v104, %v100
  %v117 = vpack.c.b16 %v105, %v101
  %v118 = vpack.c.b16 %v110, %v106
  %v119 = vpack.c.b16 %v111, %v107
  %v120 = vpack.c.b16 %v112, %v108
  %v121 = vpack.c.b16 %v113, %v109
  %vm126 = vcmask 244736
  %v128 = vsel %vm126, %v48, 0
  %v131 = vsel %vm126, %v49, 0
  %v134 = vsel %vm126, %v50, 0
  %v137 = vsel %vm126, %v51, 0
  %v140 = vsel %vm126, %v52, 0
  %v143 = vsel %vm126, %v53, 0
  %v146 = vsel %vm126, %v54, 0
  %v149 = vsel %vm126, %v55, 0
  %v152 = vsel %vm126, %v56, 0
  %v155 = vsel %vm126, %v57, 0
  %v158 = vsel %vm126, %v58, 0
  %v161 = vsel %vm126, %v59, 0
  %vm163 = vcmask 1046528
  %v165 = vsel %vm163, %v118, 0
  %v168 = vsel %vm163, %v119, 0
  %v171 = vsel %vm163, %v120, 0
  %v174 = vsel %vm163, %v121, 0
  %176 = vmatprep.subr.bf16.mxu0 0
  %177 = vmatpush1.bf16.msra.mxu0 0
  %178 = vmatprep.subr.bf16.mxu0 0
  %179 = vmatpush1.bf16.msra.mxu0 0
  %180 = vmatprep.subr.bf16.mxu0 0
  %181 = vmatpush1.bf16.msra.mxu0 0
  %182 = vmatprep.subr.bf16.mxu0 0
  %183 = vmatpush1.bf16.msra.mxu0 0
  %184 = vmatprep.subr.bf16.mxu0 0
  %185 = vmatpush1.bf16.msra.mxu0 0
  %186 = vmatprep.subr.bf16.mxu0 0
  %187 = vmatpush1.bf16.msra.mxu0 0
  %188 = vmatprep.subr.bf16.mxu0 %v168
  %189 = vmatpush1.bf16.msra.mxu0 %v165
  %190 = vmatprep.subr.bf16.mxu0 %v115
  %191 = vmatpush1.bf16.msra.mxu0 %v114
  %192 = vmatprep.subr.bf16.mxu0 0
  %193 = vmatpush2.bf16.msra.mxu0 0
  %194 = vmatprep.subr.bf16.mxu0 0
  %195 = vmatpush2.bf16.msra.mxu0 0
  %196 = vmatprep.subr.bf16.mxu0 0
  %197 = vmatpush2.bf16.msra.mxu0 0
  %198 = vmatprep.subr.bf16.mxu0 0
  %199 = vmatpush2.bf16.msra.mxu0 0
  %200 = vmatprep.subr.bf16.mxu0 0
  %201 = vmatpush2.bf16.msra.mxu0 0
  %202 = vmatprep.subr.bf16.mxu0 0
  %203 = vmatpush2.bf16.msra.mxu0 0
  %204 = vmatprep.subr.bf16.mxu0 0
  %205 = vmatpush2.bf16.msra.mxu0 0
  %206 = vmatprep.subr.bf16.mxu0 0
  %207 = vmatpush2.bf16.msra.mxu0 0
  %208 = vmatprep.mubr.bf16.mxu0 0
  %209 = vmatmul.mubr.bf16.gmra.mxu0 %v128
  %v210 = vpop.f32.mrf.mxu0
  %v211 = vadd.f32 %v73, %v210
  %v212 = vpop.f32.mrf.mxu0
  %v213 = vadd.f32 %v77, %v212
  %v214 = vpop.f32.mrf.mxu0
  %v215 = vadd.f32 %v73, %v214
  %v216 = vpop.f32.mrf.mxu0
  %v217 = vadd.f32 %v77, %v216
  %218 = vmatprep.mubr.bf16.mxu0 0
  %219 = vmatmul.mubr.bf16.gmra.mxu0 %v131
  %v220 = vpop.f32.mrf.mxu0
  %v221 = vadd.f32 %v73, %v220
  %v222 = vpop.f32.mrf.mxu0
  %v223 = vadd.f32 %v77, %v222
  %v224 = vpop.f32.mrf.mxu0
  %v225 = vadd.f32 %v73, %v224
  %v226 = vpop.f32.mrf.mxu0
  %v227 = vadd.f32 %v77, %v226
  %228 = vmatprep.mubr.bf16.mxu0 0
  %229 = vmatmul.mubr.bf16.gmra.mxu0 %v134
  %v230 = vpop.f32.mrf.mxu0
  %v231 = vadd.f32 %v73, %v230
  %v232 = vpop.f32.mrf.mxu0
  %v233 = vadd.f32 %v77, %v232
  %v234 = vpop.f32.mrf.mxu0
  %v235 = vadd.f32 %v73, %v234
  %v236 = vpop.f32.mrf.mxu0
  %v237 = vadd.f32 %v77, %v236
  %238 = vmatprep.mubr.bf16.mxu0 0
  %239 = vmatmul.mubr.bf16.gmra.mxu0 %v137
  %v240 = vpop.f32.mrf.mxu0
  %v241 = vadd.f32 %v73, %v240
  %v242 = vpop.f32.mrf.mxu0
  %v243 = vadd.f32 %v77, %v242
  %v244 = vpop.f32.mrf.mxu0
  %v245 = vadd.f32 %v73, %v244
  %v246 = vpop.f32.mrf.mxu0
  %v247 = vadd.f32 %v77, %v246
  %248 = vmatprep.mubr.bf16.mxu0 0
  %249 = vmatmul.mubr.bf16.gmra.mxu0 %v140
  %v250 = vpop.f32.mrf.mxu0
  %v251 = vadd.f32 %v73, %v250
  %v252 = vpop.f32.mrf.mxu0
  %v253 = vadd.f32 %v77, %v252
  %v254 = vpop.f32.mrf.mxu0
  %v255 = vadd.f32 %v73, %v254
  %v256 = vpop.f32.mrf.mxu0
  %v257 = vadd.f32 %v77, %v256
  %258 = vmatprep.mubr.bf16.mxu0 0
  %259 = vmatmul.mubr.bf16.gmra.mxu0 %v143
  %v260 = vpop.f32.mrf.mxu0
  %v261 = vadd.f32 %v73, %v260
  %v262 = vpop.f32.mrf.mxu0
  %v263 = vadd.f32 %v77, %v262
  %v264 = vpop.f32.mrf.mxu0
  %v265 = vadd.f32 %v73, %v264
  %v266 = vpop.f32.mrf.mxu0
  %v267 = vadd.f32 %v77, %v266
  %268 = vmatprep.mubr.bf16.mxu0 0
  %269 = vmatmul.mubr.bf16.gmra.mxu0 %v146
  %v270 = vpop.f32.mrf.mxu0
  %v271 = vadd.f32 %v73, %v270
  %v272 = vpop.f32.mrf.mxu0
  %v273 = vadd.f32 %v77, %v272
  %v274 = vpop.f32.mrf.mxu0
  %v275 = vadd.f32 %v73, %v274
  %v276 = vpop.f32.mrf.mxu0
  %v277 = vadd.f32 %v77, %v276
  %278 = vmatprep.mubr.bf16.mxu0 0
  %279 = vmatmul.mubr.bf16.gmra.mxu0 %v149
  %v280 = vpop.f32.mrf.mxu0
  %v281 = vadd.f32 %v73, %v280
  %v282 = vpop.f32.mrf.mxu0
  %v283 = vadd.f32 %v77, %v282
  %v284 = vpop.f32.mrf.mxu0
  %v285 = vadd.f32 %v73, %v284
  %v286 = vpop.f32.mrf.mxu0
  %v287 = vadd.f32 %v77, %v286
  %288 = vmatprep.mubr.bf16.mxu0 0
  %289 = vmatmul.mubr.bf16.gmra.mxu0 %v152
  %v290 = vpop.f32.mrf.mxu0
  %v291 = vadd.f32 %v73, %v290
  %v292 = vpop.f32.mrf.mxu0
  %v293 = vadd.f32 %v77, %v292
  %v294 = vpop.f32.mrf.mxu0
  %v295 = vadd.f32 %v73, %v294
  %v296 = vpop.f32.mrf.mxu0
  %v297 = vadd.f32 %v77, %v296
  %298 = vmatprep.mubr.bf16.mxu0 0
  %299 = vmatmul.mubr.bf16.gmra.mxu0 %v155
  %v300 = vpop.f32.mrf.mxu0
  %v301 = vadd.f32 %v73, %v300
  %v302 = vpop.f32.mrf.mxu0
  %v303 = vadd.f32 %v77, %v302
  %v304 = vpop.f32.mrf.mxu0
  %v305 = vadd.f32 %v73, %v304
  %v306 = vpop.f32.mrf.mxu0
  %v307 = vadd.f32 %v77, %v306
  %308 = vmatprep.mubr.bf16.mxu0 0
  %309 = vmatmul.mubr.bf16.gmra.mxu0 %v158
  %v310 = vpop.f32.mrf.mxu0
  %v311 = vadd.f32 %v73, %v310
  %v312 = vpop.f32.mrf.mxu0
  %v313 = vadd.f32 %v77, %v312
  %v314 = vpop.f32.mrf.mxu0
  %v315 = vadd.f32 %v73, %v314
  %v316 = vpop.f32.mrf.mxu0
  %v317 = vadd.f32 %v77, %v316
  %318 = vmatprep.mubr.bf16.mxu0 0
  %319 = vmatmul.mubr.bf16.gmra.mxu0 %v161
  %v320 = vpop.f32.mrf.mxu0
  %v321 = vadd.f32 %v73, %v320
  %v322 = vpop.f32.mrf.mxu0
  %v323 = vadd.f32 %v77, %v322
  %v324 = vpop.f32.mrf.mxu0
  %v325 = vadd.f32 %v73, %v324
  %v326 = vpop.f32.mrf.mxu0
  %v327 = vadd.f32 %v77, %v326
  %328 = vdwg.mxu0
  %329 = vmatprep.subr.bf16.mxu0 0
  %330 = vmatpush1.bf16.msra.mxu0 0
  %331 = vmatprep.subr.bf16.mxu0 0
  %332 = vmatpush1.bf16.msra.mxu0 0
  %333 = vmatprep.subr.bf16.mxu0 0
  %334 = vmatpush1.bf16.msra.mxu0 0
  %335 = vmatprep.subr.bf16.mxu0 0
  %336 = vmatpush1.bf16.msra.mxu0 0
  %337 = vmatprep.subr.bf16.mxu0 0
  %338 = vmatpush1.bf16.msra.mxu0 0
  %339 = vmatprep.subr.bf16.mxu0 0
  %340 = vmatpush1.bf16.msra.mxu0 0
  %341 = vmatprep.subr.bf16.mxu0 %v174
  %342 = vmatpush1.bf16.msra.mxu0 %v171
  %343 = vmatprep.subr.bf16.mxu0 %v117
  %344 = vmatpush1.bf16.msra.mxu0 %v116
  %345 = vmatprep.subr.bf16.mxu0 0
  %346 = vmatpush2.bf16.msra.mxu0 0
  %347 = vmatprep.subr.bf16.mxu0 0
  %348 = vmatpush2.bf16.msra.mxu0 0
  %349 = vmatprep.subr.bf16.mxu0 0
  %350 = vmatpush2.bf16.msra.mxu0 0
  %351 = vmatprep.subr.bf16.mxu0 0
  %352 = vmatpush2.bf16.msra.mxu0 0
  %353 = vmatprep.subr.bf16.mxu0 0
  %354 = vmatpush2.bf16.msra.mxu0 0
  %355 = vmatprep.subr.bf16.mxu0 0
  %356 = vmatpush2.bf16.msra.mxu0 0
  %357 = vmatprep.subr.bf16.mxu0 0
  %358 = vmatpush2.bf16.msra.mxu0 0
  %359 = vmatprep.subr.bf16.mxu0 0
  %360 = vmatpush2.bf16.msra.mxu0 0
  %361 = vmatprep.mubr.bf16.mxu0 0
  %362 = vmatmul.mubr.bf16.gmra.mxu0 %v128
  %v363 = vpop.f32.mrf.mxu0
  %v364 = vadd.f32 %v81, %v363
  %v365 = vpop.f32.mrf.mxu0
  %v366 = vadd.f32 %v85, %v365
  %v367 = vpop.f32.mrf.mxu0
  %v368 = vadd.f32 %v81, %v367
  %v369 = vpop.f32.mrf.mxu0
  %v370 = vadd.f32 %v85, %v369
  %371 = vmatprep.mubr.bf16.mxu0 0
  %372 = vmatmul.mubr.bf16.gmra.mxu0 %v131
  %v373 = vpop.f32.mrf.mxu0
  %v374 = vadd.f32 %v81, %v373
  %v375 = vpop.f32.mrf.mxu0
  %v376 = vadd.f32 %v85, %v375
  %v377 = vpop.f32.mrf.mxu0
  %v378 = vadd.f32 %v81, %v377
  %v379 = vpop.f32.mrf.mxu0
  %v380 = vadd.f32 %v85, %v379
  %381 = vmatprep.mubr.bf16.mxu0 0
  %382 = vmatmul.mubr.bf16.gmra.mxu0 %v134
  %v383 = vpop.f32.mrf.mxu0
  %v384 = vadd.f32 %v81, %v383
  %v385 = vpop.f32.mrf.mxu0
  %v386 = vadd.f32 %v85, %v385
  %v387 = vpop.f32.mrf.mxu0
  %v388 = vadd.f32 %v81, %v387
  %v389 = vpop.f32.mrf.mxu0
  %v390 = vadd.f32 %v85, %v389
  %391 = vmatprep.mubr.bf16.mxu0 0
  %392 = vmatmul.mubr.bf16.gmra.mxu0 %v137
  %v393 = vpop.f32.mrf.mxu0
  %v394 = vadd.f32 %v81, %v393
  %v395 = vpop.f32.mrf.mxu0
  %v396 = vadd.f32 %v85, %v395
  %v397 = vpop.f32.mrf.mxu0
  %v398 = vadd.f32 %v81, %v397
  %v399 = vpop.f32.mrf.mxu0
  %v400 = vadd.f32 %v85, %v399
  %401 = vmatprep.mubr.bf16.mxu0 0
  %402 = vmatmul.mubr.bf16.gmra.mxu0 %v140
  %v403 = vpop.f32.mrf.mxu0
  %v404 = vadd.f32 %v81, %v403
  %v405 = vpop.f32.mrf.mxu0
  %v406 = vadd.f32 %v85, %v405
  %v407 = vpop.f32.mrf.mxu0
  %v408 = vadd.f32 %v81, %v407
  %v409 = vpop.f32.mrf.mxu0
  %v410 = vadd.f32 %v85, %v409
  %411 = vmatprep.mubr.bf16.mxu0 0
  %412 = vmatmul.mubr.bf16.gmra.mxu0 %v143
  %v413 = vpop.f32.mrf.mxu0
  %v414 = vadd.f32 %v81, %v413
  %v415 = vpop.f32.mrf.mxu0
  %v416 = vadd.f32 %v85, %v415
  %v417 = vpop.f32.mrf.mxu0
  %v418 = vadd.f32 %v81, %v417
  %v419 = vpop.f32.mrf.mxu0
  %v420 = vadd.f32 %v85, %v419
  %421 = vmatprep.mubr.bf16.mxu0 0
  %422 = vmatmul.mubr.bf16.gmra.mxu0 %v146
  %v423 = vpop.f32.mrf.mxu0
  %v424 = vadd.f32 %v81, %v423
  %v425 = vpop.f32.mrf.mxu0
  %v426 = vadd.f32 %v85, %v425
  %v427 = vpop.f32.mrf.mxu0
  %v428 = vadd.f32 %v81, %v427
  %v429 = vpop.f32.mrf.mxu0
  %v430 = vadd.f32 %v85, %v429
  %431 = vmatprep.mubr.bf16.mxu0 0
  %432 = vmatmul.mubr.bf16.gmra.mxu0 %v149
  %v433 = vpop.f32.mrf.mxu0
  %v434 = vadd.f32 %v81, %v433
  %v435 = vpop.f32.mrf.mxu0
  %v436 = vadd.f32 %v85, %v435
  %v437 = vpop.f32.mrf.mxu0
  %v438 = vadd.f32 %v81, %v437
  %v439 = vpop.f32.mrf.mxu0
  %v440 = vadd.f32 %v85, %v439
  %441 = vmatprep.mubr.bf16.mxu0 0
  %442 = vmatmul.mubr.bf16.gmra.mxu0 %v152
  %v443 = vpop.f32.mrf.mxu0
  %v444 = vadd.f32 %v81, %v443
  %v445 = vpop.f32.mrf.mxu0
  %v446 = vadd.f32 %v85, %v445
  %v447 = vpop.f32.mrf.mxu0
  %v448 = vadd.f32 %v81, %v447
  %v449 = vpop.f32.mrf.mxu0
  %v450 = vadd.f32 %v85, %v449
  %451 = vmatprep.mubr.bf16.mxu0 0
  %452 = vmatmul.mubr.bf16.gmra.mxu0 %v155
  %v453 = vpop.f32.mrf.mxu0
  %v454 = vadd.f32 %v81, %v453
  %v455 = vpop.f32.mrf.mxu0
  %v456 = vadd.f32 %v85, %v455
  %v457 = vpop.f32.mrf.mxu0
  %v458 = vadd.f32 %v81, %v457
  %v459 = vpop.f32.mrf.mxu0
  %v460 = vadd.f32 %v85, %v459
  %461 = vmatprep.mubr.bf16.mxu0 0
  %462 = vmatmul.mubr.bf16.gmra.mxu0 %v158
  %v463 = vpop.f32.mrf.mxu0
  %v464 = vadd.f32 %v81, %v463
  %v465 = vpop.f32.mrf.mxu0
  %v466 = vadd.f32 %v85, %v465
  %v467 = vpop.f32.mrf.mxu0
  %v468 = vadd.f32 %v81, %v467
  %v469 = vpop.f32.mrf.mxu0
  %v470 = vadd.f32 %v85, %v469
  %471 = vmatprep.mubr.bf16.mxu0 0
  %472 = vmatmul.mubr.bf16.gmra.mxu0 %v161
  %v473 = vpop.f32.mrf.mxu0
  %v474 = vadd.f32 %v81, %v473
  %v475 = vpop.f32.mrf.mxu0
  %v476 = vadd.f32 %v85, %v475
  %v477 = vpop.f32.mrf.mxu0
  %v478 = vadd.f32 %v81, %v477
  %v479 = vpop.f32.mrf.mxu0
  %v480 = vadd.f32 %v85, %v479
  %481 = vdwg.mxu0
  %482 = vst [vmem:[#allocation2] sm:$0xff] %v211
  %483 = vst [vmem:[#allocation2 + $0x8] sm:$0xff] %v213
  %484 = vst [vmem:[#allocation2 + $0x10] sm:$0xff] %v364
  %485 = vst [vmem:[#allocation2 + $0x18] sm:$0xff] %v366
  %486 = vst [vmem:[#allocation2 + $0x20] sm:$0xff] %v215
  %487 = vst [vmem:[#allocation2 + $0x28] sm:$0xff] %v217
  %488 = vst [vmem:[#allocation2 + $0x30] sm:$0xff] %v368
  %489 = vst [vmem:[#allocation2 + $0x38] sm:$0xff] %v370
  %490 = vst [vmem:[#allocation2 + $0x40] sm:$0xff] %v221
  %491 = vst [vmem:[#allocation2 + $0x48] sm:$0xff] %v223
  %492 = vst [vmem:[#allocation2 + $0x50] sm:$0xff] %v374
  %493 = vst [vmem:[#allocation2 + $0x58] sm:$0xff] %v376
  %494 = vst [vmem:[#allocation2 + $0x60] sm:$0xff] %v225
  %495 = vst [vmem:[#allocation2 + $0x68] sm:$0xff] %v227
  %496 = vst [vmem:[#allocation2 + $0x70] sm:$0xff] %v378
  %497 = vst [vmem:[#allocation2 + $0x78] sm:$0xff] %v380
  %498 = vst [vmem:[#allocation2 + $0x80] sm:$0xff] %v231
  %499 = vst [vmem:[#allocation2 + $0x88] sm:$0xff] %v233
  %500 = vst [vmem:[#allocation2 + $0x90] sm:$0xff] %v384
  %501 = vst [vmem:[#allocation2 + $0x98] sm:$0xff] %v386
  %502 = vst [vmem:[#allocation2 + $0xa0] sm:$0xff] %v235
  %503 = vst [vmem:[#allocation2 + $0xa8] sm:$0xff] %v237
  %504 = vst [vmem:[#allocation2 + $0xb0] sm:$0xff] %v388
  %505 = vst [vmem:[#allocation2 + $0xb8] sm:$0xff] %v390
  %506 = vst [vmem:[#allocation2 + $0xc0] sm:$0xff] %v241
  %507 = vst [vmem:[#allocation2 + $0xc8] sm:$0xff] %v243
  %508 = vst [vmem:[#allocation2 + $0xd0] sm:$0xff] %v394
  %509 = vst [vmem:[#allocation2 + $0xd8] sm:$0xff] %v396
  %510 = vst [vmem:[#allocation2 + $0xe0] sm:$0xff] %v245
  %511 = vst [vmem:[#allocation2 + $0xe8] sm:$0xff] %v247
  %512 = vst [vmem:[#allocation2 + $0xf0] sm:$0xff] %v398
  %513 = vst [vmem:[#allocation2 + $0xf8] sm:$0xff] %v400
  %514 = vst [vmem:[#allocation2 + $0x100] sm:$0xff] %v251
  %515 = vst [vmem:[#allocation2 + $0x108] sm:$0xff] %v253
  %516 = vst [vmem:[#allocation2 + $0x110] sm:$0xff] %v404
  %517 = vst [vmem:[#allocation2 + $0x118] sm:$0xff] %v406
  %518 = vst [vmem:[#allocation2 + $0x120] sm:$0xff] %v255
  %519 = vst [vmem:[#allocation2 + $0x128] sm:$0xff] %v257
  %520 = vst [vmem:[#allocation2 + $0x130] sm:$0xff] %v408
  %521 = vst [vmem:[#allocation2 + $0x138] sm:$0xff] %v410
  %522 = vst [vmem:[#allocation2 + $0x140] sm:$0xff] %v261
  %523 = vst [vmem:[#allocation2 + $0x148] sm:$0xff] %v263
  %524 = vst [vmem:[#allocation2 + $0x150] sm:$0xff] %v414
  %525 = vst [vmem:[#allocation2 + $0x158] sm:$0xff] %v416
  %526 = vst [vmem:[#allocation2 + $0x160] sm:$0xff] %v265
  %527 = vst [vmem:[#allocation2 + $0x168] sm:$0xff] %v267
  %528 = vst [vmem:[#allocation2 + $0x170] sm:$0xff] %v418
  %529 = vst [vmem:[#allocation2 + $0x178] sm:$0xff] %v420
  %530 = vst [vmem:[#allocation2 + $0x180] sm:$0xff] %v271
  %531 = vst [vmem:[#allocation2 + $0x188] sm:$0xff] %v273
  %532 = vst [vmem:[#allocation2 + $0x190] sm:$0xff] %v424
  %533 = vst [vmem:[#allocation2 + $0x198] sm:$0xff] %v426
  %534 = vst [vmem:[#allocation2 + $0x1a0] sm:$0xff] %v275
  %535 = vst [vmem:[#allocation2 + $0x1a8] sm:$0xff] %v277
  %536 = vst [vmem:[#allocation2 + $0x1b0] sm:$0xff] %v428
  %537 = vst [vmem:[#allocation2 + $0x1b8] sm:$0xff] %v430
  %538 = vst [vmem:[#allocation2 + $0x1c0] sm:$0xff] %v281
  %539 = vst [vmem:[#allocation2 + $0x1c8] sm:$0xff] %v283
  %540 = vst [vmem:[#allocation2 + $0x1d0] sm:$0xff] %v434
  %541 = vst [vmem:[#allocation2 + $0x1d8] sm:$0xff] %v436
  %542 = vst [vmem:[#allocation2 + $0x1e0] sm:$0xff] %v285
  %543 = vst [vmem:[#allocation2 + $0x1e8] sm:$0xff] %v287
  %544 = vst [vmem:[#allocation2 + $0x1f0] sm:$0xff] %v438
  %545 = vst [vmem:[#allocation2 + $0x1f8] sm:$0xff] %v440
  %546 = vst [vmem:[#allocation2 + $0x200] sm:$0xff] %v291
  %547 = vst [vmem:[#allocation2 + $0x208] sm:$0xff] %v293
  %548 = vst [vmem:[#allocation2 + $0x210] sm:$0xff] %v444
  %549 = vst [vmem:[#allocation2 + $0x218] sm:$0xff] %v446
  %550 = vst [vmem:[#allocation2 + $0x220] sm:$0xff] %v295
  %551 = vst [vmem:[#allocation2 + $0x228] sm:$0xff] %v297
  %552 = vst [vmem:[#allocation2 + $0x230] sm:$0xff] %v448
  %553 = vst [vmem:[#allocation2 + $0x238] sm:$0xff] %v450
  %554 = vst [vmem:[#allocation2 + $0x240] sm:$0xff] %v301
  %555 = vst [vmem:[#allocation2 + $0x248] sm:$0xff] %v303
  %556 = vst [vmem:[#allocation2 + $0x250] sm:$0xff] %v454
  %557 = vst [vmem:[#allocation2 + $0x258] sm:$0xff] %v456
  %558 = vst [vmem:[#allocation2 + $0x260] sm:$0xff] %v305
  %559 = vst [vmem:[#allocation2 + $0x268] sm:$0xff] %v307
  %560 = vst [vmem:[#allocation2 + $0x270] sm:$0xff] %v458
  %561 = vst [vmem:[#allocation2 + $0x278] sm:$0xff] %v460
  %562 = vst [vmem:[#allocation2 + $0x280] sm:$0xff] %v311
  %563 = vst [vmem:[#allocation2 + $0x288] sm:$0xff] %v313
  %564 = vst [vmem:[#allocation2 + $0x290] sm:$0xff] %v464
  %565 = vst [vmem:[#allocation2 + $0x298] sm:$0xff] %v466
  %566 = vst [vmem:[#allocation2 + $0x2a0] sm:$0xff] %v315
  %567 = vst [vmem:[#allocation2 + $0x2a8] sm:$0xff] %v317
  %568 = vst [vmem:[#allocation2 + $0x2b0] sm:$0xff] %v468
  %569 = vst [vmem:[#allocation2 + $0x2b8] sm:$0xff] %v470
  %570 = vst [vmem:[#allocation2 + $0x2c0] sm:$0xff] %v321
  %571 = vst [vmem:[#allocation2 + $0x2c8] sm:$0xff] %v323
  %572 = vst [vmem:[#allocation2 + $0x2d0] sm:$0xff] %v474
  %573 = vst [vmem:[#allocation2 + $0x2d8] sm:$0xff] %v476
  %574 = vst [vmem:[#allocation2 + $0x2e0] sm:$0xff] %v325
  %575 = vst [vmem:[#allocation2 + $0x2e8] sm:$0xff] %v327
  %576 = vst [vmem:[#allocation2 + $0x2f0] sm:$0xff] %v478
  %577 = vst [vmem:[#allocation2 + $0x2f8] sm:$0xff] %v480
  %v578 = vld [vmem:[%s3] sm:$0xff]
  %v579 = vld [vmem:[%s3 + $0x8] sm:$0xff]
  %v580 = vld [vmem:[%s3 + $0x10] sm:$0xff]
  %v581 = vld [vmem:[%s3 + $0x18] sm:$0xff]
  %v582 = vld [vmem:[%s3 + $0x20] sm:$0xff]
  %v583 = vld [vmem:[%s3 + $0x28] sm:$0xff]
  %v584 = vld [vmem:[%s3 + $0x30] sm:$0xff]
  %v585 = vld [vmem:[%s3 + $0x38] sm:$0xff]
  %v586 = vld [vmem:[%s3 + $0x40] sm:$0xff]
  %v587 = vld [vmem:[%s3 + $0x48] sm:$0xff]
  %v588 = vld [vmem:[%s3 + $0x50] sm:$0xff]
  %v589 = vld [vmem:[%s3 + $0x58] sm:$0xff]
  %v590 = vld [vmem:[%s3 + $0x60] sm:$0xff]
  %v591 = vld [vmem:[%s3 + $0x68] sm:$0xff]
  %v592 = vld [vmem:[%s3 + $0x70] sm:$0xff]
  %v593 = vld [vmem:[%s3 + $0x78] sm:$0xff]
  %v594 = vld [vmem:[%s3 + $0x80] sm:$0xff]
  %v595 = vld [vmem:[%s3 + $0x88] sm:$0xff]
  %v596 = vld [vmem:[%s3 + $0x90] sm:$0xff]
  %v597 = vld [vmem:[%s3 + $0x98] sm:$0xff]
  %v598 = vld [vmem:[%s3 + $0xa0] sm:$0xff]
  %v599 = vld [vmem:[%s3 + $0xa8] sm:$0xff]
  %v600 = vld [vmem:[%s3 + $0xb0] sm:$0xff]
  %v601 = vld [vmem:[%s3 + $0xb8] sm:$0xff]
  %v602 = vld [vmem:[%s3 + $0xc0] sm:$0xff]
  %v603 = vld [vmem:[%s3 + $0xc8] sm:$0xff]
  %v604 = vld [vmem:[%s3 + $0xd0] sm:$0xff]
  %v605 = vld [vmem:[%s3 + $0xd8] sm:$0xff]
  %v606 = vld [vmem:[%s3 + $0xe0] sm:$0xff]
  %v607 = vld [vmem:[%s3 + $0xe8] sm:$0xff]
  %v608 = vld [vmem:[%s3 + $0xf0] sm:$0xff]
  %v609 = vld [vmem:[%s3 + $0xf8] sm:$0xff]
  %v610 = vld [vmem:[#allocation2] sm:$0xff]
  %v611 = vld [vmem:[#allocation2 + $0x8] sm:$0xff]
  %v612 = vld [vmem:[#allocation2 + $0x10] sm:$0xff]
  %v613 = vld [vmem:[#allocation2 + $0x18] sm:$0xff]
  %v614 = vxor.u32 %v610, 2147483648
  %v615 = vmul.f32 %v614, 1.442695
  %v616 = vpow.pop %v615
  %v617 = vadd.f32 %v616, 1.0
  %v618 = vrcp.pop %v617
  %v619 = vmul.f32 1.0, %v618
  %v620 = vxor.u32 %v611, 2147483648
  %v621 = vmul.f32 %v620, 1.442695
  %v622 = vpow.pop %v621
  %v623 = vadd.f32 %v622, 1.0
  %v624 = vrcp.pop %v623
  %v625 = vmul.f32 1.0, %v624
  %v626 = vtanh.pop %v612
  %v627 = vxor.u32 %v613, 2147483648
  %v628 = vmul.f32 %v627, 1.442695
  %v629 = vpow.pop %v628
  %v630 = vadd.f32 %v629, 1.0
  %v631 = vrcp.pop %v630
  %v632 = vmul.f32 1.0, %v631
  %v633 = vmul.f32 %v625, 0.0
  %v634 = vmul.f32 %v619, %v626
  %v635 = vadd.f32 %v633, %v634
  %v636 = vtanh.pop %v635
  %v637 = vmul.f32 %v632, %v636
  %638 = vst [vmem:[#allocation3] sm:$0xff] %v637
  %v639 = vld [vmem:[#allocation2 + $0x20] sm:$0xff]
  %v640 = vld [vmem:[#allocation2 + $0x28] sm:$0xff]
  %v641 = vld [vmem:[#allocation2 + $0x30] sm:$0xff]
  %v642 = vld [vmem:[#allocation2 + $0x38] sm:$0xff]
  %v643 = vpack.c.bf16 %v637, %v637
  %v676 = vunpack.c.l.b16 %v578
  %v677 = vunpack.c.h.b16 %v578
  %v678 = vunpack.c.l.b16 %v579
  %v679 = vunpack.c.h.b16 %v579
  %v680 = vunpack.c.l.b16 %v580
  %v681 = vunpack.c.h.b16 %v580
  %v682 = vunpack.c.l.b16 %v581
  %v683 = vunpack.c.h.b16 %v581
  %v684 = vunpack.c.l.b16 %v582
  %v685 = vunpack.c.h.b16 %v582
  %v686 = vunpack.c.l.b16 %v583
  %v687 = vunpack.c.h.b16 %v583
  %v688 = vunpack.c.l.b16 %v584
  %v689 = vunpack.c.h.b16 %v584
  %v690 = vunpack.c.l.b16 %v585
  %v691 = vunpack.c.h.b16 %v585
  %v692 = vunpack.c.l.b16 %v586
  %v693 = vunpack.c.h.b16 %v586
  %v694 = vunpack.c.l.b16 %v587
  %v695 = vunpack.c.h.b16 %v587
  %v696 = vunpack.c.l.b16 %v588
  %v697 = vunpack.c.h.b16 %v588
  %v698 = vunpack.c.l.b16 %v589
  %v699 = vunpack.c.h.b16 %v589
  %v700 = vunpack.c.l.b16 %v590
  %v701 = vunpack.c.h.b16 %v590
  %v702 = vunpack.c.l.b16 %v591
  %v703 = vunpack.c.h.b16 %v591
  %v704 = vunpack.c.l.b16 %v592
  %v705 = vunpack.c.h.b16 %v592
  %v706 = vunpack.c.l.b16 %v593
  %v707 = vunpack.c.h.b16 %v593
  %v708 = vunpack.c.l.b16 %v594
  %v709 = vunpack.c.h.b16 %v594
  %v710 = vunpack.c.l.b16 %v595
  %v711 = vunpack.c.h.b16 %v595
  %v712 = vunpack.c.l.b16 %v596
  %v713 = vunpack.c.h.b16 %v596
  %v714 = vunpack.c.l.b16 %v597
  %v715 = vunpack.c.h.b16 %v597
  %v716 = vunpack.c.l.b16 %v598
  %v717 = vunpack.c.h.b16 %v598
  %v718 = vunpack.c.l.b16 %v599
  %v719 = vunpack.c.h.b16 %v599
  %v720 = vunpack.c.l.b16 %v600
  %v721 = vunpack.c.h.b16 %v600
  %v722 = vunpack.c.l.b16 %v601
  %v723 = vunpack.c.h.b16 %v601
  %v724 = vunpack.c.l.b16 %v602
  %v725 = vunpack.c.h.b16 %v602
  %v726 = vunpack.c.l.b16 %v603
  %v727 = vunpack.c.h.b16 %v603
  %v728 = vunpack.c.l.b16 %v604
  %v729 = vunpack.c.h.b16 %v604
  %v730 = vunpack.c.l.b16 %v605
  %v731 = vunpack.c.h.b16 %v605
  %v732 = vunpack.c.l.b16 %v606
  %v733 = vunpack.c.h.b16 %v606
  %v734 = vunpack.c.l.b16 %v607
  %v735 = vunpack.c.h.b16 %v607
  %v736 = vunpack.c.l.b16 %v608
  %v737 = vunpack.c.h.b16 %v608
  %v738 = vunpack.c.l.b16 %v609
  %v739 = vunpack.c.h.b16 %v609
  %v740 = vpack.c.b16 %v680, %v676
  %v741 = vpack.c.b16 %v681, %v677
  %v742 = vpack.c.b16 %v682, %v678
  %v743 = vpack.c.b16 %v683, %v679
  %v744 = vpack.c.b16 %v688, %v684
  %v745 = vpack.c.b16 %v689, %v685
  %v746 = vpack.c.b16 %v690, %v686
  %v747 = vpack.c.b16 %v691, %v687
  %v748 = vpack.c.b16 %v696, %v692
  %v749 = vpack.c.b16 %v697, %v693
  %v750 = vpack.c.b16 %v698, %v694
  %v751 = vpack.c.b16 %v699, %v695
  %v752 = vpack.c.b16 %v704, %v700
  %v753 = vpack.c.b16 %v705, %v701
  %v754 = vpack.c.b16 %v706, %v702
  %v755 = vpack.c.b16 %v707, %v703
  %v756 = vpack.c.b16 %v712, %v708
  %v757 = vpack.c.b16 %v713, %v709
  %v758 = vpack.c.b16 %v714, %v710
  %v759 = vpack.c.b16 %v715, %v711
  %v760 = vpack.c.b16 %v720, %v716
  %v761 = vpack.c.b16 %v721, %v717
  %v762 = vpack.c.b16 %v722, %v718
  %v763 = vpack.c.b16 %v723, %v719
  %v764 = vpack.c.b16 %v728, %v724
  %v765 = vpack.c.b16 %v729, %v725
  %v766 = vpack.c.b16 %v730, %v726
  %v767 = vpack.c.b16 %v731, %v727
  %v768 = vpack.c.b16 %v736, %v732
  %v769 = vpack.c.b16 %v737, %v733
  %v770 = vpack.c.b16 %v738, %v734
  %v771 = vpack.c.b16 %v739, %v735
  %804 = vmatprep.subr.bf16.mxu0 %v769
  %805 = vmatpush1.bf16.msra.mxu0 %v768
  %806 = vmatprep.subr.bf16.mxu0 %v765
  %807 = vmatpush1.bf16.msra.mxu0 %v764
  %808 = vmatprep.subr.bf16.mxu0 %v761
  %809 = vmatpush1.bf16.msra.mxu0 %v760
  %810 = vmatprep.subr.bf16.mxu0 %v757
  %811 = vmatpush1.bf16.msra.mxu0 %v756
  %812 = vmatprep.subr.bf16.mxu0 %v753
  %813 = vmatpush1.bf16.msra.mxu0 %v752
  %814 = vmatprep.subr.bf16.mxu0 %v749
  %815 = vmatpush1.bf16.msra.mxu0 %v748
  %816 = vmatprep.subr.bf16.mxu0 %v745
  %817 = vmatpush1.bf16.msra.mxu0 %v744
  %818 = vmatprep.subr.bf16.mxu0 %v741
  %819 = vmatpush1.bf16.msra.mxu0 %v740
  %820 = vmatprep.subr.bf16.mxu0 0
  %821 = vmatpush2.bf16.msra.mxu0 0
  %822 = vmatprep.subr.bf16.mxu0 0
  %823 = vmatpush2.bf16.msra.mxu0 0
  %824 = vmatprep.subr.bf16.mxu0 0
  %825 = vmatpush2.bf16.msra.mxu0 0
  %826 = vmatprep.subr.bf16.mxu0 0
  %827 = vmatpush2.bf16.msra.mxu0 0
  %828 = vmatprep.subr.bf16.mxu0 0
  %829 = vmatpush2.bf16.msra.mxu0 0
  %830 = vmatprep.subr.bf16.mxu0 0
  %831 = vmatpush2.bf16.msra.mxu0 0
  %832 = vmatprep.subr.bf16.mxu0 0
  %833 = vmatpush2.bf16.msra.mxu0 0
  %834 = vmatprep.subr.bf16.mxu0 0
  %835 = vmatpush2.bf16.msra.mxu0 0
  %836 = vmatprep.mubr.bf16.mxu0 0
  %837 = vmatmul.mubr.bf16.gmra.mxu0 %v643
  %v838 = vpop.f32.mrf.mxu0
  %v839 = vadd.f32 0.0, %v838
  %v840 = vpop.f32.mrf.mxu0
  %v841 = vadd.f32 0.0, %v840
  %v842 = vpop.f32.mrf.mxu0
  %v843 = vpop.f32.mrf.mxu0
  %844 = vdwg.mxu0
  %845 = vmatprep.subr.bf16.mxu0 %v771
  %846 = vmatpush1.bf16.msra.mxu0 %v770
  %847 = vmatprep.subr.bf16.mxu0 %v767
  %848 = vmatpush1.bf16.msra.mxu0 %v766
  %849 = vmatprep.subr.bf16.mxu0 %v763
  %850 = vmatpush1.bf16.msra.mxu0 %v762
  %851 = vmatprep.subr.bf16.mxu0 %v759
  %852 = vmatpush1.bf16.msra.mxu0 %v758
  %853 = vmatprep.subr.bf16.mxu0 %v755
  %854 = vmatpush1.bf16.msra.mxu0 %v754
  %855 = vmatprep.subr.bf16.mxu0 %v751
  %856 = vmatpush1.bf16.msra.mxu0 %v750
  %857 = vmatprep.subr.bf16.mxu0 %v747
  %858 = vmatpush1.bf16.msra.mxu0 %v746
  %859 = vmatprep.subr.bf16.mxu0 %v743
  %860 = vmatpush1.bf16.msra.mxu0 %v742
  %861 = vmatprep.subr.bf16.mxu0 0
  %862 = vmatpush2.bf16.msra.mxu0 0
  %863 = vmatprep.subr.bf16.mxu0 0
  %864 = vmatpush2.bf16.msra.mxu0 0
  %865 = vmatprep.subr.bf16.mxu0 0
  %866 = vmatpush2.bf16.msra.mxu0 0
  %867 = vmatprep.subr.bf16.mxu0 0
  %868 = vmatpush2.bf16.msra.mxu0 0
  %869 = vmatprep.subr.bf16.mxu0 0
  %870 = vmatpush2.bf16.msra.mxu0 0
  %871 = vmatprep.subr.bf16.mxu0 0
  %872 = vmatpush2.bf16.msra.mxu0 0
  %873 = vmatprep.subr.bf16.mxu0 0
  %874 = vmatpush2.bf16.msra.mxu0 0
  %875 = vmatprep.subr.bf16.mxu0 0
  %876 = vmatpush2.bf16.msra.mxu0 0
  %877 = vmatprep.mubr.bf16.mxu0 0
  %878 = vmatmul.mubr.bf16.gmra.mxu0 %v643
  %v879 = vpop.f32.mrf.mxu0
  %v880 = vadd.f32 0.0, %v879
  %v881 = vpop.f32.mrf.mxu0
  %v882 = vadd.f32 0.0, %v881
  %v883 = vpop.f32.mrf.mxu0
  %v884 = vpop.f32.mrf.mxu0
  %885 = vdwg.mxu0
  %v886 = vadd.f32 %v639, %v839
  %v887 = vadd.f32 %v640, %v841
  %v888 = vadd.f32 %v641, %v880
  %v889 = vadd.f32 %v642, %v882
  %v890 = vxor.u32 %v886, 2147483648
  %v891 = vmul.f32 %v890, 1.442695
  %v892 = vpow.pop %v891
  %v893 = vadd.f32 %v892, 1.0
  %v894 = vrcp.pop %v893
  %v895 = vmul.f32 1.0, %v894
  %v896 = vxor.u32 %v887, 2147483648
  %v897 = vmul.f32 %v896, 1.442695
  %v898 = vpow.pop %v897
  %v899 = vadd.f32 %v898, 1.0
  %v900 = vrcp.pop %v899
  %v901 = vmul.f32 1.0, %v900
  %v902 = vtanh.pop %v888
  %v903 = vxor.u32 %v889, 2147483648
  %v904 = vmul.f32 %v903, 1.442695
  %v905 = vpow.pop %v904
  %v906 = vadd.f32 %v905, 1.0
  %v907 = vrcp.pop %v906
  %v908 = vmul.f32 1.0, %v907
  %v909 = vmul.f32 %v901, %v635
  %v910 = vmul.f32 %v895, %v902
  %v911 = vadd.f32 %v909, %v910
  %v912 = vtanh.pop %v911
  %v913 = vmul.f32 %v908, %v912
  %914 = vst [vmem:[#allocation3 + $0x8] sm:$0xff] %v913
  %v915 = vld [vmem:[#allocation2 + $0x40] sm:$0xff]
  %v916 = vld [vmem:[#allocation2 + $0x48] sm:$0xff]
  %v917 = vld [vmem:[#allocation2 + $0x50] sm:$0xff]
  %v918 = vld [vmem:[#allocation2 + $0x58] sm:$0xff]
  %v919 = vpack.c.bf16 %v913, %v913
  %920 = vmatprep.subr.bf16.mxu0 %v769
  %921 = vmatpush1.bf16.msra.mxu0 %v768
  %922 = vmatprep.subr.bf16.mxu0 %v765
  %923 = vmatpush1.bf16.msra.mxu0 %v764
  %924 = vmatprep.subr.bf16.mxu0 %v761
  %925 = vmatpush1.bf16.msra.mxu0 %v760
  %926 = vmatprep.subr.bf16.mxu0 %v757
  %927 = vmatpush1.bf16.msra.mxu0 %v756
  %928 = vmatprep.subr.bf16.mxu0 %v753
  %929 = vmatpush1.bf16.msra.mxu0 %v752
  %930 = vmatprep.subr.bf16.mxu0 %v749
  %931 = vmatpush1.bf16.msra.mxu0 %v748
  %932 = vmatprep.subr.bf16.mxu0 %v745
  %933 = vmatpush1.bf16.msra.mxu0 %v744
  %934 = vmatprep.subr.bf16.mxu0 %v741
  %935 = vmatpush1.bf16.msra.mxu0 %v740
  %936 = vmatprep.subr.bf16.mxu0 0
  %937 = vmatpush2.bf16.msra.mxu0 0
  %938 = vmatprep.subr.bf16.mxu0 0
  %939 = vmatpush2.bf16.msra.mxu0 0
  %940 = vmatprep.subr.bf16.mxu0 0
  %941 = vmatpush2.bf16.msra.mxu0 0
  %942 = vmatprep.subr.bf16.mxu0 0
  %943 = vmatpush2.bf16.msra.mxu0 0
  %944 = vmatprep.subr.bf16.mxu0 0
  %945 = vmatpush2.bf16.msra.mxu0 0
  %946 = vmatprep.subr.bf16.mxu0 0
  %947 = vmatpush2.bf16.msra.mxu0 0
  %948 = vmatprep.subr.bf16.mxu0 0
  %949 = vmatpush2.bf16.msra.mxu0 0
  %950 = vmatprep.subr.bf16.mxu0 0
  %951 = vmatpush2.bf16.msra.mxu0 0
  %952 = vmatprep.mubr.bf16.mxu0 0
  %953 = vmatmul.mubr.bf16.gmra.mxu0 %v919
  %v954 = vpop.f32.mrf.mxu0
  %v955 = vadd.f32 0.0, %v954
  %v956 = vpop.f32.mrf.mxu0
  %v957 = vadd.f32 0.0, %v956
  %v958 = vpop.f32.mrf.mxu0
  %v959 = vpop.f32.mrf.mxu0
  %960 = vdwg.mxu0
  %961 = vmatprep.subr.bf16.mxu0 %v771
  %962 = vmatpush1.bf16.msra.mxu0 %v770
  %963 = vmatprep.subr.bf16.mxu0 %v767
  %964 = vmatpush1.bf16.msra.mxu0 %v766
  %965 = vmatprep.subr.bf16.mxu0 %v763
  %966 = vmatpush1.bf16.msra.mxu0 %v762
  %967 = vmatprep.subr.bf16.mxu0 %v759
  %968 = vmatpush1.bf16.msra.mxu0 %v758
  %969 = vmatprep.subr.bf16.mxu0 %v755
  %970 = vmatpush1.bf16.msra.mxu0 %v754
  %971 = vmatprep.subr.bf16.mxu0 %v751
  %972 = vmatpush1.bf16.msra.mxu0 %v750
  %973 = vmatprep.subr.bf16.mxu0 %v747
  %974 = vmatpush1.bf16.msra.mxu0 %v746
  %975 = vmatprep.subr.bf16.mxu0 %v743
  %976 = vmatpush1.bf16.msra.mxu0 %v742
  %977 = vmatprep.subr.bf16.mxu0 0
  %978 = vmatpush2.bf16.msra.mxu0 0
  %979 = vmatprep.subr.bf16.mxu0 0
  %980 = vmatpush2.bf16.msra.mxu0 0
  %981 = vmatprep.subr.bf16.mxu0 0
  %982 = vmatpush2.bf16.msra.mxu0 0
  %983 = vmatprep.subr.bf16.mxu0 0
  %984 = vmatpush2.bf16.msra.mxu0 0
  %985 = vmatprep.subr.bf16.mxu0 0
  %986 = vmatpush2.bf16.msra.mxu0 0
  %987 = vmatprep.subr.bf16.mxu0 0
  %988 = vmatpush2.bf16.msra.mxu0 0
  %989 = vmatprep.subr.bf16.mxu0 0
  %990 = vmatpush2.bf16.msra.mxu0 0
  %991 = vmatprep.subr.bf16.mxu0 0
  %992 = vmatpush2.bf16.msra.mxu0 0
  %993 = vmatprep.mubr.bf16.mxu0 0
  %994 = vmatmul.mubr.bf16.gmra.mxu0 %v919
  %v995 = vpop.f32.mrf.mxu0
  %v996 = vadd.f32 0.0, %v995
  %v997 = vpop.f32.mrf.mxu0
  %v998 = vadd.f32 0.0, %v997
  %v999 = vpop.f32.mrf.mxu0
  %v1000 = vpop.f32.mrf.mxu0
  %1001 = vdwg.mxu0
  %v1002 = vadd.f32 %v915, %v955
  %v1003 = vadd.f32 %v916, %v957
  %v1004 = vadd.f32 %v917, %v996
  %v1005 = vadd.f32 %v918, %v998
  %v1006 = vxor.u32 %v1002, 2147483648
  %v1007 = vmul.f32 %v1006, 1.442695
  %v1008 = vpow.pop %v1007
  %v1009 = vadd.f32 %v1008, 1.0
  %v1010 = vrcp.pop %v1009
  %v1011 = vmul.f32 1.0, %v1010
  %v1012 = vxor.u32 %v1003, 2147483648
  %v1013 = vmul.f32 %v1012, 1.442695
  %v1014 = vpow.pop %v1013
  %v1015 = vadd.f32 %v1014, 1.0
  %v1016 = vrcp.pop %v1015
  %v1017 = vmul.f32 1.0, %v1016
  %v1018 = vtanh.pop %v1004
  %v1019 = vxor.u32 %v1005, 2147483648
  %v1020 = vmul.f32 %v1019, 1.442695
  %v1021 = vpow.pop %v1020
  %v1022 = vadd.f32 %v1021, 1.0
  %v1023 = vrcp.pop %v1022
  %v1024 = vmul.f32 1.0, %v1023
  %v1025 = vmul.f32 %v1017, %v911
  %v1026 = vmul.f32 %v1011, %v1018
  %v1027 = vadd.f32 %v1025, %v1026
  %v1028 = vtanh.pop %v1027
  %v1029 = vmul.f32 %v1024, %v1028
  %1030 = vst [vmem:[#allocation3 + $0x10] sm:$0xff] %v1029
  %v1031 = vld [vmem:[#allocation2 + $0x60] sm:$0xff]
  %v1032 = vld [vmem:[#allocation2 + $0x68] sm:$0xff]
  %v1033 = vld [vmem:[#allocation2 + $0x70] sm:$0xff]
  %v1034 = vld [vmem:[#allocation2 + $0x78] sm:$0xff]
  %v1035 = vpack.c.bf16 %v1029, %v1029
  %1036 = vmatprep.subr.bf16.mxu0 %v769
  %1037 = vmatpush1.bf16.msra.mxu0 %v768
  %1038 = vmatprep.subr.bf16.mxu0 %v765
  %1039 = vmatpush1.bf16.msra.mxu0 %v764
  %1040 = vmatprep.subr.bf16.mxu0 %v761
  %1041 = vmatpush1.bf16.msra.mxu0 %v760
  %1042 = vmatprep.subr.bf16.mxu0 %v757
  %1043 = vmatpush1.bf16.msra.mxu0 %v756
  %1044 = vmatprep.subr.bf16.mxu0 %v753
  %1045 = vmatpush1.bf16.msra.mxu0 %v752
  %1046 = vmatprep.subr.bf16.mxu0 %v749
  %1047 = vmatpush1.bf16.msra.mxu0 %v748
  %1048 = vmatprep.subr.bf16.mxu0 %v745
  %1049 = vmatpush1.bf16.msra.mxu0 %v744
  %1050 = vmatprep.subr.bf16.mxu0 %v741
  %1051 = vmatpush1.bf16.msra.mxu0 %v740
  %1052 = vmatprep.subr.bf16.mxu0 0
  %1053 = vmatpush2.bf16.msra.mxu0 0
  %1054 = vmatprep.subr.bf16.mxu0 0
  %1055 = vmatpush2.bf16.msra.mxu0 0
  %1056 = vmatprep.subr.bf16.mxu0 0
  %1057 = vmatpush2.bf16.msra.mxu0 0
  %1058 = vmatprep.subr.bf16.mxu0 0
  %1059 = vmatpush2.bf16.msra.mxu0 0
  %1060 = vmatprep.subr.bf16.mxu0 0
  %1061 = vmatpush2.bf16.msra.mxu0 0
  %1062 = vmatprep.subr.bf16.mxu0 0
  %1063 = vmatpush2.bf16.msra.mxu0 0
  %1064 = vmatprep.subr.bf16.mxu0 0
  %1065 = vmatpush2.bf16.msra.mxu0 0
  %1066 = vmatprep.subr.bf16.mxu0 0
  %1067 = vmatpush2.bf16.msra.mxu0 0
  %1068 = vmatprep.mubr.bf16.mxu0 0
  %1069 = vmatmul.mubr.bf16.gmra.mxu0 %v1035
  %v1070 = vpop.f32.mrf.mxu0
  %v1071 = vadd.f32 0.0, %v1070
  %v1072 = vpop.f32.mrf.mxu0
  %v1073 = vadd.f32 0.0, %v1072
  %v1074 = vpop.f32.mrf.mxu0
  %v1075 = vpop.f32.mrf.mxu0
  %1076 = vdwg.mxu0
  %1077 = vmatprep.subr.bf16.mxu0 %v771
  %1078 = vmatpush1.bf16.msra.mxu0 %v770
  %1079 = vmatprep.subr.bf16.mxu0 %v767
  %1080 = vmatpush1.bf16.msra.mxu0 %v766
  %1081 = vmatprep.subr.bf16.mxu0 %v763
  %1082 = vmatpush1.bf16.msra.mxu0 %v762
  %1083 = vmatprep.subr.bf16.mxu0 %v759
  %1084 = vmatpush1.bf16.msra.mxu0 %v758
  %1085 = vmatprep.subr.bf16.mxu0 %v755
  %1086 = vmatpush1.bf16.msra.mxu0 %v754
  %1087 = vmatprep.subr.bf16.mxu0 %v751
  %1088 = vmatpush1.bf16.msra.mxu0 %v750
  %1089 = vmatprep.subr.bf16.mxu0 %v747
  %1090 = vmatpush1.bf16.msra.mxu0 %v746
  %1091 = vmatprep.subr.bf16.mxu0 %v743
  %1092 = vmatpush1.bf16.msra.mxu0 %v742
  %1093 = vmatprep.subr.bf16.mxu0 0
  %1094 = vmatpush2.bf16.msra.mxu0 0
  %1095 = vmatprep.subr.bf16.mxu0 0
  %1096 = vmatpush2.bf16.msra.mxu0 0
  %1097 = vmatprep.subr.bf16.mxu0 0
  %1098 = vmatpush2.bf16.msra.mxu0 0
  %1099 = vmatprep.subr.bf16.mxu0 0
  %1100 = vmatpush2.bf16.msra.mxu0 0
  %1101 = vmatprep.subr.bf16.mxu0 0
  %1102 = vmatpush2.bf16.msra.mxu0 0
  %1103 = vmatprep.subr.bf16.mxu0 0
  %1104 = vmatpush2.bf16.msra.mxu0 0
  %1105 = vmatprep.subr.bf16.mxu0 0
  %1106 = vmatpush2.bf16.msra.mxu0 0
  %1107 = vmatprep.subr.bf16.mxu0 0
  %1108 = vmatpush2.bf16.msra.mxu0 0
  %1109 = vmatprep.mubr.bf16.mxu0 0
  %1110 = vmatmul.mubr.bf16.gmra.mxu0 %v1035
  %v1111 = vpop.f32.mrf.mxu0
  %v1112 = vadd.f32 0.0, %v1111
  %v1113 = vpop.f32.mrf.mxu0
  %v1114 = vadd.f32 0.0, %v1113
  %v1115 = vpop.f32.mrf.mxu0
  %v1116 = vpop.f32.mrf.mxu0
  %1117 = vdwg.mxu0
  %v1118 = vadd.f32 %v1031, %v1071
  %v1119 = vadd.f32 %v1032, %v1073
  %v1120 = vadd.f32 %v1033, %v1112
  %v1121 = vadd.f32 %v1034, %v1114
  %v1122 = vxor.u32 %v1118, 2147483648
  %v1123 = vmul.f32 %v1122, 1.442695
  %v1124 = vpow.pop %v1123
  %v1125 = vadd.f32 %v1124, 1.0
  %v1126 = vrcp.pop %v1125
  %v1127 = vmul.f32 1.0, %v1126
  %v1128 = vxor.u32 %v1119, 2147483648
  %v1129 = vmul.f32 %v1128, 1.442695
  %v1130 = vpow.pop %v1129
  %v1131 = vadd.f32 %v1130, 1.0
  %v1132 = vrcp.pop %v1131
  %v1133 = vmul.f32 1.0, %v1132
  %v1134 = vtanh.pop %v1120
  %v1135 = vxor.u32 %v1121, 2147483648
  %v1136 = vmul.f32 %v1135, 1.442695
  %v1137 = vpow.pop %v1136
  %v1138 = vadd.f32 %v1137, 1.0
  %v1139 = vrcp.pop %v1138
  %v1140 = vmul.f32 1.0, %v1139
  %v1141 = vmul.f32 %v1133, %v1027
  %v1142 = vmul.f32 %v1127, %v1134
  %v1143 = vadd.f32 %v1141, %v1142
  %v1144 = vtanh.pop %v1143
  %v1145 = vmul.f32 %v1140, %v1144
  %1146 = vst [vmem:[#allocation3 + $0x18] sm:$0xff] %v1145
  %v1147 = vld [vmem:[#allocation2 + $0x80] sm:$0xff]
  %v1148 = vld [vmem:[#allocation2 + $0x88] sm:$0xff]
  %v1149 = vld [vmem:[#allocation2 + $0x90] sm:$0xff]
  %v1150 = vld [vmem:[#allocation2 + $0x98] sm:$0xff]
  %v1151 = vpack.c.bf16 %v1145, %v1145
  %1152 = vmatprep.subr.bf16.mxu0 %v769
  %1153 = vmatpush1.bf16.msra.mxu0 %v768
  %1154 = vmatprep.subr.bf16.mxu0 %v765
  %1155 = vmatpush1.bf16.msra.mxu0 %v764
  %1156 = vmatprep.subr.bf16.mxu0 %v761
  %1157 = vmatpush1.bf16.msra.mxu0 %v760
  %1158 = vmatprep.subr.bf16.mxu0 %v757
  %1159 = vmatpush1.bf16.msra.mxu0 %v756
  %1160 = vmatprep.subr.bf16.mxu0 %v753
  %1161 = vmatpush1.bf16.msra.mxu0 %v752
  %1162 = vmatprep.subr.bf16.mxu0 %v749
  %1163 = vmatpush1.bf16.msra.mxu0 %v748
  %1164 = vmatprep.subr.bf16.mxu0 %v745
  %1165 = vmatpush1.bf16.msra.mxu0 %v744
  %1166 = vmatprep.subr.bf16.mxu0 %v741
  %1167 = vmatpush1.bf16.msra.mxu0 %v740
  %1168 = vmatprep.subr.bf16.mxu0 0
  %1169 = vmatpush2.bf16.msra.mxu0 0
  %1170 = vmatprep.subr.bf16.mxu0 0
  %1171 = vmatpush2.bf16.msra.mxu0 0
  %1172 = vmatprep.subr.bf16.mxu0 0
  %1173 = vmatpush2.bf16.msra.mxu0 0
  %1174 = vmatprep.subr.bf16.mxu0 0
  %1175 = vmatpush2.bf16.msra.mxu0 0
  %1176 = vmatprep.subr.bf16.mxu0 0
  %1177 = vmatpush2.bf16.msra.mxu0 0
  %1178 = vmatprep.subr.bf16.mxu0 0
  %1179 = vmatpush2.bf16.msra.mxu0 0
  %1180 = vmatprep.subr.bf16.mxu0 0
  %1181 = vmatpush2.bf16.msra.mxu0 0
  %1182 = vmatprep.subr.bf16.mxu0 0
  %1183 = vmatpush2.bf16.msra.mxu0 0
  %1184 = vmatprep.mubr.bf16.mxu0 0
  %1185 = vmatmul.mubr.bf16.gmra.mxu0 %v1151
  %v1186 = vpop.f32.mrf.mxu0
  %v1187 = vadd.f32 0.0, %v1186
  %v1188 = vpop.f32.mrf.mxu0
  %v1189 = vadd.f32 0.0, %v1188
  %v1190 = vpop.f32.mrf.mxu0
  %v1191 = vpop.f32.mrf.mxu0
  %1192 = vdwg.mxu0
  %1193 = vmatprep.subr.bf16.mxu0 %v771
  %1194 = vmatpush1.bf16.msra.mxu0 %v770
  %1195 = vmatprep.subr.bf16.mxu0 %v767
  %1196 = vmatpush1.bf16.msra.mxu0 %v766
  %1197 = vmatprep.subr.bf16.mxu0 %v763
  %1198 = vmatpush1.bf16.msra.mxu0 %v762
  %1199 = vmatprep.subr.bf16.mxu0 %v759
  %1200 = vmatpush1.bf16.msra.mxu0 %v758
  %1201 = vmatprep.subr.bf16.mxu0 %v755
  %1202 = vmatpush1.bf16.msra.mxu0 %v754
  %1203 = vmatprep.subr.bf16.mxu0 %v751
  %1204 = vmatpush1.bf16.msra.mxu0 %v750
  %1205 = vmatprep.subr.bf16.mxu0 %v747
  %1206 = vmatpush1.bf16.msra.mxu0 %v746
  %1207 = vmatprep.subr.bf16.mxu0 %v743
  %1208 = vmatpush1.bf16.msra.mxu0 %v742
  %1209 = vmatprep.subr.bf16.mxu0 0
  %1210 = vmatpush2.bf16.msra.mxu0 0
  %1211 = vmatprep.subr.bf16.mxu0 0
  %1212 = vmatpush2.bf16.msra.mxu0 0
  %1213 = vmatprep.subr.bf16.mxu0 0
  %1214 = vmatpush2.bf16.msra.mxu0 0
  %1215 = vmatprep.subr.bf16.mxu0 0
  %1216 = vmatpush2.bf16.msra.mxu0 0
  %1217 = vmatprep.subr.bf16.mxu0 0
  %1218 = vmatpush2.bf16.msra.mxu0 0
  %1219 = vmatprep.subr.bf16.mxu0 0
  %1220 = vmatpush2.bf16.msra.mxu0 0
  %1221 = vmatprep.subr.bf16.mxu0 0
  %1222 = vmatpush2.bf16.msra.mxu0 0
  %1223 = vmatprep.subr.bf16.mxu0 0
  %1224 = vmatpush2.bf16.msra.mxu0 0
  %1225 = vmatprep.mubr.bf16.mxu0 0
  %1226 = vmatmul.mubr.bf16.gmra.mxu0 %v1151
  %v1227 = vpop.f32.mrf.mxu0
  %v1228 = vadd.f32 0.0, %v1227
  %v1229 = vpop.f32.mrf.mxu0
  %v1230 = vadd.f32 0.0, %v1229
  %v1231 = vpop.f32.mrf.mxu0
  %v1232 = vpop.f32.mrf.mxu0
  %1233 = vdwg.mxu0
  %v1234 = vadd.f32 %v1147, %v1187
  %v1235 = vadd.f32 %v1148, %v1189
  %v1236 = vadd.f32 %v1149, %v1228
  %v1237 = vadd.f32 %v1150, %v1230
  %v1238 = vxor.u32 %v1234, 2147483648
  %v1239 = vmul.f32 %v1238, 1.442695
  %v1240 = vpow.pop %v1239
  %v1241 = vadd.f32 %v1240, 1.0
  %v1242 = vrcp.pop %v1241
  %v1243 = vmul.f32 1.0, %v1242
  %v1244 = vxor.u32 %v1235, 2147483648
  %v1245 = vmul.f32 %v1244, 1.442695
  %v1246 = vpow.pop %v1245
  %v1247 = vadd.f32 %v1246, 1.0
  %v1248 = vrcp.pop %v1247
  %v1249 = vmul.f32 1.0, %v1248
  %v1250 = vtanh.pop %v1236
  %v1251 = vxor.u32 %v1237, 2147483648
  %v1252 = vmul.f32 %v1251, 1.442695
  %v1253 = vpow.pop %v1252
  %v1254 = vadd.f32 %v1253, 1.0
  %v1255 = vrcp.pop %v1254
  %v1256 = vmul.f32 1.0, %v1255
  %v1257 = vmul.f32 %v1249, %v1143
  %v1258 = vmul.f32 %v1243, %v1250
  %v1259 = vadd.f32 %v1257, %v1258
  %v1260 = vtanh.pop %v1259
  %v1261 = vmul.f32 %v1256, %v1260
  %1262 = vst [vmem:[#allocation3 + $0x20] sm:$0xff] %v1261
  %v1263 = vld [vmem:[#allocation2 + $0xa0] sm:$0xff]
  %v1264 = vld [vmem:[#allocation2 + $0xa8] sm:$0xff]
  %v1265 = vld [vmem:[#allocation2 + $0xb0] sm:$0xff]
  %v1266 = vld [vmem:[#allocation2 + $0xb8] sm:$0xff]
  %v1267 = vpack.c.bf16 %v1261, %v1261
  %1268 = vmatprep.subr.bf16.mxu0 %v769
  %1269 = vmatpush1.bf16.msra.mxu0 %v768
  %1270 = vmatprep.subr.bf16.mxu0 %v765
  %1271 = vmatpush1.bf16.msra.mxu0 %v764
  %1272 = vmatprep.subr.bf16.mxu0 %v761
  %1273 = vmatpush1.bf16.msra.mxu0 %v760
  %1274 = vmatprep.subr.bf16.mxu0 %v757
  %1275 = vmatpush1.bf16.msra.mxu0 %v756
  %1276 = vmatprep.subr.bf16.mxu0 %v753
  %1277 = vmatpush1.bf16.msra.mxu0 %v752
  %1278 = vmatprep.subr.bf16.mxu0 %v749
  %1279 = vmatpush1.bf16.msra.mxu0 %v748
  %1280 = vmatprep.subr.bf16.mxu0 %v745
  %1281 = vmatpush1.bf16.msra.mxu0 %v744
  %1282 = vmatprep.subr.bf16.mxu0 %v741
  %1283 = vmatpush1.bf16.msra.mxu0 %v740
  %1284 = vmatprep.subr.bf16.mxu0 0
  %1285 = vmatpush2.bf16.msra.mxu0 0
  %1286 = vmatprep.subr.bf16.mxu0 0
  %1287 = vmatpush2.bf16.msra.mxu0 0
  %1288 = vmatprep.subr.bf16.mxu0 0
  %1289 = vmatpush2.bf16.msra.mxu0 0
  %1290 = vmatprep.subr.bf16.mxu0 0
  %1291 = vmatpush2.bf16.msra.mxu0 0
  %1292 = vmatprep.subr.bf16.mxu0 0
  %1293 = vmatpush2.bf16.msra.mxu0 0
  %1294 = vmatprep.subr.bf16.mxu0 0
  %1295 = vmatpush2.bf16.msra.mxu0 0
  %1296 = vmatprep.subr.bf16.mxu0 0
  %1297 = vmatpush2.bf16.msra.mxu0 0
  %1298 = vmatprep.subr.bf16.mxu0 0
  %1299 = vmatpush2.bf16.msra.mxu0 0
  %1300 = vmatprep.mubr.bf16.mxu0 0
  %1301 = vmatmul.mubr.bf16.gmra.mxu0 %v1267
  %v1302 = vpop.f32.mrf.mxu0
  %v1303 = vadd.f32 0.0, %v1302
  %v1304 = vpop.f32.mrf.mxu0
  %v1305 = vadd.f32 0.0, %v1304
  %v1306 = vpop.f32.mrf.mxu0
  %v1307 = vpop.f32.mrf.mxu0
  %1308 = vdwg.mxu0
  %1309 = vmatprep.subr.bf16.mxu0 %v771
  %1310 = vmatpush1.bf16.msra.mxu0 %v770
  %1311 = vmatprep.subr.bf16.mxu0 %v767
  %1312 = vmatpush1.bf16.msra.mxu0 %v766
  %1313 = vmatprep.subr.bf16.mxu0 %v763
  %1314 = vmatpush1.bf16.msra.mxu0 %v762
  %1315 = vmatprep.subr.bf16.mxu0 %v759
  %1316 = vmatpush1.bf16.msra.mxu0 %v758
  %1317 = vmatprep.subr.bf16.mxu0 %v755
  %1318 = vmatpush1.bf16.msra.mxu0 %v754
  %1319 = vmatprep.subr.bf16.mxu0 %v751
  %1320 = vmatpush1.bf16.msra.mxu0 %v750
  %1321 = vmatprep.subr.bf16.mxu0 %v747
  %1322 = vmatpush1.bf16.msra.mxu0 %v746
  %1323 = vmatprep.subr.bf16.mxu0 %v743
  %1324 = vmatpush1.bf16.msra.mxu0 %v742
  %1325 = vmatprep.subr.bf16.mxu0 0
  %1326 = vmatpush2.bf16.msra.mxu0 0
  %1327 = vmatprep.subr.bf16.mxu0 0
  %1328 = vmatpush2.bf16.msra.mxu0 0
  %1329 = vmatprep.subr.bf16.mxu0 0
  %1330 = vmatpush2.bf16.msra.mxu0 0
  %1331 = vmatprep.subr.bf16.mxu0 0
  %1332 = vmatpush2.bf16.msra.mxu0 0
  %1333 = vmatprep.subr.bf16.mxu0 0
  %1334 = vmatpush2.bf16.msra.mxu0 0
  %1335 = vmatprep.subr.bf16.mxu0 0
  %1336 = vmatpush2.bf16.msra.mxu0 0
  %1337 = vmatprep.subr.bf16.mxu0 0
  %1338 = vmatpush2.bf16.msra.mxu0 0
  %1339 = vmatprep.subr.bf16.mxu0 0
  %1340 = vmatpush2.bf16.msra.mxu0 0
  %1341 = vmatprep.mubr.bf16.mxu0 0
  %1342 = vmatmul.mubr.bf16.gmra.mxu0 %v1267
  %v1343 = vpop.f32.mrf.mxu0
  %v1344 = vadd.f32 0.0, %v1343
  %v1345 = vpop.f32.mrf.mxu0
  %v1346 = vadd.f32 0.0, %v1345
  %v1347 = vpop.f32.mrf.mxu0
  %v1348 = vpop.f32.mrf.mxu0
  %1349 = vdwg.mxu0
  %v1350 = vadd.f32 %v1263, %v1303
  %v1351 = vadd.f32 %v1264, %v1305
  %v1352 = vadd.f32 %v1265, %v1344
  %v1353 = vadd.f32 %v1266, %v1346
  %v1354 = vxor.u32 %v1350, 2147483648
  %v1355 = vmul.f32 %v1354, 1.442695
  %v1356 = vpow.pop %v1355
  %v1357 = vadd.f32 %v1356, 1.0
  %v1358 = vrcp.pop %v1357
  %v1359 = vmul.f32 1.0, %v1358
  %v1360 = vxor.u32 %v1351, 2147483648
  %v1361 = vmul.f32 %v1360, 1.442695
  %v1362 = vpow.pop %v1361
  %v1363 = vadd.f32 %v1362, 1.0
  %v1364 = vrcp.pop %v1363
  %v1365 = vmul.f32 1.0, %v1364
  %v1366 = vtanh.pop %v1352
  %v1367 = vxor.u32 %v1353, 2147483648
  %v1368 = vmul.f32 %v1367, 1.442695
  %v1369 = vpow.pop %v1368
  %v1370 = vadd.f32 %v1369, 1.0
  %v1371 = vrcp.pop %v1370
  %v1372 = vmul.f32 1.0, %v1371
  %v1373 = vmul.f32 %v1365, %v1259
  %v1374 = vmul.f32 %v1359, %v1366
  %v1375 = vadd.f32 %v1373, %v1374
  %v1376 = vtanh.pop %v1375
  %v1377 = vmul.f32 %v1372, %v1376
  %1378 = vst [vmem:[#allocation3 + $0x28] sm:$0xff] %v1377
  %v1379 = vld [vmem:[#allocation2 + $0xc0] sm:$0xff]
  %v1380 = vld [vmem:[#allocation2 + $0xc8] sm:$0xff]
  %v1381 = vld [vmem:[#allocation2 + $0xd0] sm:$0xff]
  %v1382 = vld [vmem:[#allocation2 + $0xd8] sm:$0xff]
  %v1383 = vpack.c.bf16 %v1377, %v1377
  %1384 = vmatprep.subr.bf16.mxu0 %v769
  %1385 = vmatpush1.bf16.msra.mxu0 %v768
  %1386 = vmatprep.subr.bf16.mxu0 %v765
  %1387 = vmatpush1.bf16.msra.mxu0 %v764
  %1388 = vmatprep.subr.bf16.mxu0 %v761
  %1389 = vmatpush1.bf16.msra.mxu0 %v760
  %1390 = vmatprep.subr.bf16.mxu0 %v757
  %1391 = vmatpush1.bf16.msra.mxu0 %v756
  %1392 = vmatprep.subr.bf16.mxu0 %v753
  %1393 = vmatpush1.bf16.msra.mxu0 %v752
  %1394 = vmatprep.subr.bf16.mxu0 %v749
  %1395 = vmatpush1.bf16.msra.mxu0 %v748
  %1396 = vmatprep.subr.bf16.mxu0 %v745
  %1397 = vmatpush1.bf16.msra.mxu0 %v744
  %1398 = vmatprep.subr.bf16.mxu0 %v741
  %1399 = vmatpush1.bf16.msra.mxu0 %v740
  %1400 = vmatprep.subr.bf16.mxu0 0
  %1401 = vmatpush2.bf16.msra.mxu0 0
  %1402 = vmatprep.subr.bf16.mxu0 0
  %1403 = vmatpush2.bf16.msra.mxu0 0
  %1404 = vmatprep.subr.bf16.mxu0 0
  %1405 = vmatpush2.bf16.msra.mxu0 0
  %1406 = vmatprep.subr.bf16.mxu0 0
  %1407 = vmatpush2.bf16.msra.mxu0 0
  %1408 = vmatprep.subr.bf16.mxu0 0
  %1409 = vmatpush2.bf16.msra.mxu0 0
  %1410 = vmatprep.subr.bf16.mxu0 0
  %1411 = vmatpush2.bf16.msra.mxu0 0
  %1412 = vmatprep.subr.bf16.mxu0 0
  %1413 = vmatpush2.bf16.msra.mxu0 0
  %1414 = vmatprep.subr.bf16.mxu0 0
  %1415 = vmatpush2.bf16.msra.mxu0 0
  %1416 = vmatprep.mubr.bf16.mxu0 0
  %1417 = vmatmul.mubr.bf16.gmra.mxu0 %v1383
  %v1418 = vpop.f32.mrf.mxu0
  %v1419 = vadd.f32 0.0, %v1418
  %v1420 = vpop.f32.mrf.mxu0
  %v1421 = vadd.f32 0.0, %v1420
  %v1422 = vpop.f32.mrf.mxu0
  %v1423 = vpop.f32.mrf.mxu0
  %1424 = vdwg.mxu0
  %1425 = vmatprep.subr.bf16.mxu0 %v771
  %1426 = vmatpush1.bf16.msra.mxu0 %v770
  %1427 = vmatprep.subr.bf16.mxu0 %v767
  %1428 = vmatpush1.bf16.msra.mxu0 %v766
  %1429 = vmatprep.subr.bf16.mxu0 %v763
  %1430 = vmatpush1.bf16.msra.mxu0 %v762
  %1431 = vmatprep.subr.bf16.mxu0 %v759
  %1432 = vmatpush1.bf16.msra.mxu0 %v758
  %1433 = vmatprep.subr.bf16.mxu0 %v755
  %1434 = vmatpush1.bf16.msra.mxu0 %v754
  %1435 = vmatprep.subr.bf16.mxu0 %v751
  %1436 = vmatpush1.bf16.msra.mxu0 %v750
  %1437 = vmatprep.subr.bf16.mxu0 %v747
  %1438 = vmatpush1.bf16.msra.mxu0 %v746
  %1439 = vmatprep.subr.bf16.mxu0 %v743
  %1440 = vmatpush1.bf16.msra.mxu0 %v742
  %1441 = vmatprep.subr.bf16.mxu0 0
  %1442 = vmatpush2.bf16.msra.mxu0 0
  %1443 = vmatprep.subr.bf16.mxu0 0
  %1444 = vmatpush2.bf16.msra.mxu0 0
  %1445 = vmatprep.subr.bf16.mxu0 0
  %1446 = vmatpush2.bf16.msra.mxu0 0
  %1447 = vmatprep.subr.bf16.mxu0 0
  %1448 = vmatpush2.bf16.msra.mxu0 0
  %1449 = vmatprep.subr.bf16.mxu0 0
  %1450 = vmatpush2.bf16.msra.mxu0 0
  %1451 = vmatprep.subr.bf16.mxu0 0
  %1452 = vmatpush2.bf16.msra.mxu0 0
  %1453 = vmatprep.subr.bf16.mxu0 0
  %1454 = vmatpush2.bf16.msra.mxu0 0
  %1455 = vmatprep.subr.bf16.mxu0 0
  %1456 = vmatpush2.bf16.msra.mxu0 0
  %1457 = vmatprep.mubr.bf16.mxu0 0
  %1458 = vmatmul.mubr.bf16.gmra.mxu0 %v1383
  %v1459 = vpop.f32.mrf.mxu0
  %v1460 = vadd.f32 0.0, %v1459
  %v1461 = vpop.f32.mrf.mxu0
  %v1462 = vadd.f32 0.0, %v1461
  %v1463 = vpop.f32.mrf.mxu0
  %v1464 = vpop.f32.mrf.mxu0
  %1465 = vdwg.mxu0
  %v1466 = vadd.f32 %v1379, %v1419
  %v1467 = vadd.f32 %v1380, %v1421
  %v1468 = vadd.f32 %v1381, %v1460
  %v1469 = vadd.f32 %v1382, %v1462
  %v1470 = vxor.u32 %v1466, 2147483648
  %v1471 = vmul.f32 %v1470, 1.442695
  %v1472 = vpow.pop %v1471
  %v1473 = vadd.f32 %v1472, 1.0
  %v1474 = vrcp.pop %v1473
  %v1475 = vmul.f32 1.0, %v1474
  %v1476 = vxor.u32 %v1467, 2147483648
  %v1477 = vmul.f32 %v1476, 1.442695
  %v1478 = vpow.pop %v1477
  %v1479 = vadd.f32 %v1478, 1.0
  %v1480 = vrcp.pop %v1479
  %v1481 = vmul.f32 1.0, %v1480
  %v1482 = vtanh.pop %v1468
  %v1483 = vxor.u32 %v1469, 2147483648
  %v1484 = vmul.f32 %v1483, 1.442695
  %v1485 = vpow.pop %v1484
  %v1486 = vadd.f32 %v1485, 1.0
  %v1487 = vrcp.pop %v1486
  %v1488 = vmul.f32 1.0, %v1487
  %v1489 = vmul.f32 %v1481, %v1375
  %v1490 = vmul.f32 %v1475, %v1482
  %v1491 = vadd.f32 %v1489, %v1490
  %v1492 = vtanh.pop %v1491
  %v1493 = vmul.f32 %v1488, %v1492
  %1494 = vst [vmem:[#allocation3 + $0x30] sm:$0xff] %v1493
  %v1495 = vld [vmem:[#allocation2 + $0xe0] sm:$0xff]
  %v1496 = vld [vmem:[#allocation2 + $0xe8] sm:$0xff]
  %v1497 = vld [vmem:[#allocation2 + $0xf0] sm:$0xff]
  %v1498 = vld [vmem:[#allocation2 + $0xf8] sm:$0xff]
  %v1499 = vpack.c.bf16 %v1493, %v1493
  %1500 = vmatprep.subr.bf16.mxu0 %v769
  %1501 = vmatpush1.bf16.msra.mxu0 %v768
  %1502 = vmatprep.subr.bf16.mxu0 %v765
  %1503 = vmatpush1.bf16.msra.mxu0 %v764
  %1504 = vmatprep.subr.bf16.mxu0 %v761
  %1505 = vmatpush1.bf16.msra.mxu0 %v760
  %1506 = vmatprep.subr.bf16.mxu0 %v757
  %1507 = vmatpush1.bf16.msra.mxu0 %v756
  %1508 = vmatprep.subr.bf16.mxu0 %v753
  %1509 = vmatpush1.bf16.msra.mxu0 %v752
  %1510 = vmatprep.subr.bf16.mxu0 %v749
  %1511 = vmatpush1.bf16.msra.mxu0 %v748
  %1512 = vmatprep.subr.bf16.mxu0 %v745
  %1513 = vmatpush1.bf16.msra.mxu0 %v744
  %1514 = vmatprep.subr.bf16.mxu0 %v741
  %1515 = vmatpush1.bf16.msra.mxu0 %v740
  %1516 = vmatprep.subr.bf16.mxu0 0
  %1517 = vmatpush2.bf16.msra.mxu0 0
  %1518 = vmatprep.subr.bf16.mxu0 0
  %1519 = vmatpush2.bf16.msra.mxu0 0
  %1520 = vmatprep.subr.bf16.mxu0 0
  %1521 = vmatpush2.bf16.msra.mxu0 0
  %1522 = vmatprep.subr.bf16.mxu0 0
  %1523 = vmatpush2.bf16.msra.mxu0 0
  %1524 = vmatprep.subr.bf16.mxu0 0
  %1525 = vmatpush2.bf16.msra.mxu0 0
  %1526 = vmatprep.subr.bf16.mxu0 0
  %1527 = vmatpush2.bf16.msra.mxu0 0
  %1528 = vmatprep.subr.bf16.mxu0 0
  %1529 = vmatpush2.bf16.msra.mxu0 0
  %1530 = vmatprep.subr.bf16.mxu0 0
  %1531 = vmatpush2.bf16.msra.mxu0 0
  %1532 = vmatprep.mubr.bf16.mxu0 0
  %1533 = vmatmul.mubr.bf16.gmra.mxu0 %v1499
  %v1534 = vpop.f32.mrf.mxu0
  %v1535 = vadd.f32 0.0, %v1534
  %v1536 = vpop.f32.mrf.mxu0
  %v1537 = vadd.f32 0.0, %v1536
  %v1538 = vpop.f32.mrf.mxu0
  %v1539 = vpop.f32.mrf.mxu0
  %1540 = vdwg.mxu0
  %1541 = vmatprep.subr.bf16.mxu0 %v771
  %1542 = vmatpush1.bf16.msra.mxu0 %v770
  %1543 = vmatprep.subr.bf16.mxu0 %v767
  %1544 = vmatpush1.bf16.msra.mxu0 %v766
  %1545 = vmatprep.subr.bf16.mxu0 %v763
  %1546 = vmatpush1.bf16.msra.mxu0 %v762
  %1547 = vmatprep.subr.bf16.mxu0 %v759
  %1548 = vmatpush1.bf16.msra.mxu0 %v758
  %1549 = vmatprep.subr.bf16.mxu0 %v755
  %1550 = vmatpush1.bf16.msra.mxu0 %v754
  %1551 = vmatprep.subr.bf16.mxu0 %v751
  %1552 = vmatpush1.bf16.msra.mxu0 %v750
  %1553 = vmatprep.subr.bf16.mxu0 %v747
  %1554 = vmatpush1.bf16.msra.mxu0 %v746
  %1555 = vmatprep.subr.bf16.mxu0 %v743
  %1556 = vmatpush1.bf16.msra.mxu0 %v742
  %1557 = vmatprep.subr.bf16.mxu0 0
  %1558 = vmatpush2.bf16.msra.mxu0 0
  %1559 = vmatprep.subr.bf16.mxu0 0
  %1560 = vmatpush2.bf16.msra.mxu0 0
  %1561 = vmatprep.subr.bf16.mxu0 0
  %1562 = vmatpush2.bf16.msra.mxu0 0
  %1563 = vmatprep.subr.bf16.mxu0 0
  %1564 = vmatpush2.bf16.msra.mxu0 0
  %1565 = vmatprep.subr.bf16.mxu0 0
  %1566 = vmatpush2.bf16.msra.mxu0 0
  %1567 = vmatprep.subr.bf16.mxu0 0
  %1568 = vmatpush2.bf16.msra.mxu0 0
  %1569 = vmatprep.subr.bf16.mxu0 0
  %1570 = vmatpush2.bf16.msra.mxu0 0
  %1571 = vmatprep.subr.bf16.mxu0 0
  %1572 = vmatpush2.bf16.msra.mxu0 0
  %1573 = vmatprep.mubr.bf16.mxu0 0
  %1574 = vmatmul.mubr.bf16.gmra.mxu0 %v1499
  %v1575 = vpop.f32.mrf.mxu0
  %v1576 = vadd.f32 0.0, %v1575
  %v1577 = vpop.f32.mrf.mxu0
  %v1578 = vadd.f32 0.0, %v1577
  %v1579 = vpop.f32.mrf.mxu0
  %v1580 = vpop.f32.mrf.mxu0
  %1581 = vdwg.mxu0
  %v1582 = vadd.f32 %v1495, %v1535
  %v1583 = vadd.f32 %v1496, %v1537
  %v1584 = vadd.f32 %v1497, %v1576
  %v1585 = vadd.f32 %v1498, %v1578
  %v1586 = vxor.u32 %v1582, 2147483648
  %v1587 = vmul.f32 %v1586, 1.442695
  %v1588 = vpow.pop %v1587
  %v1589 = vadd.f32 %v1588, 1.0
  %v1590 = vrcp.pop %v1589
  %v1591 = vmul.f32 1.0, %v1590
  %v1592 = vxor.u32 %v1583, 2147483648
  %v1593 = vmul.f32 %v1592, 1.442695
  %v1594 = vpow.pop %v1593
  %v1595 = vadd.f32 %v1594, 1.0
  %v1596 = vrcp.pop %v1595
  %v1597 = vmul.f32 1.0, %v1596
  %v1598 = vtanh.pop %v1584
  %v1599 = vxor.u32 %v1585, 2147483648
  %v1600 = vmul.f32 %v1599, 1.442695
  %v1601 = vpow.pop %v1600
  %v1602 = vadd.f32 %v1601, 1.0
  %v1603 = vrcp.pop %v1602
  %v1604 = vmul.f32 1.0, %v1603
  %v1605 = vmul.f32 %v1597, %v1491
  %v1606 = vmul.f32 %v1591, %v1598
  %v1607 = vadd.f32 %v1605, %v1606
  %v1608 = vtanh.pop %v1607
  %v1609 = vmul.f32 %v1604, %v1608
  %1610 = vst [vmem:[#allocation3 + $0x38] sm:$0xff] %v1609
  %v1611 = vld [vmem:[#allocation2 + $0x100] sm:$0xff]
  %v1612 = vld [vmem:[#allocation2 + $0x108] sm:$0xff]
  %v1613 = vld [vmem:[#allocation2 + $0x110] sm:$0xff]
  %v1614 = vld [vmem:[#allocation2 + $0x118] sm:$0xff]
  %v1615 = vpack.c.bf16 %v1609, %v1609
  %1616 = vmatprep.subr.bf16.mxu0 %v769
  %1617 = vmatpush1.bf16.msra.mxu0 %v768
  %1618 = vmatprep.subr.bf16.mxu0 %v765
  %1619 = vmatpush1.bf16.msra.mxu0 %v764
  %1620 = vmatprep.subr.bf16.mxu0 %v761
  %1621 = vmatpush1.bf16.msra.mxu0 %v760
  %1622 = vmatprep.subr.bf16.mxu0 %v757
  %1623 = vmatpush1.bf16.msra.mxu0 %v756
  %1624 = vmatprep.subr.bf16.mxu0 %v753
  %1625 = vmatpush1.bf16.msra.mxu0 %v752
  %1626 = vmatprep.subr.bf16.mxu0 %v749
  %1627 = vmatpush1.bf16.msra.mxu0 %v748
  %1628 = vmatprep.subr.bf16.mxu0 %v745
  %1629 = vmatpush1.bf16.msra.mxu0 %v744
  %1630 = vmatprep.subr.bf16.mxu0 %v741
  %1631 = vmatpush1.bf16.msra.mxu0 %v740
  %1632 = vmatprep.subr.bf16.mxu0 0
  %1633 = vmatpush2.bf16.msra.mxu0 0
  %1634 = vmatprep.subr.bf16.mxu0 0
  %1635 = vmatpush2.bf16.msra.mxu0 0
  %1636 = vmatprep.subr.bf16.mxu0 0
  %1637 = vmatpush2.bf16.msra.mxu0 0
  %1638 = vmatprep.subr.bf16.mxu0 0
  %1639 = vmatpush2.bf16.msra.mxu0 0
  %1640 = vmatprep.subr.bf16.mxu0 0
  %1641 = vmatpush2.bf16.msra.mxu0 0
  %1642 = vmatprep.subr.bf16.mxu0 0
  %1643 = vmatpush2.bf16.msra.mxu0 0
  %1644 = vmatprep.subr.bf16.mxu0 0
  %1645 = vmatpush2.bf16.msra.mxu0 0
  %1646 = vmatprep.subr.bf16.mxu0 0
  %1647 = vmatpush2.bf16.msra.mxu0 0
  %1648 = vmatprep.mubr.bf16.mxu0 0
  %1649 = vmatmul.mubr.bf16.gmra.mxu0 %v1615
  %v1650 = vpop.f32.mrf.mxu0
  %v1651 = vadd.f32 0.0, %v1650
  %v1652 = vpop.f32.mrf.mxu0
  %v1653 = vadd.f32 0.0, %v1652
  %v1654 = vpop.f32.mrf.mxu0
  %v1655 = vpop.f32.mrf.mxu0
  %1656 = vdwg.mxu0
  %1657 = vmatprep.subr.bf16.mxu0 %v771
  %1658 = vmatpush1.bf16.msra.mxu0 %v770
  %1659 = vmatprep.subr.bf16.mxu0 %v767
  %1660 = vmatpush1.bf16.msra.mxu0 %v766
  %1661 = vmatprep.subr.bf16.mxu0 %v763
  %1662 = vmatpush1.bf16.msra.mxu0 %v762
  %1663 = vmatprep.subr.bf16.mxu0 %v759
  %1664 = vmatpush1.bf16.msra.mxu0 %v758
  %1665 = vmatprep.subr.bf16.mxu0 %v755
  %1666 = vmatpush1.bf16.msra.mxu0 %v754
  %1667 = vmatprep.subr.bf16.mxu0 %v751
  %1668 = vmatpush1.bf16.msra.mxu0 %v750
  %1669 = vmatprep.subr.bf16.mxu0 %v747
  %1670 = vmatpush1.bf16.msra.mxu0 %v746
  %1671 = vmatprep.subr.bf16.mxu0 %v743
  %1672 = vmatpush1.bf16.msra.mxu0 %v742
  %1673 = vmatprep.subr.bf16.mxu0 0
  %1674 = vmatpush2.bf16.msra.mxu0 0
  %1675 = vmatprep.subr.bf16.mxu0 0
  %1676 = vmatpush2.bf16.msra.mxu0 0
  %1677 = vmatprep.subr.bf16.mxu0 0
  %1678 = vmatpush2.bf16.msra.mxu0 0
  %1679 = vmatprep.subr.bf16.mxu0 0
  %1680 = vmatpush2.bf16.msra.mxu0 0
  %1681 = vmatprep.subr.bf16.mxu0 0
  %1682 = vmatpush2.bf16.msra.mxu0 0
  %1683 = vmatprep.subr.bf16.mxu0 0
  %1684 = vmatpush2.bf16.msra.mxu0 0
  %1685 = vmatprep.subr.bf16.mxu0 0
  %1686 = vmatpush2.bf16.msra.mxu0 0
  %1687 = vmatprep.subr.bf16.mxu0 0
  %1688 = vmatpush2.bf16.msra.mxu0 0
  %1689 = vmatprep.mubr.bf16.mxu0 0
  %1690 = vmatmul.mubr.bf16.gmra.mxu0 %v1615
  %v1691 = vpop.f32.mrf.mxu0
  %v1692 = vadd.f32 0.0, %v1691
  %v1693 = vpop.f32.mrf.mxu0
  %v1694 = vadd.f32 0.0, %v1693
  %v1695 = vpop.f32.mrf.mxu0
  %v1696 = vpop.f32.mrf.mxu0
  %1697 = vdwg.mxu0
  %v1698 = vadd.f32 %v1611, %v1651
  %v1699 = vadd.f32 %v1612, %v1653
  %v1700 = vadd.f32 %v1613, %v1692
  %v1701 = vadd.f32 %v1614, %v1694
  %v1702 = vxor.u32 %v1698, 2147483648
  %v1703 = vmul.f32 %v1702, 1.442695
  %v1704 = vpow.pop %v1703
  %v1705 = vadd.f32 %v1704, 1.0
  %v1706 = vrcp.pop %v1705
  %v1707 = vmul.f32 1.0, %v1706
  %v1708 = vxor.u32 %v1699, 2147483648
  %v1709 = vmul.f32 %v1708, 1.442695
  %v1710 = vpow.pop %v1709
  %v1711 = vadd.f32 %v1710, 1.0
  %v1712 = vrcp.pop %v1711
  %v1713 = vmul.f32 1.0, %v1712
  %v1714 = vtanh.pop %v1700
  %v1715 = vxor.u32 %v1701, 2147483648
  %v1716 = vmul.f32 %v1715, 1.442695
  %v1717 = vpow.pop %v1716
  %v1718 = vadd.f32 %v1717, 1.0
  %v1719 = vrcp.pop %v1718
  %v1720 = vmul.f32 1.0, %v1719
  %v1721 = vmul.f32 %v1713, %v1607
  %v1722 = vmul.f32 %v1707, %v1714
  %v1723 = vadd.f32 %v1721, %v1722
  %v1724 = vtanh.pop %v1723
  %v1725 = vmul.f32 %v1720, %v1724
  %1726 = vst [vmem:[#allocation3 + $0x40] sm:$0xff] %v1725
  %v1727 = vld [vmem:[#allocation2 + $0x120] sm:$0xff]
  %v1728 = vld [vmem:[#allocation2 + $0x128] sm:$0xff]
  %v1729 = vld [vmem:[#allocation2 + $0x130] sm:$0xff]
  %v1730 = vld [vmem:[#allocation2 + $0x138] sm:$0xff]
  %v1731 = vpack.c.bf16 %v1725, %v1725
  %1732 = vmatprep.subr.bf16.mxu0 %v769
  %1733 = vmatpush1.bf16.msra.mxu0 %v768
  %1734 = vmatprep.subr.bf16.mxu0 %v765
  %1735 = vmatpush1.bf16.msra.mxu0 %v764
  %1736 = vmatprep.subr.bf16.mxu0 %v761
  %1737 = vmatpush1.bf16.msra.mxu0 %v760
  %1738 = vmatprep.subr.bf16.mxu0 %v757
  %1739 = vmatpush1.bf16.msra.mxu0 %v756
  %1740 = vmatprep.subr.bf16.mxu0 %v753
  %1741 = vmatpush1.bf16.msra.mxu0 %v752
  %1742 = vmatprep.subr.bf16.mxu0 %v749
  %1743 = vmatpush1.bf16.msra.mxu0 %v748
  %1744 = vmatprep.subr.bf16.mxu0 %v745
  %1745 = vmatpush1.bf16.msra.mxu0 %v744
  %1746 = vmatprep.subr.bf16.mxu0 %v741
  %1747 = vmatpush1.bf16.msra.mxu0 %v740
  %1748 = vmatprep.subr.bf16.mxu0 0
  %1749 = vmatpush2.bf16.msra.mxu0 0
  %1750 = vmatprep.subr.bf16.mxu0 0
  %1751 = vmatpush2.bf16.msra.mxu0 0
  %1752 = vmatprep.subr.bf16.mxu0 0
  %1753 = vmatpush2.bf16.msra.mxu0 0
  %1754 = vmatprep.subr.bf16.mxu0 0
  %1755 = vmatpush2.bf16.msra.mxu0 0
  %1756 = vmatprep.subr.bf16.mxu0 0
  %1757 = vmatpush2.bf16.msra.mxu0 0
  %1758 = vmatprep.subr.bf16.mxu0 0
  %1759 = vmatpush2.bf16.msra.mxu0 0
  %1760 = vmatprep.subr.bf16.mxu0 0
  %1761 = vmatpush2.bf16.msra.mxu0 0
  %1762 = vmatprep.subr.bf16.mxu0 0
  %1763 = vmatpush2.bf16.msra.mxu0 0
  %1764 = vmatprep.mubr.bf16.mxu0 0
  %1765 = vmatmul.mubr.bf16.gmra.mxu0 %v1731
  %v1766 = vpop.f32.mrf.mxu0
  %v1767 = vadd.f32 0.0, %v1766
  %v1768 = vpop.f32.mrf.mxu0
  %v1769 = vadd.f32 0.0, %v1768
  %v1770 = vpop.f32.mrf.mxu0
  %v1771 = vpop.f32.mrf.mxu0
  %1772 = vdwg.mxu0
  %1773 = vmatprep.subr.bf16.mxu0 %v771
  %1774 = vmatpush1.bf16.msra.mxu0 %v770
  %1775 = vmatprep.subr.bf16.mxu0 %v767
  %1776 = vmatpush1.bf16.msra.mxu0 %v766
  %1777 = vmatprep.subr.bf16.mxu0 %v763
  %1778 = vmatpush1.bf16.msra.mxu0 %v762
  %1779 = vmatprep.subr.bf16.mxu0 %v759
  %1780 = vmatpush1.bf16.msra.mxu0 %v758
  %1781 = vmatprep.subr.bf16.mxu0 %v755
  %1782 = vmatpush1.bf16.msra.mxu0 %v754
  %1783 = vmatprep.subr.bf16.mxu0 %v751
  %1784 = vmatpush1.bf16.msra.mxu0 %v750
  %1785 = vmatprep.subr.bf16.mxu0 %v747
  %1786 = vmatpush1.bf16.msra.mxu0 %v746
  %1787 = vmatprep.subr.bf16.mxu0 %v743
  %1788 = vmatpush1.bf16.msra.mxu0 %v742
  %1789 = vmatprep.subr.bf16.mxu0 0
  %1790 = vmatpush2.bf16.msra.mxu0 0
  %1791 = vmatprep.subr.bf16.mxu0 0
  %1792 = vmatpush2.bf16.msra.mxu0 0
  %1793 = vmatprep.subr.bf16.mxu0 0
  %1794 = vmatpush2.bf16.msra.mxu0 0
  %1795 = vmatprep.subr.bf16.mxu0 0
  %1796 = vmatpush2.bf16.msra.mxu0 0
  %1797 = vmatprep.subr.bf16.mxu0 0
  %1798 = vmatpush2.bf16.msra.mxu0 0
  %1799 = vmatprep.subr.bf16.mxu0 0
  %1800 = vmatpush2.bf16.msra.mxu0 0
  %1801 = vmatprep.subr.bf16.mxu0 0
  %1802 = vmatpush2.bf16.msra.mxu0 0
  %1803 = vmatprep.subr.bf16.mxu0 0
  %1804 = vmatpush2.bf16.msra.mxu0 0
  %1805 = vmatprep.mubr.bf16.mxu0 0
  %1806 = vmatmul.mubr.bf16.gmra.mxu0 %v1731
  %v1807 = vpop.f32.mrf.mxu0
  %v1808 = vadd.f32 0.0, %v1807
  %v1809 = vpop.f32.mrf.mxu0
  %v1810 = vadd.f32 0.0, %v1809
  %v1811 = vpop.f32.mrf.mxu0
  %v1812 = vpop.f32.mrf.mxu0
  %1813 = vdwg.mxu0
  %v1814 = vadd.f32 %v1727, %v1767
  %v1815 = vadd.f32 %v1728, %v1769
  %v1816 = vadd.f32 %v1729, %v1808
  %v1817 = vadd.f32 %v1730, %v1810
  %v1818 = vxor.u32 %v1814, 2147483648
  %v1819 = vmul.f32 %v1818, 1.442695
  %v1820 = vpow.pop %v1819
  %v1821 = vadd.f32 %v1820, 1.0
  %v1822 = vrcp.pop %v1821
  %v1823 = vmul.f32 1.0, %v1822
  %v1824 = vxor.u32 %v1815, 2147483648
  %v1825 = vmul.f32 %v1824, 1.442695
  %v1826 = vpow.pop %v1825
  %v1827 = vadd.f32 %v1826, 1.0
  %v1828 = vrcp.pop %v1827
  %v1829 = vmul.f32 1.0, %v1828
  %v1830 = vtanh.pop %v1816
  %v1831 = vxor.u32 %v1817, 2147483648
  %v1832 = vmul.f32 %v1831, 1.442695
  %v1833 = vpow.pop %v1832
  %v1834 = vadd.f32 %v1833, 1.0
  %v1835 = vrcp.pop %v1834
  %v1836 = vmul.f32 1.0, %v1835
  %v1837 = vmul.f32 %v1829, %v1723
  %v1838 = vmul.f32 %v1823, %v1830
  %v1839 = vadd.f32 %v1837, %v1838
  %v1840 = vtanh.pop %v1839
  %v1841 = vmul.f32 %v1836, %v1840
  %1842 = vst [vmem:[#allocation3 + $0x48] sm:$0xff] %v1841
  %v1843 = vld [vmem:[#allocation2 + $0x140] sm:$0xff]
  %v1844 = vld [vmem:[#allocation2 + $0x148] sm:$0xff]
  %v1845 = vld [vmem:[#allocation2 + $0x150] sm:$0xff]
  %v1846 = vld [vmem:[#allocation2 + $0x158] sm:$0xff]
  %v1847 = vpack.c.bf16 %v1841, %v1841
  %1848 = vmatprep.subr.bf16.mxu0 %v769
  %1849 = vmatpush1.bf16.msra.mxu0 %v768
  %1850 = vmatprep.subr.bf16.mxu0 %v765
  %1851 = vmatpush1.bf16.msra.mxu0 %v764
  %1852 = vmatprep.subr.bf16.mxu0 %v761
  %1853 = vmatpush1.bf16.msra.mxu0 %v760
  %1854 = vmatprep.subr.bf16.mxu0 %v757
  %1855 = vmatpush1.bf16.msra.mxu0 %v756
  %1856 = vmatprep.subr.bf16.mxu0 %v753
  %1857 = vmatpush1.bf16.msra.mxu0 %v752
  %1858 = vmatprep.subr.bf16.mxu0 %v749
  %1859 = vmatpush1.bf16.msra.mxu0 %v748
  %1860 = vmatprep.subr.bf16.mxu0 %v745
  %1861 = vmatpush1.bf16.msra.mxu0 %v744
  %1862 = vmatprep.subr.bf16.mxu0 %v741
  %1863 = vmatpush1.bf16.msra.mxu0 %v740
  %1864 = vmatprep.subr.bf16.mxu0 0
  %1865 = vmatpush2.bf16.msra.mxu0 0
  %1866 = vmatprep.subr.bf16.mxu0 0
  %1867 = vmatpush2.bf16.msra.mxu0 0
  %1868 = vmatprep.subr.bf16.mxu0 0
  %1869 = vmatpush2.bf16.msra.mxu0 0
  %1870 = vmatprep.subr.bf16.mxu0 0
  %1871 = vmatpush2.bf16.msra.mxu0 0
  %1872 = vmatprep.subr.bf16.mxu0 0
  %1873 = vmatpush2.bf16.msra.mxu0 0
  %1874 = vmatprep.subr.bf16.mxu0 0
  %1875 = vmatpush2.bf16.msra.mxu0 0
  %1876 = vmatprep.subr.bf16.mxu0 0
  %1877 = vmatpush2.bf16.msra.mxu0 0
  %1878 = vmatprep.subr.bf16.mxu0 0
  %1879 = vmatpush2.bf16.msra.mxu0 0
  %1880 = vmatprep.mubr.bf16.mxu0 0
  %1881 = vmatmul.mubr.bf16.gmra.mxu0 %v1847
  %v1882 = vpop.f32.mrf.mxu0
  %v1883 = vadd.f32 0.0, %v1882
  %v1884 = vpop.f32.mrf.mxu0
  %v1885 = vadd.f32 0.0, %v1884
  %v1886 = vpop.f32.mrf.mxu0
  %v1887 = vpop.f32.mrf.mxu0
  %1888 = vdwg.mxu0
  %1889 = vmatprep.subr.bf16.mxu0 %v771
  %1890 = vmatpush1.bf16.msra.mxu0 %v770
  %1891 = vmatprep.subr.bf16.mxu0 %v767
  %1892 = vmatpush1.bf16.msra.mxu0 %v766
  %1893 = vmatprep.subr.bf16.mxu0 %v763
  %1894 = vmatpush1.bf16.msra.mxu0 %v762
  %1895 = vmatprep.subr.bf16.mxu0 %v759
  %1896 = vmatpush1.bf16.msra.mxu0 %v758
  %1897 = vmatprep.subr.bf16.mxu0 %v755
  %1898 = vmatpush1.bf16.msra.mxu0 %v754
  %1899 = vmatprep.subr.bf16.mxu0 %v751
  %1900 = vmatpush1.bf16.msra.mxu0 %v750
  %1901 = vmatprep.subr.bf16.mxu0 %v747
  %1902 = vmatpush1.bf16.msra.mxu0 %v746
  %1903 = vmatprep.subr.bf16.mxu0 %v743
  %1904 = vmatpush1.bf16.msra.mxu0 %v742
  %1905 = vmatprep.subr.bf16.mxu0 0
  %1906 = vmatpush2.bf16.msra.mxu0 0
  %1907 = vmatprep.subr.bf16.mxu0 0
  %1908 = vmatpush2.bf16.msra.mxu0 0
  %1909 = vmatprep.subr.bf16.mxu0 0
  %1910 = vmatpush2.bf16.msra.mxu0 0
  %1911 = vmatprep.subr.bf16.mxu0 0
  %1912 = vmatpush2.bf16.msra.mxu0 0
  %1913 = vmatprep.subr.bf16.mxu0 0
  %1914 = vmatpush2.bf16.msra.mxu0 0
  %1915 = vmatprep.subr.bf16.mxu0 0
  %1916 = vmatpush2.bf16.msra.mxu0 0
  %1917 = vmatprep.subr.bf16.mxu0 0
  %1918 = vmatpush2.bf16.msra.mxu0 0
  %1919 = vmatprep.subr.bf16.mxu0 0
  %1920 = vmatpush2.bf16.msra.mxu0 0
  %1921 = vmatprep.mubr.bf16.mxu0 0
  %1922 = vmatmul.mubr.bf16.gmra.mxu0 %v1847
  %v1923 = vpop.f32.mrf.mxu0
  %v1924 = vadd.f32 0.0, %v1923
  %v1925 = vpop.f32.mrf.mxu0
  %v1926 = vadd.f32 0.0, %v1925
  %v1927 = vpop.f32.mrf.mxu0
  %v1928 = vpop.f32.mrf.mxu0
  %1929 = vdwg.mxu0
  %v1930 = vadd.f32 %v1843, %v1883
  %v1931 = vadd.f32 %v1844, %v1885
  %v1932 = vadd.f32 %v1845, %v1924
  %v1933 = vadd.f32 %v1846, %v1926
  %v1934 = vxor.u32 %v1930, 2147483648
  %v1935 = vmul.f32 %v1934, 1.442695
  %v1936 = vpow.pop %v1935
  %v1937 = vadd.f32 %v1936, 1.0
  %v1938 = vrcp.pop %v1937
  %v1939 = vmul.f32 1.0, %v1938
  %v1940 = vxor.u32 %v1931, 2147483648
  %v1941 = vmul.f32 %v1940, 1.442695
  %v1942 = vpow.pop %v1941
  %v1943 = vadd.f32 %v1942, 1.0
  %v1944 = vrcp.pop %v1943
  %v1945 = vmul.f32 1.0, %v1944
  %v1946 = vtanh.pop %v1932
  %v1947 = vxor.u32 %v1933, 2147483648
  %v1948 = vmul.f32 %v1947, 1.442695
  %v1949 = vpow.pop %v1948
  %v1950 = vadd.f32 %v1949, 1.0
  %v1951 = vrcp.pop %v1950
  %v1952 = vmul.f32 1.0, %v1951
  %v1953 = vmul.f32 %v1945, %v1839
  %v1954 = vmul.f32 %v1939, %v1946
  %v1955 = vadd.f32 %v1953, %v1954
  %v1956 = vtanh.pop %v1955
  %v1957 = vmul.f32 %v1952, %v1956
  %1958 = vst [vmem:[#allocation3 + $0x50] sm:$0xff] %v1957
  %v1959 = vld [vmem:[#allocation2 + $0x160] sm:$0xff]
  %v1960 = vld [vmem:[#allocation2 + $0x168] sm:$0xff]
  %v1961 = vld [vmem:[#allocation2 + $0x170] sm:$0xff]
  %v1962 = vld [vmem:[#allocation2 + $0x178] sm:$0xff]
  %v1963 = vpack.c.bf16 %v1957, %v1957
  %1964 = vmatprep.subr.bf16.mxu0 %v769
  %1965 = vmatpush1.bf16.msra.mxu0 %v768
  %1966 = vmatprep.subr.bf16.mxu0 %v765
  %1967 = vmatpush1.bf16.msra.mxu0 %v764
  %1968 = vmatprep.subr.bf16.mxu0 %v761
  %1969 = vmatpush1.bf16.msra.mxu0 %v760
  %1970 = vmatprep.subr.bf16.mxu0 %v757
  %1971 = vmatpush1.bf16.msra.mxu0 %v756
  %1972 = vmatprep.subr.bf16.mxu0 %v753
  %1973 = vmatpush1.bf16.msra.mxu0 %v752
  %1974 = vmatprep.subr.bf16.mxu0 %v749
  %1975 = vmatpush1.bf16.msra.mxu0 %v748
  %1976 = vmatprep.subr.bf16.mxu0 %v745
  %1977 = vmatpush1.bf16.msra.mxu0 %v744
  %1978 = vmatprep.subr.bf16.mxu0 %v741
  %1979 = vmatpush1.bf16.msra.mxu0 %v740
  %1980 = vmatprep.subr.bf16.mxu0 0
  %1981 = vmatpush2.bf16.msra.mxu0 0
  %1982 = vmatprep.subr.bf16.mxu0 0
  %1983 = vmatpush2.bf16.msra.mxu0 0
  %1984 = vmatprep.subr.bf16.mxu0 0
  %1985 = vmatpush2.bf16.msra.mxu0 0
  %1986 = vmatprep.subr.bf16.mxu0 0
  %1987 = vmatpush2.bf16.msra.mxu0 0
  %1988 = vmatprep.subr.bf16.mxu0 0
  %1989 = vmatpush2.bf16.msra.mxu0 0
  %1990 = vmatprep.subr.bf16.mxu0 0
  %1991 = vmatpush2.bf16.msra.mxu0 0
  %1992 = vmatprep.subr.bf16.mxu0 0
  %1993 = vmatpush2.bf16.msra.mxu0 0
  %1994 = vmatprep.subr.bf16.mxu0 0
  %1995 = vmatpush2.bf16.msra.mxu0 0
  %1996 = vmatprep.mubr.bf16.mxu0 0
  %1997 = vmatmul.mubr.bf16.gmra.mxu0 %v1963
  %v1998 = vpop.f32.mrf.mxu0
  %v1999 = vadd.f32 0.0, %v1998
  %v2000 = vpop.f32.mrf.mxu0
  %v2001 = vadd.f32 0.0, %v2000
  %v2002 = vpop.f32.mrf.mxu0
  %v2003 = vpop.f32.mrf.mxu0
  %2004 = vdwg.mxu0
  %2005 = vmatprep.subr.bf16.mxu0 %v771
  %2006 = vmatpush1.bf16.msra.mxu0 %v770
  %2007 = vmatprep.subr.bf16.mxu0 %v767
  %2008 = vmatpush1.bf16.msra.mxu0 %v766
  %2009 = vmatprep.subr.bf16.mxu0 %v763
  %2010 = vmatpush1.bf16.msra.mxu0 %v762
  %2011 = vmatprep.subr.bf16.mxu0 %v759
  %2012 = vmatpush1.bf16.msra.mxu0 %v758
  %2013 = vmatprep.subr.bf16.mxu0 %v755
  %2014 = vmatpush1.bf16.msra.mxu0 %v754
  %2015 = vmatprep.subr.bf16.mxu0 %v751
  %2016 = vmatpush1.bf16.msra.mxu0 %v750
  %2017 = vmatprep.subr.bf16.mxu0 %v747
  %2018 = vmatpush1.bf16.msra.mxu0 %v746
  %2019 = vmatprep.subr.bf16.mxu0 %v743
  %2020 = vmatpush1.bf16.msra.mxu0 %v742
  %2021 = vmatprep.subr.bf16.mxu0 0
  %2022 = vmatpush2.bf16.msra.mxu0 0
  %2023 = vmatprep.subr.bf16.mxu0 0
  %2024 = vmatpush2.bf16.msra.mxu0 0
  %2025 = vmatprep.subr.bf16.mxu0 0
  %2026 = vmatpush2.bf16.msra.mxu0 0
  %2027 = vmatprep.subr.bf16.mxu0 0
  %2028 = vmatpush2.bf16.msra.mxu0 0
  %2029 = vmatprep.subr.bf16.mxu0 0
  %2030 = vmatpush2.bf16.msra.mxu0 0
  %2031 = vmatprep.subr.bf16.mxu0 0
  %2032 = vmatpush2.bf16.msra.mxu0 0
  %2033 = vmatprep.subr.bf16.mxu0 0
  %2034 = vmatpush2.bf16.msra.mxu0 0
  %2035 = vmatprep.subr.bf16.mxu0 0
  %2036 = vmatpush2.bf16.msra.mxu0 0
  %2037 = vmatprep.mubr.bf16.mxu0 0
  %2038 = vmatmul.mubr.bf16.gmra.mxu0 %v1963
  %v2039 = vpop.f32.mrf.mxu0
  %v2040 = vadd.f32 0.0, %v2039
  %v2041 = vpop.f32.mrf.mxu0
  %v2042 = vadd.f32 0.0, %v2041
  %v2043 = vpop.f32.mrf.mxu0
  %v2044 = vpop.f32.mrf.mxu0
  %2045 = vdwg.mxu0
  %v2046 = vadd.f32 %v1959, %v1999
  %v2047 = vadd.f32 %v1960, %v2001
  %v2048 = vadd.f32 %v1961, %v2040
  %v2049 = vadd.f32 %v1962, %v2042
  %v2050 = vxor.u32 %v2046, 2147483648
  %v2051 = vmul.f32 %v2050, 1.442695
  %v2052 = vpow.pop %v2051
  %v2053 = vadd.f32 %v2052, 1.0
  %v2054 = vrcp.pop %v2053
  %v2055 = vmul.f32 1.0, %v2054
  %v2056 = vxor.u32 %v2047, 2147483648
  %v2057 = vmul.f32 %v2056, 1.442695
  %v2058 = vpow.pop %v2057
  %v2059 = vadd.f32 %v2058, 1.0
  %v2060 = vrcp.pop %v2059
  %v2061 = vmul.f32 1.0, %v2060
  %v2062 = vtanh.pop %v2048
  %v2063 = vxor.u32 %v2049, 2147483648
  %v2064 = vmul.f32 %v2063, 1.442695
  %v2065 = vpow.pop %v2064
  %v2066 = vadd.f32 %v2065, 1.0
  %v2067 = vrcp.pop %v2066
  %v2068 = vmul.f32 1.0, %v2067
  %v2069 = vmul.f32 %v2061, %v1955
  %v2070 = vmul.f32 %v2055, %v2062
  %v2071 = vadd.f32 %v2069, %v2070
  %v2072 = vtanh.pop %v2071
  %v2073 = vmul.f32 %v2068, %v2072
  %2074 = vst [vmem:[#allocation3 + $0x58] sm:$0xff] %v2073
  %v2075 = vld [vmem:[#allocation2 + $0x180] sm:$0xff]
  %v2076 = vld [vmem:[#allocation2 + $0x188] sm:$0xff]
  %v2077 = vld [vmem:[#allocation2 + $0x190] sm:$0xff]
  %v2078 = vld [vmem:[#allocation2 + $0x198] sm:$0xff]
  %v2079 = vpack.c.bf16 %v2073, %v2073
  %2080 = vmatprep.subr.bf16.mxu0 %v769
  %2081 = vmatpush1.bf16.msra.mxu0 %v768
  %2082 = vmatprep.subr.bf16.mxu0 %v765
  %2083 = vmatpush1.bf16.msra.mxu0 %v764
  %2084 = vmatprep.subr.bf16.mxu0 %v761
  %2085 = vmatpush1.bf16.msra.mxu0 %v760
  %2086 = vmatprep.subr.bf16.mxu0 %v757
  %2087 = vmatpush1.bf16.msra.mxu0 %v756
  %2088 = vmatprep.subr.bf16.mxu0 %v753
  %2089 = vmatpush1.bf16.msra.mxu0 %v752
  %2090 = vmatprep.subr.bf16.mxu0 %v749
  %2091 = vmatpush1.bf16.msra.mxu0 %v748
  %2092 = vmatprep.subr.bf16.mxu0 %v745
  %2093 = vmatpush1.bf16.msra.mxu0 %v744
  %2094 = vmatprep.subr.bf16.mxu0 %v741
  %2095 = vmatpush1.bf16.msra.mxu0 %v740
  %2096 = vmatprep.subr.bf16.mxu0 0
  %2097 = vmatpush2.bf16.msra.mxu0 0
  %2098 = vmatprep.subr.bf16.mxu0 0
  %2099 = vmatpush2.bf16.msra.mxu0 0
  %2100 = vmatprep.subr.bf16.mxu0 0
  %2101 = vmatpush2.bf16.msra.mxu0 0
  %2102 = vmatprep.subr.bf16.mxu0 0
  %2103 = vmatpush2.bf16.msra.mxu0 0
  %2104 = vmatprep.subr.bf16.mxu0 0
  %2105 = vmatpush2.bf16.msra.mxu0 0
  %2106 = vmatprep.subr.bf16.mxu0 0
  %2107 = vmatpush2.bf16.msra.mxu0 0
  %2108 = vmatprep.subr.bf16.mxu0 0
  %2109 = vmatpush2.bf16.msra.mxu0 0
  %2110 = vmatprep.subr.bf16.mxu0 0
  %2111 = vmatpush2.bf16.msra.mxu0 0
  %2112 = vmatprep.mubr.bf16.mxu0 0
  %2113 = vmatmul.mubr.bf16.gmra.mxu0 %v2079
  %v2114 = vpop.f32.mrf.mxu0
  %v2115 = vadd.f32 0.0, %v2114
  %v2116 = vpop.f32.mrf.mxu0
  %v2117 = vadd.f32 0.0, %v2116
  %v2118 = vpop.f32.mrf.mxu0
  %v2119 = vpop.f32.mrf.mxu0
  %2120 = vdwg.mxu0
  %2121 = vmatprep.subr.bf16.mxu0 %v771
  %2122 = vmatpush1.bf16.msra.mxu0 %v770
  %2123 = vmatprep.subr.bf16.mxu0 %v767
  %2124 = vmatpush1.bf16.msra.mxu0 %v766
  %2125 = vmatprep.subr.bf16.mxu0 %v763
  %2126 = vmatpush1.bf16.msra.mxu0 %v762
  %2127 = vmatprep.subr.bf16.mxu0 %v759
  %2128 = vmatpush1.bf16.msra.mxu0 %v758
  %2129 = vmatprep.subr.bf16.mxu0 %v755
  %2130 = vmatpush1.bf16.msra.mxu0 %v754
  %2131 = vmatprep.subr.bf16.mxu0 %v751
  %2132 = vmatpush1.bf16.msra.mxu0 %v750
  %2133 = vmatprep.subr.bf16.mxu0 %v747
  %2134 = vmatpush1.bf16.msra.mxu0 %v746
  %2135 = vmatprep.subr.bf16.mxu0 %v743
  %2136 = vmatpush1.bf16.msra.mxu0 %v742
  %2137 = vmatprep.subr.bf16.mxu0 0
  %2138 = vmatpush2.bf16.msra.mxu0 0
  %2139 = vmatprep.subr.bf16.mxu0 0
  %2140 = vmatpush2.bf16.msra.mxu0 0
  %2141 = vmatprep.subr.bf16.mxu0 0
  %2142 = vmatpush2.bf16.msra.mxu0 0
  %2143 = vmatprep.subr.bf16.mxu0 0
  %2144 = vmatpush2.bf16.msra.mxu0 0
  %2145 = vmatprep.subr.bf16.mxu0 0
  %2146 = vmatpush2.bf16.msra.mxu0 0
  %2147 = vmatprep.subr.bf16.mxu0 0
  %2148 = vmatpush2.bf16.msra.mxu0 0
  %2149 = vmatprep.subr.bf16.mxu0 0
  %2150 = vmatpush2.bf16.msra.mxu0 0
  %2151 = vmatprep.subr.bf16.mxu0 0
  %2152 = vmatpush2.bf16.msra.mxu0 0
  %2153 = vmatprep.mubr.bf16.mxu0 0
  %2154 = vmatmul.mubr.bf16.gmra.mxu0 %v2079
  %v2155 = vpop.f32.mrf.mxu0
  %v2156 = vadd.f32 0.0, %v2155
  %v2157 = vpop.f32.mrf.mxu0
  %v2158 = vadd.f32 0.0, %v2157
  %v2159 = vpop.f32.mrf.mxu0
  %v2160 = vpop.f32.mrf.mxu0
  %2161 = vdwg.mxu0
  %v2162 = vadd.f32 %v2075, %v2115
  %v2163 = vadd.f32 %v2076, %v2117
  %v2164 = vadd.f32 %v2077, %v2156
  %v2165 = vadd.f32 %v2078, %v2158
  %v2166 = vxor.u32 %v2162, 2147483648
  %v2167 = vmul.f32 %v2166, 1.442695
  %v2168 = vpow.pop %v2167
  %v2169 = vadd.f32 %v2168, 1.0
  %v2170 = vrcp.pop %v2169
  %v2171 = vmul.f32 1.0, %v2170
  %v2172 = vxor.u32 %v2163, 2147483648
  %v2173 = vmul.f32 %v2172, 1.442695
  %v2174 = vpow.pop %v2173
  %v2175 = vadd.f32 %v2174, 1.0
  %v2176 = vrcp.pop %v2175
  %v2177 = vmul.f32 1.0, %v2176
  %v2178 = vtanh.pop %v2164
  %v2179 = vxor.u32 %v2165, 2147483648
  %v2180 = vmul.f32 %v2179, 1.442695
  %v2181 = vpow.pop %v2180
  %v2182 = vadd.f32 %v2181, 1.0
  %v2183 = vrcp.pop %v2182
  %v2184 = vmul.f32 1.0, %v2183
  %v2185 = vmul.f32 %v2177, %v2071
  %v2186 = vmul.f32 %v2171, %v2178
  %v2187 = vadd.f32 %v2185, %v2186
  %v2188 = vtanh.pop %v2187
  %v2189 = vmul.f32 %v2184, %v2188
  %2190 = vst [vmem:[#allocation3 + $0x60] sm:$0xff] %v2189
  %v2191 = vld [vmem:[#allocation2 + $0x1a0] sm:$0xff]
  %v2192 = vld [vmem:[#allocation2 + $0x1a8] sm:$0xff]
  %v2193 = vld [vmem:[#allocation2 + $0x1b0] sm:$0xff]
  %v2194 = vld [vmem:[#allocation2 + $0x1b8] sm:$0xff]
  %v2195 = vpack.c.bf16 %v2189, %v2189
  %2196 = vmatprep.subr.bf16.mxu0 %v769
  %2197 = vmatpush1.bf16.msra.mxu0 %v768
  %2198 = vmatprep.subr.bf16.mxu0 %v765
  %2199 = vmatpush1.bf16.msra.mxu0 %v764
  %2200 = vmatprep.subr.bf16.mxu0 %v761
  %2201 = vmatpush1.bf16.msra.mxu0 %v760
  %2202 = vmatprep.subr.bf16.mxu0 %v757
  %2203 = vmatpush1.bf16.msra.mxu0 %v756
  %2204 = vmatprep.subr.bf16.mxu0 %v753
  %2205 = vmatpush1.bf16.msra.mxu0 %v752
  %2206 = vmatprep.subr.bf16.mxu0 %v749
  %2207 = vmatpush1.bf16.msra.mxu0 %v748
  %2208 = vmatprep.subr.bf16.mxu0 %v745
  %2209 = vmatpush1.bf16.msra.mxu0 %v744
  %2210 = vmatprep.subr.bf16.mxu0 %v741
  %2211 = vmatpush1.bf16.msra.mxu0 %v740
  %2212 = vmatprep.subr.bf16.mxu0 0
  %2213 = vmatpush2.bf16.msra.mxu0 0
  %2214 = vmatprep.subr.bf16.mxu0 0
  %2215 = vmatpush2.bf16.msra.mxu0 0
  %2216 = vmatprep.subr.bf16.mxu0 0
  %2217 = vmatpush2.bf16.msra.mxu0 0
  %2218 = vmatprep.subr.bf16.mxu0 0
  %2219 = vmatpush2.bf16.msra.mxu0 0
  %2220 = vmatprep.subr.bf16.mxu0 0
  %2221 = vmatpush2.bf16.msra.mxu0 0
  %2222 = vmatprep.subr.bf16.mxu0 0
  %2223 = vmatpush2.bf16.msra.mxu0 0
  %2224 = vmatprep.subr.bf16.mxu0 0
  %2225 = vmatpush2.bf16.msra.mxu0 0
  %2226 = vmatprep.subr.bf16.mxu0 0
  %2227 = vmatpush2.bf16.msra.mxu0 0
  %2228 = vmatprep.mubr.bf16.mxu0 0
  %2229 = vmatmul.mubr.bf16.gmra.mxu0 %v2195
  %v2230 = vpop.f32.mrf.mxu0
  %v2231 = vadd.f32 0.0, %v2230
  %v2232 = vpop.f32.mrf.mxu0
  %v2233 = vadd.f32 0.0, %v2232
  %v2234 = vpop.f32.mrf.mxu0
  %v2235 = vpop.f32.mrf.mxu0
  %2236 = vdwg.mxu0
  %2237 = vmatprep.subr.bf16.mxu0 %v771
  %2238 = vmatpush1.bf16.msra.mxu0 %v770
  %2239 = vmatprep.subr.bf16.mxu0 %v767
  %2240 = vmatpush1.bf16.msra.mxu0 %v766
  %2241 = vmatprep.subr.bf16.mxu0 %v763
  %2242 = vmatpush1.bf16.msra.mxu0 %v762
  %2243 = vmatprep.subr.bf16.mxu0 %v759
  %2244 = vmatpush1.bf16.msra.mxu0 %v758
  %2245 = vmatprep.subr.bf16.mxu0 %v755
  %2246 = vmatpush1.bf16.msra.mxu0 %v754
  %2247 = vmatprep.subr.bf16.mxu0 %v751
  %2248 = vmatpush1.bf16.msra.mxu0 %v750
  %2249 = vmatprep.subr.bf16.mxu0 %v747
  %2250 = vmatpush1.bf16.msra.mxu0 %v746
  %2251 = vmatprep.subr.bf16.mxu0 %v743
  %2252 = vmatpush1.bf16.msra.mxu0 %v742
  %2253 = vmatprep.subr.bf16.mxu0 0
  %2254 = vmatpush2.bf16.msra.mxu0 0
  %2255 = vmatprep.subr.bf16.mxu0 0
  %2256 = vmatpush2.bf16.msra.mxu0 0
  %2257 = vmatprep.subr.bf16.mxu0 0
  %2258 = vmatpush2.bf16.msra.mxu0 0
  %2259 = vmatprep.subr.bf16.mxu0 0
  %2260 = vmatpush2.bf16.msra.mxu0 0
  %2261 = vmatprep.subr.bf16.mxu0 0
  %2262 = vmatpush2.bf16.msra.mxu0 0
  %2263 = vmatprep.subr.bf16.mxu0 0
  %2264 = vmatpush2.bf16.msra.mxu0 0
  %2265 = vmatprep.subr.bf16.mxu0 0
  %2266 = vmatpush2.bf16.msra.mxu0 0
  %2267 = vmatprep.subr.bf16.mxu0 0
  %2268 = vmatpush2.bf16.msra.mxu0 0
  %2269 = vmatprep.mubr.bf16.mxu0 0
  %2270 = vmatmul.mubr.bf16.gmra.mxu0 %v2195
  %v2271 = vpop.f32.mrf.mxu0
  %v2272 = vadd.f32 0.0, %v2271
  %v2273 = vpop.f32.mrf.mxu0
  %v2274 = vadd.f32 0.0, %v2273
  %v2275 = vpop.f32.mrf.mxu0
  %v2276 = vpop.f32.mrf.mxu0
  %2277 = vdwg.mxu0
  %v2278 = vadd.f32 %v2191, %v2231
  %v2279 = vadd.f32 %v2192, %v2233
  %v2280 = vadd.f32 %v2193, %v2272
  %v2281 = vadd.f32 %v2194, %v2274
  %v2282 = vxor.u32 %v2278, 2147483648
  %v2283 = vmul.f32 %v2282, 1.442695
  %v2284 = vpow.pop %v2283
  %v2285 = vadd.f32 %v2284, 1.0
  %v2286 = vrcp.pop %v2285
  %v2287 = vmul.f32 1.0, %v2286
  %v2288 = vxor.u32 %v2279, 2147483648
  %v2289 = vmul.f32 %v2288, 1.442695
  %v2290 = vpow.pop %v2289
  %v2291 = vadd.f32 %v2290, 1.0
  %v2292 = vrcp.pop %v2291
  %v2293 = vmul.f32 1.0, %v2292
  %v2294 = vtanh.pop %v2280
  %v2295 = vxor.u32 %v2281, 2147483648
  %v2296 = vmul.f32 %v2295, 1.442695
  %v2297 = vpow.pop %v2296
  %v2298 = vadd.f32 %v2297, 1.0
  %v2299 = vrcp.pop %v2298
  %v2300 = vmul.f32 1.0, %v2299
  %v2301 = vmul.f32 %v2293, %v2187
  %v2302 = vmul.f32 %v2287, %v2294
  %v2303 = vadd.f32 %v2301, %v2302
  %v2304 = vtanh.pop %v2303
  %v2305 = vmul.f32 %v2300, %v2304
  %2306 = vst [vmem:[#allocation3 + $0x68] sm:$0xff] %v2305
  %v2307 = vld [vmem:[#allocation2 + $0x1c0] sm:$0xff]
  %v2308 = vld [vmem:[#allocation2 + $0x1c8] sm:$0xff]
  %v2309 = vld [vmem:[#allocation2 + $0x1d0] sm:$0xff]
  %v2310 = vld [vmem:[#allocation2 + $0x1d8] sm:$0xff]
  %v2311 = vpack.c.bf16 %v2305, %v2305
  %2312 = vmatprep.subr.bf16.mxu0 %v769
  %2313 = vmatpush1.bf16.msra.mxu0 %v768
  %2314 = vmatprep.subr.bf16.mxu0 %v765
  %2315 = vmatpush1.bf16.msra.mxu0 %v764
  %2316 = vmatprep.subr.bf16.mxu0 %v761
  %2317 = vmatpush1.bf16.msra.mxu0 %v760
  %2318 = vmatprep.subr.bf16.mxu0 %v757
  %2319 = vmatpush1.bf16.msra.mxu0 %v756
  %2320 = vmatprep.subr.bf16.mxu0 %v753
  %2321 = vmatpush1.bf16.msra.mxu0 %v752
  %2322 = vmatprep.subr.bf16.mxu0 %v749
  %2323 = vmatpush1.bf16.msra.mxu0 %v748
  %2324 = vmatprep.subr.bf16.mxu0 %v745
  %2325 = vmatpush1.bf16.msra.mxu0 %v744
  %2326 = vmatprep.subr.bf16.mxu0 %v741
  %2327 = vmatpush1.bf16.msra.mxu0 %v740
  %2328 = vmatprep.subr.bf16.mxu0 0
  %2329 = vmatpush2.bf16.msra.mxu0 0
  %2330 = vmatprep.subr.bf16.mxu0 0
  %2331 = vmatpush2.bf16.msra.mxu0 0
  %2332 = vmatprep.subr.bf16.mxu0 0
  %2333 = vmatpush2.bf16.msra.mxu0 0
  %2334 = vmatprep.subr.bf16.mxu0 0
  %2335 = vmatpush2.bf16.msra.mxu0 0
  %2336 = vmatprep.subr.bf16.mxu0 0
  %2337 = vmatpush2.bf16.msra.mxu0 0
  %2338 = vmatprep.subr.bf16.mxu0 0
  %2339 = vmatpush2.bf16.msra.mxu0 0
  %2340 = vmatprep.subr.bf16.mxu0 0
  %2341 = vmatpush2.bf16.msra.mxu0 0
  %2342 = vmatprep.subr.bf16.mxu0 0
  %2343 = vmatpush2.bf16.msra.mxu0 0
  %2344 = vmatprep.mubr.bf16.mxu0 0
  %2345 = vmatmul.mubr.bf16.gmra.mxu0 %v2311
  %v2346 = vpop.f32.mrf.mxu0
  %v2347 = vadd.f32 0.0, %v2346
  %v2348 = vpop.f32.mrf.mxu0
  %v2349 = vadd.f32 0.0, %v2348
  %v2350 = vpop.f32.mrf.mxu0
  %v2351 = vpop.f32.mrf.mxu0
  %2352 = vdwg.mxu0
  %2353 = vmatprep.subr.bf16.mxu0 %v771
  %2354 = vmatpush1.bf16.msra.mxu0 %v770
  %2355 = vmatprep.subr.bf16.mxu0 %v767
  %2356 = vmatpush1.bf16.msra.mxu0 %v766
  %2357 = vmatprep.subr.bf16.mxu0 %v763
  %2358 = vmatpush1.bf16.msra.mxu0 %v762
  %2359 = vmatprep.subr.bf16.mxu0 %v759
  %2360 = vmatpush1.bf16.msra.mxu0 %v758
  %2361 = vmatprep.subr.bf16.mxu0 %v755
  %2362 = vmatpush1.bf16.msra.mxu0 %v754
  %2363 = vmatprep.subr.bf16.mxu0 %v751
  %2364 = vmatpush1.bf16.msra.mxu0 %v750
  %2365 = vmatprep.subr.bf16.mxu0 %v747
  %2366 = vmatpush1.bf16.msra.mxu0 %v746
  %2367 = vmatprep.subr.bf16.mxu0 %v743
  %2368 = vmatpush1.bf16.msra.mxu0 %v742
  %2369 = vmatprep.subr.bf16.mxu0 0
  %2370 = vmatpush2.bf16.msra.mxu0 0
  %2371 = vmatprep.subr.bf16.mxu0 0
  %2372 = vmatpush2.bf16.msra.mxu0 0
  %2373 = vmatprep.subr.bf16.mxu0 0
  %2374 = vmatpush2.bf16.msra.mxu0 0
  %2375 = vmatprep.subr.bf16.mxu0 0
  %2376 = vmatpush2.bf16.msra.mxu0 0
  %2377 = vmatprep.subr.bf16.mxu0 0
  %2378 = vmatpush2.bf16.msra.mxu0 0
  %2379 = vmatprep.subr.bf16.mxu0 0
  %2380 = vmatpush2.bf16.msra.mxu0 0
  %2381 = vmatprep.subr.bf16.mxu0 0
  %2382 = vmatpush2.bf16.msra.mxu0 0
  %2383 = vmatprep.subr.bf16.mxu0 0
  %2384 = vmatpush2.bf16.msra.mxu0 0
  %2385 = vmatprep.mubr.bf16.mxu0 0
  %2386 = vmatmul.mubr.bf16.gmra.mxu0 %v2311
  %v2387 = vpop.f32.mrf.mxu0
  %v2388 = vadd.f32 0.0, %v2387
  %v2389 = vpop.f32.mrf.mxu0
  %v2390 = vadd.f32 0.0, %v2389
  %v2391 = vpop.f32.mrf.mxu0
  %v2392 = vpop.f32.mrf.mxu0
  %2393 = vdwg.mxu0
  %v2394 = vadd.f32 %v2307, %v2347
  %v2395 = vadd.f32 %v2308, %v2349
  %v2396 = vadd.f32 %v2309, %v2388
  %v2397 = vadd.f32 %v2310, %v2390
  %v2398 = vxor.u32 %v2394, 2147483648
  %v2399 = vmul.f32 %v2398, 1.442695
  %v2400 = vpow.pop %v2399
  %v2401 = vadd.f32 %v2400, 1.0
  %v2402 = vrcp.pop %v2401
  %v2403 = vmul.f32 1.0, %v2402
  %v2404 = vxor.u32 %v2395, 2147483648
  %v2405 = vmul.f32 %v2404, 1.442695
  %v2406 = vpow.pop %v2405
  %v2407 = vadd.f32 %v2406, 1.0
  %v2408 = vrcp.pop %v2407
  %v2409 = vmul.f32 1.0, %v2408
  %v2410 = vtanh.pop %v2396
  %v2411 = vxor.u32 %v2397, 2147483648
  %v2412 = vmul.f32 %v2411, 1.442695
  %v2413 = vpow.pop %v2412
  %v2414 = vadd.f32 %v2413, 1.0
  %v2415 = vrcp.pop %v2414
  %v2416 = vmul.f32 1.0, %v2415
  %v2417 = vmul.f32 %v2409, %v2303
  %v2418 = vmul.f32 %v2403, %v2410
  %v2419 = vadd.f32 %v2417, %v2418
  %v2420 = vtanh.pop %v2419
  %v2421 = vmul.f32 %v2416, %v2420
  %2422 = vst [vmem:[#allocation3 + $0x70] sm:$0xff] %v2421
  %v2423 = vld [vmem:[#allocation2 + $0x1e0] sm:$0xff]
  %v2424 = vld [vmem:[#allocation2 + $0x1e8] sm:$0xff]
  %v2425 = vld [vmem:[#allocation2 + $0x1f0] sm:$0xff]
  %v2426 = vld [vmem:[#allocation2 + $0x1f8] sm:$0xff]
  %v2427 = vpack.c.bf16 %v2421, %v2421
  %2428 = vmatprep.subr.bf16.mxu0 %v769
  %2429 = vmatpush1.bf16.msra.mxu0 %v768
  %2430 = vmatprep.subr.bf16.mxu0 %v765
  %2431 = vmatpush1.bf16.msra.mxu0 %v764
  %2432 = vmatprep.subr.bf16.mxu0 %v761
  %2433 = vmatpush1.bf16.msra.mxu0 %v760
  %2434 = vmatprep.subr.bf16.mxu0 %v757
  %2435 = vmatpush1.bf16.msra.mxu0 %v756
  %2436 = vmatprep.subr.bf16.mxu0 %v753
  %2437 = vmatpush1.bf16.msra.mxu0 %v752
  %2438 = vmatprep.subr.bf16.mxu0 %v749
  %2439 = vmatpush1.bf16.msra.mxu0 %v748
  %2440 = vmatprep.subr.bf16.mxu0 %v745
  %2441 = vmatpush1.bf16.msra.mxu0 %v744
  %2442 = vmatprep.subr.bf16.mxu0 %v741
  %2443 = vmatpush1.bf16.msra.mxu0 %v740
  %2444 = vmatprep.subr.bf16.mxu0 0
  %2445 = vmatpush2.bf16.msra.mxu0 0
  %2446 = vmatprep.subr.bf16.mxu0 0
  %2447 = vmatpush2.bf16.msra.mxu0 0
  %2448 = vmatprep.subr.bf16.mxu0 0
  %2449 = vmatpush2.bf16.msra.mxu0 0
  %2450 = vmatprep.subr.bf16.mxu0 0
  %2451 = vmatpush2.bf16.msra.mxu0 0
  %2452 = vmatprep.subr.bf16.mxu0 0
  %2453 = vmatpush2.bf16.msra.mxu0 0
  %2454 = vmatprep.subr.bf16.mxu0 0
  %2455 = vmatpush2.bf16.msra.mxu0 0
  %2456 = vmatprep.subr.bf16.mxu0 0
  %2457 = vmatpush2.bf16.msra.mxu0 0
  %2458 = vmatprep.subr.bf16.mxu0 0
  %2459 = vmatpush2.bf16.msra.mxu0 0
  %2460 = vmatprep.mubr.bf16.mxu0 0
  %2461 = vmatmul.mubr.bf16.gmra.mxu0 %v2427
  %v2462 = vpop.f32.mrf.mxu0
  %v2463 = vadd.f32 0.0, %v2462
  %v2464 = vpop.f32.mrf.mxu0
  %v2465 = vadd.f32 0.0, %v2464
  %v2466 = vpop.f32.mrf.mxu0
  %v2467 = vpop.f32.mrf.mxu0
  %2468 = vdwg.mxu0
  %2469 = vmatprep.subr.bf16.mxu0 %v771
  %2470 = vmatpush1.bf16.msra.mxu0 %v770
  %2471 = vmatprep.subr.bf16.mxu0 %v767
  %2472 = vmatpush1.bf16.msra.mxu0 %v766
  %2473 = vmatprep.subr.bf16.mxu0 %v763
  %2474 = vmatpush1.bf16.msra.mxu0 %v762
  %2475 = vmatprep.subr.bf16.mxu0 %v759
  %2476 = vmatpush1.bf16.msra.mxu0 %v758
  %2477 = vmatprep.subr.bf16.mxu0 %v755
  %2478 = vmatpush1.bf16.msra.mxu0 %v754
  %2479 = vmatprep.subr.bf16.mxu0 %v751
  %2480 = vmatpush1.bf16.msra.mxu0 %v750
  %2481 = vmatprep.subr.bf16.mxu0 %v747
  %2482 = vmatpush1.bf16.msra.mxu0 %v746
  %2483 = vmatprep.subr.bf16.mxu0 %v743
  %2484 = vmatpush1.bf16.msra.mxu0 %v742
  %2485 = vmatprep.subr.bf16.mxu0 0
  %2486 = vmatpush2.bf16.msra.mxu0 0
  %2487 = vmatprep.subr.bf16.mxu0 0
  %2488 = vmatpush2.bf16.msra.mxu0 0
  %2489 = vmatprep.subr.bf16.mxu0 0
  %2490 = vmatpush2.bf16.msra.mxu0 0
  %2491 = vmatprep.subr.bf16.mxu0 0
  %2492 = vmatpush2.bf16.msra.mxu0 0
  %2493 = vmatprep.subr.bf16.mxu0 0
  %2494 = vmatpush2.bf16.msra.mxu0 0
  %2495 = vmatprep.subr.bf16.mxu0 0
  %2496 = vmatpush2.bf16.msra.mxu0 0
  %2497 = vmatprep.subr.bf16.mxu0 0
  %2498 = vmatpush2.bf16.msra.mxu0 0
  %2499 = vmatprep.subr.bf16.mxu0 0
  %2500 = vmatpush2.bf16.msra.mxu0 0
  %2501 = vmatprep.mubr.bf16.mxu0 0
  %2502 = vmatmul.mubr.bf16.gmra.mxu0 %v2427
  %v2503 = vpop.f32.mrf.mxu0
  %v2504 = vadd.f32 0.0, %v2503
  %v2505 = vpop.f32.mrf.mxu0
  %v2506 = vadd.f32 0.0, %v2505
  %v2507 = vpop.f32.mrf.mxu0
  %v2508 = vpop.f32.mrf.mxu0
  %2509 = vdwg.mxu0
  %v2510 = vadd.f32 %v2423, %v2463
  %v2511 = vadd.f32 %v2424, %v2465
  %v2512 = vadd.f32 %v2425, %v2504
  %v2513 = vadd.f32 %v2426, %v2506
  %v2514 = vxor.u32 %v2510, 2147483648
  %v2515 = vmul.f32 %v2514, 1.442695
  %v2516 = vpow.pop %v2515
  %v2517 = vadd.f32 %v2516, 1.0
  %v2518 = vrcp.pop %v2517
  %v2519 = vmul.f32 1.0, %v2518
  %v2520 = vxor.u32 %v2511, 2147483648
  %v2521 = vmul.f32 %v2520, 1.442695
  %v2522 = vpow.pop %v2521
  %v2523 = vadd.f32 %v2522, 1.0
  %v2524 = vrcp.pop %v2523
  %v2525 = vmul.f32 1.0, %v2524
  %v2526 = vtanh.pop %v2512
  %v2527 = vxor.u32 %v2513, 2147483648
  %v2528 = vmul.f32 %v2527, 1.442695
  %v2529 = vpow.pop %v2528
  %v2530 = vadd.f32 %v2529, 1.0
  %v2531 = vrcp.pop %v2530
  %v2532 = vmul.f32 1.0, %v2531
  %v2533 = vmul.f32 %v2525, %v2419
  %v2534 = vmul.f32 %v2519, %v2526
  %v2535 = vadd.f32 %v2533, %v2534
  %v2536 = vtanh.pop %v2535
  %v2537 = vmul.f32 %v2532, %v2536
  %2538 = vst [vmem:[#allocation3 + $0x78] sm:$0xff] %v2537
  %v2539 = vld [vmem:[#allocation2 + $0x200] sm:$0xff]
  %v2540 = vld [vmem:[#allocation2 + $0x208] sm:$0xff]
  %v2541 = vld [vmem:[#allocation2 + $0x210] sm:$0xff]
  %v2542 = vld [vmem:[#allocation2 + $0x218] sm:$0xff]
  %v2543 = vpack.c.bf16 %v2537, %v2537
  %2544 = vmatprep.subr.bf16.mxu0 %v769
  %2545 = vmatpush1.bf16.msra.mxu0 %v768
  %2546 = vmatprep.subr.bf16.mxu0 %v765
  %2547 = vmatpush1.bf16.msra.mxu0 %v764
  %2548 = vmatprep.subr.bf16.mxu0 %v761
  %2549 = vmatpush1.bf16.msra.mxu0 %v760
  %2550 = vmatprep.subr.bf16.mxu0 %v757
  %2551 = vmatpush1.bf16.msra.mxu0 %v756
  %2552 = vmatprep.subr.bf16.mxu0 %v753
  %2553 = vmatpush1.bf16.msra.mxu0 %v752
  %2554 = vmatprep.subr.bf16.mxu0 %v749
  %2555 = vmatpush1.bf16.msra.mxu0 %v748
  %2556 = vmatprep.subr.bf16.mxu0 %v745
  %2557 = vmatpush1.bf16.msra.mxu0 %v744
  %2558 = vmatprep.subr.bf16.mxu0 %v741
  %2559 = vmatpush1.bf16.msra.mxu0 %v740
  %2560 = vmatprep.subr.bf16.mxu0 0
  %2561 = vmatpush2.bf16.msra.mxu0 0
  %2562 = vmatprep.subr.bf16.mxu0 0
  %2563 = vmatpush2.bf16.msra.mxu0 0
  %2564 = vmatprep.subr.bf16.mxu0 0
  %2565 = vmatpush2.bf16.msra.mxu0 0
  %2566 = vmatprep.subr.bf16.mxu0 0
  %2567 = vmatpush2.bf16.msra.mxu0 0
  %2568 = vmatprep.subr.bf16.mxu0 0
  %2569 = vmatpush2.bf16.msra.mxu0 0
  %2570 = vmatprep.subr.bf16.mxu0 0
  %2571 = vmatpush2.bf16.msra.mxu0 0
  %2572 = vmatprep.subr.bf16.mxu0 0
  %2573 = vmatpush2.bf16.msra.mxu0 0
  %2574 = vmatprep.subr.bf16.mxu0 0
  %2575 = vmatpush2.bf16.msra.mxu0 0
  %2576 = vmatprep.mubr.bf16.mxu0 0
  %2577 = vmatmul.mubr.bf16.gmra.mxu0 %v2543
  %v2578 = vpop.f32.mrf.mxu0
  %v2579 = vadd.f32 0.0, %v2578
  %v2580 = vpop.f32.mrf.mxu0
  %v2581 = vadd.f32 0.0, %v2580
  %v2582 = vpop.f32.mrf.mxu0
  %v2583 = vpop.f32.mrf.mxu0
  %2584 = vdwg.mxu0
  %2585 = vmatprep.subr.bf16.mxu0 %v771
  %2586 = vmatpush1.bf16.msra.mxu0 %v770
  %2587 = vmatprep.subr.bf16.mxu0 %v767
  %2588 = vmatpush1.bf16.msra.mxu0 %v766
  %2589 = vmatprep.subr.bf16.mxu0 %v763
  %2590 = vmatpush1.bf16.msra.mxu0 %v762
  %2591 = vmatprep.subr.bf16.mxu0 %v759
  %2592 = vmatpush1.bf16.msra.mxu0 %v758
  %2593 = vmatprep.subr.bf16.mxu0 %v755
  %2594 = vmatpush1.bf16.msra.mxu0 %v754
  %2595 = vmatprep.subr.bf16.mxu0 %v751
  %2596 = vmatpush1.bf16.msra.mxu0 %v750
  %2597 = vmatprep.subr.bf16.mxu0 %v747
  %2598 = vmatpush1.bf16.msra.mxu0 %v746
  %2599 = vmatprep.subr.bf16.mxu0 %v743
  %2600 = vmatpush1.bf16.msra.mxu0 %v742
  %2601 = vmatprep.subr.bf16.mxu0 0
  %2602 = vmatpush2.bf16.msra.mxu0 0
  %2603 = vmatprep.subr.bf16.mxu0 0
  %2604 = vmatpush2.bf16.msra.mxu0 0
  %2605 = vmatprep.subr.bf16.mxu0 0
  %2606 = vmatpush2.bf16.msra.mxu0 0
  %2607 = vmatprep.subr.bf16.mxu0 0
  %2608 = vmatpush2.bf16.msra.mxu0 0
  %2609 = vmatprep.subr.bf16.mxu0 0
  %2610 = vmatpush2.bf16.msra.mxu0 0
  %2611 = vmatprep.subr.bf16.mxu0 0
  %2612 = vmatpush2.bf16.msra.mxu0 0
  %2613 = vmatprep.subr.bf16.mxu0 0
  %2614 = vmatpush2.bf16.msra.mxu0 0
  %2615 = vmatprep.subr.bf16.mxu0 0
  %2616 = vmatpush2.bf16.msra.mxu0 0
  %2617 = vmatprep.mubr.bf16.mxu0 0
  %2618 = vmatmul.mubr.bf16.gmra.mxu0 %v2543
  %v2619 = vpop.f32.mrf.mxu0
  %v2620 = vadd.f32 0.0, %v2619
  %v2621 = vpop.f32.mrf.mxu0
  %v2622 = vadd.f32 0.0, %v2621
  %v2623 = vpop.f32.mrf.mxu0
  %v2624 = vpop.f32.mrf.mxu0
  %2625 = vdwg.mxu0
  %v2626 = vadd.f32 %v2539, %v2579
  %v2627 = vadd.f32 %v2540, %v2581
  %v2628 = vadd.f32 %v2541, %v2620
  %v2629 = vadd.f32 %v2542, %v2622
  %v2630 = vxor.u32 %v2626, 2147483648
  %v2631 = vmul.f32 %v2630, 1.442695
  %v2632 = vpow.pop %v2631
  %v2633 = vadd.f32 %v2632, 1.0
  %v2634 = vrcp.pop %v2633
  %v2635 = vmul.f32 1.0, %v2634
  %v2636 = vxor.u32 %v2627, 2147483648
  %v2637 = vmul.f32 %v2636, 1.442695
  %v2638 = vpow.pop %v2637
  %v2639 = vadd.f32 %v2638, 1.0
  %v2640 = vrcp.pop %v2639
  %v2641 = vmul.f32 1.0, %v2640
  %v2642 = vtanh.pop %v2628
  %v2643 = vxor.u32 %v2629, 2147483648
  %v2644 = vmul.f32 %v2643, 1.442695
  %v2645 = vpow.pop %v2644
  %v2646 = vadd.f32 %v2645, 1.0
  %v2647 = vrcp.pop %v2646
  %v2648 = vmul.f32 1.0, %v2647
  %v2649 = vmul.f32 %v2641, %v2535
  %v2650 = vmul.f32 %v2635, %v2642
  %v2651 = vadd.f32 %v2649, %v2650
  %v2652 = vtanh.pop %v2651
  %v2653 = vmul.f32 %v2648, %v2652
  %2654 = vst [vmem:[#allocation3 + $0x80] sm:$0xff] %v2653
  %v2655 = vld [vmem:[#allocation2 + $0x220] sm:$0xff]
  %v2656 = vld [vmem:[#allocation2 + $0x228] sm:$0xff]
  %v2657 = vld [vmem:[#allocation2 + $0x230] sm:$0xff]
  %v2658 = vld [vmem:[#allocation2 + $0x238] sm:$0xff]
  %v2659 = vpack.c.bf16 %v2653, %v2653
  %2660 = vmatprep.subr.bf16.mxu0 %v769
  %2661 = vmatpush1.bf16.msra.mxu0 %v768
  %2662 = vmatprep.subr.bf16.mxu0 %v765
  %2663 = vmatpush1.bf16.msra.mxu0 %v764
  %2664 = vmatprep.subr.bf16.mxu0 %v761
  %2665 = vmatpush1.bf16.msra.mxu0 %v760
  %2666 = vmatprep.subr.bf16.mxu0 %v757
  %2667 = vmatpush1.bf16.msra.mxu0 %v756
  %2668 = vmatprep.subr.bf16.mxu0 %v753
  %2669 = vmatpush1.bf16.msra.mxu0 %v752
  %2670 = vmatprep.subr.bf16.mxu0 %v749
  %2671 = vmatpush1.bf16.msra.mxu0 %v748
  %2672 = vmatprep.subr.bf16.mxu0 %v745
  %2673 = vmatpush1.bf16.msra.mxu0 %v744
  %2674 = vmatprep.subr.bf16.mxu0 %v741
  %2675 = vmatpush1.bf16.msra.mxu0 %v740
  %2676 = vmatprep.subr.bf16.mxu0 0
  %2677 = vmatpush2.bf16.msra.mxu0 0
  %2678 = vmatprep.subr.bf16.mxu0 0
  %2679 = vmatpush2.bf16.msra.mxu0 0
  %2680 = vmatprep.subr.bf16.mxu0 0
  %2681 = vmatpush2.bf16.msra.mxu0 0
  %2682 = vmatprep.subr.bf16.mxu0 0
  %2683 = vmatpush2.bf16.msra.mxu0 0
  %2684 = vmatprep.subr.bf16.mxu0 0
  %2685 = vmatpush2.bf16.msra.mxu0 0
  %2686 = vmatprep.subr.bf16.mxu0 0
  %2687 = vmatpush2.bf16.msra.mxu0 0
  %2688 = vmatprep.subr.bf16.mxu0 0
  %2689 = vmatpush2.bf16.msra.mxu0 0
  %2690 = vmatprep.subr.bf16.mxu0 0
  %2691 = vmatpush2.bf16.msra.mxu0 0
  %2692 = vmatprep.mubr.bf16.mxu0 0
  %2693 = vmatmul.mubr.bf16.gmra.mxu0 %v2659
  %v2694 = vpop.f32.mrf.mxu0
  %v2695 = vadd.f32 0.0, %v2694
  %v2696 = vpop.f32.mrf.mxu0
  %v2697 = vadd.f32 0.0, %v2696
  %v2698 = vpop.f32.mrf.mxu0
  %v2699 = vpop.f32.mrf.mxu0
  %2700 = vdwg.mxu0
  %2701 = vmatprep.subr.bf16.mxu0 %v771
  %2702 = vmatpush1.bf16.msra.mxu0 %v770
  %2703 = vmatprep.subr.bf16.mxu0 %v767
  %2704 = vmatpush1.bf16.msra.mxu0 %v766
  %2705 = vmatprep.subr.bf16.mxu0 %v763
  %2706 = vmatpush1.bf16.msra.mxu0 %v762
  %2707 = vmatprep.subr.bf16.mxu0 %v759
  %2708 = vmatpush1.bf16.msra.mxu0 %v758
  %2709 = vmatprep.subr.bf16.mxu0 %v755
  %2710 = vmatpush1.bf16.msra.mxu0 %v754
  %2711 = vmatprep.subr.bf16.mxu0 %v751
  %2712 = vmatpush1.bf16.msra.mxu0 %v750
  %2713 = vmatprep.subr.bf16.mxu0 %v747
  %2714 = vmatpush1.bf16.msra.mxu0 %v746
  %2715 = vmatprep.subr.bf16.mxu0 %v743
  %2716 = vmatpush1.bf16.msra.mxu0 %v742
  %2717 = vmatprep.subr.bf16.mxu0 0
  %2718 = vmatpush2.bf16.msra.mxu0 0
  %2719 = vmatprep.subr.bf16.mxu0 0
  %2720 = vmatpush2.bf16.msra.mxu0 0
  %2721 = vmatprep.subr.bf16.mxu0 0
  %2722 = vmatpush2.bf16.msra.mxu0 0
  %2723 = vmatprep.subr.bf16.mxu0 0
  %2724 = vmatpush2.bf16.msra.mxu0 0
  %2725 = vmatprep.subr.bf16.mxu0 0
  %2726 = vmatpush2.bf16.msra.mxu0 0
  %2727 = vmatprep.subr.bf16.mxu0 0
  %2728 = vmatpush2.bf16.msra.mxu0 0
  %2729 = vmatprep.subr.bf16.mxu0 0
  %2730 = vmatpush2.bf16.msra.mxu0 0
  %2731 = vmatprep.subr.bf16.mxu0 0
  %2732 = vmatpush2.bf16.msra.mxu0 0
  %2733 = vmatprep.mubr.bf16.mxu0 0
  %2734 = vmatmul.mubr.bf16.gmra.mxu0 %v2659
  %v2735 = vpop.f32.mrf.mxu0
  %v2736 = vadd.f32 0.0, %v2735
  %v2737 = vpop.f32.mrf.mxu0
  %v2738 = vadd.f32 0.0, %v2737
  %v2739 = vpop.f32.mrf.mxu0
  %v2740 = vpop.f32.mrf.mxu0
  %2741 = vdwg.mxu0
  %v2742 = vadd.f32 %v2655, %v2695
  %v2743 = vadd.f32 %v2656, %v2697
  %v2744 = vadd.f32 %v2657, %v2736
  %v2745 = vadd.f32 %v2658, %v2738
  %v2746 = vxor.u32 %v2742, 2147483648
  %v2747 = vmul.f32 %v2746, 1.442695
  %v2748 = vpow.pop %v2747
  %v2749 = vadd.f32 %v2748, 1.0
  %v2750 = vrcp.pop %v2749
  %v2751 = vmul.f32 1.0, %v2750
  %v2752 = vxor.u32 %v2743, 2147483648
  %v2753 = vmul.f32 %v2752, 1.442695
  %v2754 = vpow.pop %v2753
  %v2755 = vadd.f32 %v2754, 1.0
  %v2756 = vrcp.pop %v2755
  %v2757 = vmul.f32 1.0, %v2756
  %v2758 = vtanh.pop %v2744
  %v2759 = vxor.u32 %v2745, 2147483648
  %v2760 = vmul.f32 %v2759, 1.442695
  %v2761 = vpow.pop %v2760
  %v2762 = vadd.f32 %v2761, 1.0
  %v2763 = vrcp.pop %v2762
  %v2764 = vmul.f32 1.0, %v2763
  %v2765 = vmul.f32 %v2757, %v2651
  %v2766 = vmul.f32 %v2751, %v2758
  %v2767 = vadd.f32 %v2765, %v2766
  %v2768 = vtanh.pop %v2767
  %v2769 = vmul.f32 %v2764, %v2768
  %2770 = vst [vmem:[#allocation3 + $0x88] sm:$0xff] %v2769
  %v2771 = vld [vmem:[#allocation2 + $0x240] sm:$0xff]
  %v2772 = vld [vmem:[#allocation2 + $0x248] sm:$0xff]
  %v2773 = vld [vmem:[#allocation2 + $0x250] sm:$0xff]
  %v2774 = vld [vmem:[#allocation2 + $0x258] sm:$0xff]
  %v2775 = vpack.c.bf16 %v2769, %v2769
  %2776 = vmatprep.subr.bf16.mxu0 %v769
  %2777 = vmatpush1.bf16.msra.mxu0 %v768
  %2778 = vmatprep.subr.bf16.mxu0 %v765
  %2779 = vmatpush1.bf16.msra.mxu0 %v764
  %2780 = vmatprep.subr.bf16.mxu0 %v761
  %2781 = vmatpush1.bf16.msra.mxu0 %v760
  %2782 = vmatprep.subr.bf16.mxu0 %v757
  %2783 = vmatpush1.bf16.msra.mxu0 %v756
  %2784 = vmatprep.subr.bf16.mxu0 %v753
  %2785 = vmatpush1.bf16.msra.mxu0 %v752
  %2786 = vmatprep.subr.bf16.mxu0 %v749
  %2787 = vmatpush1.bf16.msra.mxu0 %v748
  %2788 = vmatprep.subr.bf16.mxu0 %v745
  %2789 = vmatpush1.bf16.msra.mxu0 %v744
  %2790 = vmatprep.subr.bf16.mxu0 %v741
  %2791 = vmatpush1.bf16.msra.mxu0 %v740
  %2792 = vmatprep.subr.bf16.mxu0 0
  %2793 = vmatpush2.bf16.msra.mxu0 0
  %2794 = vmatprep.subr.bf16.mxu0 0
  %2795 = vmatpush2.bf16.msra.mxu0 0
  %2796 = vmatprep.subr.bf16.mxu0 0
  %2797 = vmatpush2.bf16.msra.mxu0 0
  %2798 = vmatprep.subr.bf16.mxu0 0
  %2799 = vmatpush2.bf16.msra.mxu0 0
  %2800 = vmatprep.subr.bf16.mxu0 0
  %2801 = vmatpush2.bf16.msra.mxu0 0
  %2802 = vmatprep.subr.bf16.mxu0 0
  %2803 = vmatpush2.bf16.msra.mxu0 0
  %2804 = vmatprep.subr.bf16.mxu0 0
  %2805 = vmatpush2.bf16.msra.mxu0 0
  %2806 = vmatprep.subr.bf16.mxu0 0
  %2807 = vmatpush2.bf16.msra.mxu0 0
  %2808 = vmatprep.mubr.bf16.mxu0 0
  %2809 = vmatmul.mubr.bf16.gmra.mxu0 %v2775
  %v2810 = vpop.f32.mrf.mxu0
  %v2811 = vadd.f32 0.0, %v2810
  %v2812 = vpop.f32.mrf.mxu0
  %v2813 = vadd.f32 0.0, %v2812
  %v2814 = vpop.f32.mrf.mxu0
  %v2815 = vpop.f32.mrf.mxu0
  %2816 = vdwg.mxu0
  %2817 = vmatprep.subr.bf16.mxu0 %v771
  %2818 = vmatpush1.bf16.msra.mxu0 %v770
  %2819 = vmatprep.subr.bf16.mxu0 %v767
  %2820 = vmatpush1.bf16.msra.mxu0 %v766
  %2821 = vmatprep.subr.bf16.mxu0 %v763
  %2822 = vmatpush1.bf16.msra.mxu0 %v762
  %2823 = vmatprep.subr.bf16.mxu0 %v759
  %2824 = vmatpush1.bf16.msra.mxu0 %v758
  %2825 = vmatprep.subr.bf16.mxu0 %v755
  %2826 = vmatpush1.bf16.msra.mxu0 %v754
  %2827 = vmatprep.subr.bf16.mxu0 %v751
  %2828 = vmatpush1.bf16.msra.mxu0 %v750
  %2829 = vmatprep.subr.bf16.mxu0 %v747
  %2830 = vmatpush1.bf16.msra.mxu0 %v746
  %2831 = vmatprep.subr.bf16.mxu0 %v743
  %2832 = vmatpush1.bf16.msra.mxu0 %v742
  %2833 = vmatprep.subr.bf16.mxu0 0
  %2834 = vmatpush2.bf16.msra.mxu0 0
  %2835 = vmatprep.subr.bf16.mxu0 0
  %2836 = vmatpush2.bf16.msra.mxu0 0
  %2837 = vmatprep.subr.bf16.mxu0 0
  %2838 = vmatpush2.bf16.msra.mxu0 0
  %2839 = vmatprep.subr.bf16.mxu0 0
  %2840 = vmatpush2.bf16.msra.mxu0 0
  %2841 = vmatprep.subr.bf16.mxu0 0
  %2842 = vmatpush2.bf16.msra.mxu0 0
  %2843 = vmatprep.subr.bf16.mxu0 0
  %2844 = vmatpush2.bf16.msra.mxu0 0
  %2845 = vmatprep.subr.bf16.mxu0 0
  %2846 = vmatpush2.bf16.msra.mxu0 0
  %2847 = vmatprep.subr.bf16.mxu0 0
  %2848 = vmatpush2.bf16.msra.mxu0 0
  %2849 = vmatprep.mubr.bf16.mxu0 0
  %2850 = vmatmul.mubr.bf16.gmra.mxu0 %v2775
  %v2851 = vpop.f32.mrf.mxu0
  %v2852 = vadd.f32 0.0, %v2851
  %v2853 = vpop.f32.mrf.mxu0
  %v2854 = vadd.f32 0.0, %v2853
  %v2855 = vpop.f32.mrf.mxu0
  %v2856 = vpop.f32.mrf.mxu0
  %2857 = vdwg.mxu0
  %v2858 = vadd.f32 %v2771, %v2811
  %v2859 = vadd.f32 %v2772, %v2813
  %v2860 = vadd.f32 %v2773, %v2852
  %v2861 = vadd.f32 %v2774, %v2854
  %v2862 = vxor.u32 %v2858, 2147483648
  %v2863 = vmul.f32 %v2862, 1.442695
  %v2864 = vpow.pop %v2863
  %v2865 = vadd.f32 %v2864, 1.0
  %v2866 = vrcp.pop %v2865
  %v2867 = vmul.f32 1.0, %v2866
  %v2868 = vxor.u32 %v2859, 2147483648
  %v2869 = vmul.f32 %v2868, 1.442695
  %v2870 = vpow.pop %v2869
  %v2871 = vadd.f32 %v2870, 1.0
  %v2872 = vrcp.pop %v2871
  %v2873 = vmul.f32 1.0, %v2872
  %v2874 = vtanh.pop %v2860
  %v2875 = vxor.u32 %v2861, 2147483648
  %v2876 = vmul.f32 %v2875, 1.442695
  %v2877 = vpow.pop %v2876
  %v2878 = vadd.f32 %v2877, 1.0
  %v2879 = vrcp.pop %v2878
  %v2880 = vmul.f32 1.0, %v2879
  %v2881 = vmul.f32 %v2873, %v2767
  %v2882 = vmul.f32 %v2867, %v2874
  %v2883 = vadd.f32 %v2881, %v2882
  %v2884 = vtanh.pop %v2883
  %v2885 = vmul.f32 %v2880, %v2884
  %2886 = vst [vmem:[#allocation3 + $0x90] sm:$0xff] %v2885
  %v2887 = vld [vmem:[#allocation2 + $0x260] sm:$0xff]
  %v2888 = vld [vmem:[#allocation2 + $0x268] sm:$0xff]
  %v2889 = vld [vmem:[#allocation2 + $0x270] sm:$0xff]
  %v2890 = vld [vmem:[#allocation2 + $0x278] sm:$0xff]
  %v2891 = vpack.c.bf16 %v2885, %v2885
  %2892 = vmatprep.subr.bf16.mxu0 %v769
  %2893 = vmatpush1.bf16.msra.mxu0 %v768
  %2894 = vmatprep.subr.bf16.mxu0 %v765
  %2895 = vmatpush1.bf16.msra.mxu0 %v764
  %2896 = vmatprep.subr.bf16.mxu0 %v761
  %2897 = vmatpush1.bf16.msra.mxu0 %v760
  %2898 = vmatprep.subr.bf16.mxu0 %v757
  %2899 = vmatpush1.bf16.msra.mxu0 %v756
  %2900 = vmatprep.subr.bf16.mxu0 %v753
  %2901 = vmatpush1.bf16.msra.mxu0 %v752
  %2902 = vmatprep.subr.bf16.mxu0 %v749
  %2903 = vmatpush1.bf16.msra.mxu0 %v748
  %2904 = vmatprep.subr.bf16.mxu0 %v745
  %2905 = vmatpush1.bf16.msra.mxu0 %v744
  %2906 = vmatprep.subr.bf16.mxu0 %v741
  %2907 = vmatpush1.bf16.msra.mxu0 %v740
  %2908 = vmatprep.subr.bf16.mxu0 0
  %2909 = vmatpush2.bf16.msra.mxu0 0
  %2910 = vmatprep.subr.bf16.mxu0 0
  %2911 = vmatpush2.bf16.msra.mxu0 0
  %2912 = vmatprep.subr.bf16.mxu0 0
  %2913 = vmatpush2.bf16.msra.mxu0 0
  %2914 = vmatprep.subr.bf16.mxu0 0
  %2915 = vmatpush2.bf16.msra.mxu0 0
  %2916 = vmatprep.subr.bf16.mxu0 0
  %2917 = vmatpush2.bf16.msra.mxu0 0
  %2918 = vmatprep.subr.bf16.mxu0 0
  %2919 = vmatpush2.bf16.msra.mxu0 0
  %2920 = vmatprep.subr.bf16.mxu0 0
  %2921 = vmatpush2.bf16.msra.mxu0 0
  %2922 = vmatprep.subr.bf16.mxu0 0
  %2923 = vmatpush2.bf16.msra.mxu0 0
  %2924 = vmatprep.mubr.bf16.mxu0 0
  %2925 = vmatmul.mubr.bf16.gmra.mxu0 %v2891
  %v2926 = vpop.f32.mrf.mxu0
  %v2927 = vadd.f32 0.0, %v2926
  %v2928 = vpop.f32.mrf.mxu0
  %v2929 = vadd.f32 0.0, %v2928
  %v2930 = vpop.f32.mrf.mxu0
  %v2931 = vpop.f32.mrf.mxu0
  %2932 = vdwg.mxu0
  %2933 = vmatprep.subr.bf16.mxu0 %v771
  %2934 = vmatpush1.bf16.msra.mxu0 %v770
  %2935 = vmatprep.subr.bf16.mxu0 %v767
  %2936 = vmatpush1.bf16.msra.mxu0 %v766
  %2937 = vmatprep.subr.bf16.mxu0 %v763
  %2938 = vmatpush1.bf16.msra.mxu0 %v762
  %2939 = vmatprep.subr.bf16.mxu0 %v759
  %2940 = vmatpush1.bf16.msra.mxu0 %v758
  %2941 = vmatprep.subr.bf16.mxu0 %v755
  %2942 = vmatpush1.bf16.msra.mxu0 %v754
  %2943 = vmatprep.subr.bf16.mxu0 %v751
  %2944 = vmatpush1.bf16.msra.mxu0 %v750
  %2945 = vmatprep.subr.bf16.mxu0 %v747
  %2946 = vmatpush1.bf16.msra.mxu0 %v746
  %2947 = vmatprep.subr.bf16.mxu0 %v743
  %2948 = vmatpush1.bf16.msra.mxu0 %v742
  %2949 = vmatprep.subr.bf16.mxu0 0
  %2950 = vmatpush2.bf16.msra.mxu0 0
  %2951 = vmatprep.subr.bf16.mxu0 0
  %2952 = vmatpush2.bf16.msra.mxu0 0
  %2953 = vmatprep.subr.bf16.mxu0 0
  %2954 = vmatpush2.bf16.msra.mxu0 0
  %2955 = vmatprep.subr.bf16.mxu0 0
  %2956 = vmatpush2.bf16.msra.mxu0 0
  %2957 = vmatprep.subr.bf16.mxu0 0
  %2958 = vmatpush2.bf16.msra.mxu0 0
  %2959 = vmatprep.subr.bf16.mxu0 0
  %2960 = vmatpush2.bf16.msra.mxu0 0
  %2961 = vmatprep.subr.bf16.mxu0 0
  %2962 = vmatpush2.bf16.msra.mxu0 0
  %2963 = vmatprep.subr.bf16.mxu0 0
  %2964 = vmatpush2.bf16.msra.mxu0 0
  %2965 = vmatprep.mubr.bf16.mxu0 0
  %2966 = vmatmul.mubr.bf16.gmra.mxu0 %v2891
  %v2967 = vpop.f32.mrf.mxu0
  %v2968 = vadd.f32 0.0, %v2967
  %v2969 = vpop.f32.mrf.mxu0
  %v2970 = vadd.f32 0.0, %v2969
  %v2971 = vpop.f32.mrf.mxu0
  %v2972 = vpop.f32.mrf.mxu0
  %2973 = vdwg.mxu0
  %v2974 = vadd.f32 %v2887, %v2927
  %v2975 = vadd.f32 %v2888, %v2929
  %v2976 = vadd.f32 %v2889, %v2968
  %v2977 = vadd.f32 %v2890, %v2970
  %v2978 = vxor.u32 %v2974, 2147483648
  %v2979 = vmul.f32 %v2978, 1.442695
  %v2980 = vpow.pop %v2979
  %v2981 = vadd.f32 %v2980, 1.0
  %v2982 = vrcp.pop %v2981
  %v2983 = vmul.f32 1.0, %v2982
  %v2984 = vxor.u32 %v2975, 2147483648
  %v2985 = vmul.f32 %v2984, 1.442695
  %v2986 = vpow.pop %v2985
  %v2987 = vadd.f32 %v2986, 1.0
  %v2988 = vrcp.pop %v2987
  %v2989 = vmul.f32 1.0, %v2988
  %v2990 = vtanh.pop %v2976
  %v2991 = vxor.u32 %v2977, 2147483648
  %v2992 = vmul.f32 %v2991, 1.442695
  %v2993 = vpow.pop %v2992
  %v2994 = vadd.f32 %v2993, 1.0
  %v2995 = vrcp.pop %v2994
  %v2996 = vmul.f32 1.0, %v2995
  %v2997 = vmul.f32 %v2989, %v2883
  %v2998 = vmul.f32 %v2983, %v2990
  %v2999 = vadd.f32 %v2997, %v2998
  %v3000 = vtanh.pop %v2999
  %v3001 = vmul.f32 %v2996, %v3000
  %3002 = vst [vmem:[#allocation3 + $0x98] sm:$0xff] %v3001
  %v3003 = vld [vmem:[#allocation2 + $0x280] sm:$0xff]
  %v3004 = vld [vmem:[#allocation2 + $0x288] sm:$0xff]
  %v3005 = vld [vmem:[#allocation2 + $0x290] sm:$0xff]
  %v3006 = vld [vmem:[#allocation2 + $0x298] sm:$0xff]
  %v3007 = vpack.c.bf16 %v3001, %v3001
  %3008 = vmatprep.subr.bf16.mxu0 %v769
  %3009 = vmatpush1.bf16.msra.mxu0 %v768
  %3010 = vmatprep.subr.bf16.mxu0 %v765
  %3011 = vmatpush1.bf16.msra.mxu0 %v764
  %3012 = vmatprep.subr.bf16.mxu0 %v761
  %3013 = vmatpush1.bf16.msra.mxu0 %v760
  %3014 = vmatprep.subr.bf16.mxu0 %v757
  %3015 = vmatpush1.bf16.msra.mxu0 %v756
  %3016 = vmatprep.subr.bf16.mxu0 %v753
  %3017 = vmatpush1.bf16.msra.mxu0 %v752
  %3018 = vmatprep.subr.bf16.mxu0 %v749
  %3019 = vmatpush1.bf16.msra.mxu0 %v748
  %3020 = vmatprep.subr.bf16.mxu0 %v745
  %3021 = vmatpush1.bf16.msra.mxu0 %v744
  %3022 = vmatprep.subr.bf16.mxu0 %v741
  %3023 = vmatpush1.bf16.msra.mxu0 %v740
  %3024 = vmatprep.subr.bf16.mxu0 0
  %3025 = vmatpush2.bf16.msra.mxu0 0
  %3026 = vmatprep.subr.bf16.mxu0 0
  %3027 = vmatpush2.bf16.msra.mxu0 0
  %3028 = vmatprep.subr.bf16.mxu0 0
  %3029 = vmatpush2.bf16.msra.mxu0 0
  %3030 = vmatprep.subr.bf16.mxu0 0
  %3031 = vmatpush2.bf16.msra.mxu0 0
  %3032 = vmatprep.subr.bf16.mxu0 0
  %3033 = vmatpush2.bf16.msra.mxu0 0
  %3034 = vmatprep.subr.bf16.mxu0 0
  %3035 = vmatpush2.bf16.msra.mxu0 0
  %3036 = vmatprep.subr.bf16.mxu0 0
  %3037 = vmatpush2.bf16.msra.mxu0 0
  %3038 = vmatprep.subr.bf16.mxu0 0
  %3039 = vmatpush2.bf16.msra.mxu0 0
  %3040 = vmatprep.mubr.bf16.mxu0 0
  %3041 = vmatmul.mubr.bf16.gmra.mxu0 %v3007
  %v3042 = vpop.f32.mrf.mxu0
  %v3043 = vadd.f32 0.0, %v3042
  %v3044 = vpop.f32.mrf.mxu0
  %v3045 = vadd.f32 0.0, %v3044
  %v3046 = vpop.f32.mrf.mxu0
  %v3047 = vpop.f32.mrf.mxu0
  %3048 = vdwg.mxu0
  %3049 = vmatprep.subr.bf16.mxu0 %v771
  %3050 = vmatpush1.bf16.msra.mxu0 %v770
  %3051 = vmatprep.subr.bf16.mxu0 %v767
  %3052 = vmatpush1.bf16.msra.mxu0 %v766
  %3053 = vmatprep.subr.bf16.mxu0 %v763
  %3054 = vmatpush1.bf16.msra.mxu0 %v762
  %3055 = vmatprep.subr.bf16.mxu0 %v759
  %3056 = vmatpush1.bf16.msra.mxu0 %v758
  %3057 = vmatprep.subr.bf16.mxu0 %v755
  %3058 = vmatpush1.bf16.msra.mxu0 %v754
  %3059 = vmatprep.subr.bf16.mxu0 %v751
  %3060 = vmatpush1.bf16.msra.mxu0 %v750
  %3061 = vmatprep.subr.bf16.mxu0 %v747
  %3062 = vmatpush1.bf16.msra.mxu0 %v746
  %3063 = vmatprep.subr.bf16.mxu0 %v743
  %3064 = vmatpush1.bf16.msra.mxu0 %v742
  %3065 = vmatprep.subr.bf16.mxu0 0
  %3066 = vmatpush2.bf16.msra.mxu0 0
  %3067 = vmatprep.subr.bf16.mxu0 0
  %3068 = vmatpush2.bf16.msra.mxu0 0
  %3069 = vmatprep.subr.bf16.mxu0 0
  %3070 = vmatpush2.bf16.msra.mxu0 0
  %3071 = vmatprep.subr.bf16.mxu0 0
  %3072 = vmatpush2.bf16.msra.mxu0 0
  %3073 = vmatprep.subr.bf16.mxu0 0
  %3074 = vmatpush2.bf16.msra.mxu0 0
  %3075 = vmatprep.subr.bf16.mxu0 0
  %3076 = vmatpush2.bf16.msra.mxu0 0
  %3077 = vmatprep.subr.bf16.mxu0 0
  %3078 = vmatpush2.bf16.msra.mxu0 0
  %3079 = vmatprep.subr.bf16.mxu0 0
  %3080 = vmatpush2.bf16.msra.mxu0 0
  %3081 = vmatprep.mubr.bf16.mxu0 0
  %3082 = vmatmul.mubr.bf16.gmra.mxu0 %v3007
  %v3083 = vpop.f32.mrf.mxu0
  %v3084 = vadd.f32 0.0, %v3083
  %v3085 = vpop.f32.mrf.mxu0
  %v3086 = vadd.f32 0.0, %v3085
  %v3087 = vpop.f32.mrf.mxu0
  %v3088 = vpop.f32.mrf.mxu0
  %3089 = vdwg.mxu0
  %v3090 = vadd.f32 %v3003, %v3043
  %v3091 = vadd.f32 %v3004, %v3045
  %v3092 = vadd.f32 %v3005, %v3084
  %v3093 = vadd.f32 %v3006, %v3086
  %v3094 = vxor.u32 %v3090, 2147483648
  %v3095 = vmul.f32 %v3094, 1.442695
  %v3096 = vpow.pop %v3095
  %v3097 = vadd.f32 %v3096, 1.0
  %v3098 = vrcp.pop %v3097
  %v3099 = vmul.f32 1.0, %v3098
  %v3100 = vxor.u32 %v3091, 2147483648
  %v3101 = vmul.f32 %v3100, 1.442695
  %v3102 = vpow.pop %v3101
  %v3103 = vadd.f32 %v3102, 1.0
  %v3104 = vrcp.pop %v3103
  %v3105 = vmul.f32 1.0, %v3104
  %v3106 = vtanh.pop %v3092
  %v3107 = vxor.u32 %v3093, 2147483648
  %v3108 = vmul.f32 %v3107, 1.442695
  %v3109 = vpow.pop %v3108
  %v3110 = vadd.f32 %v3109, 1.0
  %v3111 = vrcp.pop %v3110
  %v3112 = vmul.f32 1.0, %v3111
  %v3113 = vmul.f32 %v3105, %v2999
  %v3114 = vmul.f32 %v3099, %v3106
  %v3115 = vadd.f32 %v3113, %v3114
  %v3116 = vtanh.pop %v3115
  %v3117 = vmul.f32 %v3112, %v3116
  %3118 = vst [vmem:[#allocation3 + $0xa0] sm:$0xff] %v3117
  %v3119 = vld [vmem:[#allocation2 + $0x2a0] sm:$0xff]
  %v3120 = vld [vmem:[#allocation2 + $0x2a8] sm:$0xff]
  %v3121 = vld [vmem:[#allocation2 + $0x2b0] sm:$0xff]
  %v3122 = vld [vmem:[#allocation2 + $0x2b8] sm:$0xff]
  %v3123 = vpack.c.bf16 %v3117, %v3117
  %3124 = vmatprep.subr.bf16.mxu0 %v769
  %3125 = vmatpush1.bf16.msra.mxu0 %v768
  %3126 = vmatprep.subr.bf16.mxu0 %v765
  %3127 = vmatpush1.bf16.msra.mxu0 %v764
  %3128 = vmatprep.subr.bf16.mxu0 %v761
  %3129 = vmatpush1.bf16.msra.mxu0 %v760
  %3130 = vmatprep.subr.bf16.mxu0 %v757
  %3131 = vmatpush1.bf16.msra.mxu0 %v756
  %3132 = vmatprep.subr.bf16.mxu0 %v753
  %3133 = vmatpush1.bf16.msra.mxu0 %v752
  %3134 = vmatprep.subr.bf16.mxu0 %v749
  %3135 = vmatpush1.bf16.msra.mxu0 %v748
  %3136 = vmatprep.subr.bf16.mxu0 %v745
  %3137 = vmatpush1.bf16.msra.mxu0 %v744
  %3138 = vmatprep.subr.bf16.mxu0 %v741
  %3139 = vmatpush1.bf16.msra.mxu0 %v740
  %3140 = vmatprep.subr.bf16.mxu0 0
  %3141 = vmatpush2.bf16.msra.mxu0 0
  %3142 = vmatprep.subr.bf16.mxu0 0
  %3143 = vmatpush2.bf16.msra.mxu0 0
  %3144 = vmatprep.subr.bf16.mxu0 0
  %3145 = vmatpush2.bf16.msra.mxu0 0
  %3146 = vmatprep.subr.bf16.mxu0 0
  %3147 = vmatpush2.bf16.msra.mxu0 0
  %3148 = vmatprep.subr.bf16.mxu0 0
  %3149 = vmatpush2.bf16.msra.mxu0 0
  %3150 = vmatprep.subr.bf16.mxu0 0
  %3151 = vmatpush2.bf16.msra.mxu0 0
  %3152 = vmatprep.subr.bf16.mxu0 0
  %3153 = vmatpush2.bf16.msra.mxu0 0
  %3154 = vmatprep.subr.bf16.mxu0 0
  %3155 = vmatpush2.bf16.msra.mxu0 0
  %3156 = vmatprep.mubr.bf16.mxu0 0
  %3157 = vmatmul.mubr.bf16.gmra.mxu0 %v3123
  %v3158 = vpop.f32.mrf.mxu0
  %v3159 = vadd.f32 0.0, %v3158
  %v3160 = vpop.f32.mrf.mxu0
  %v3161 = vadd.f32 0.0, %v3160
  %v3162 = vpop.f32.mrf.mxu0
  %v3163 = vpop.f32.mrf.mxu0
  %3164 = vdwg.mxu0
  %3165 = vmatprep.subr.bf16.mxu0 %v771
  %3166 = vmatpush1.bf16.msra.mxu0 %v770
  %3167 = vmatprep.subr.bf16.mxu0 %v767
  %3168 = vmatpush1.bf16.msra.mxu0 %v766
  %3169 = vmatprep.subr.bf16.mxu0 %v763
  %3170 = vmatpush1.bf16.msra.mxu0 %v762
  %3171 = vmatprep.subr.bf16.mxu0 %v759
  %3172 = vmatpush1.bf16.msra.mxu0 %v758
  %3173 = vmatprep.subr.bf16.mxu0 %v755
  %3174 = vmatpush1.bf16.msra.mxu0 %v754
  %3175 = vmatprep.subr.bf16.mxu0 %v751
  %3176 = vmatpush1.bf16.msra.mxu0 %v750
  %3177 = vmatprep.subr.bf16.mxu0 %v747
  %3178 = vmatpush1.bf16.msra.mxu0 %v746
  %3179 = vmatprep.subr.bf16.mxu0 %v743
  %3180 = vmatpush1.bf16.msra.mxu0 %v742
  %3181 = vmatprep.subr.bf16.mxu0 0
  %3182 = vmatpush2.bf16.msra.mxu0 0
  %3183 = vmatprep.subr.bf16.mxu0 0
  %3184 = vmatpush2.bf16.msra.mxu0 0
  %3185 = vmatprep.subr.bf16.mxu0 0
  %3186 = vmatpush2.bf16.msra.mxu0 0
  %3187 = vmatprep.subr.bf16.mxu0 0
  %3188 = vmatpush2.bf16.msra.mxu0 0
  %3189 = vmatprep.subr.bf16.mxu0 0
  %3190 = vmatpush2.bf16.msra.mxu0 0
  %3191 = vmatprep.subr.bf16.mxu0 0
  %3192 = vmatpush2.bf16.msra.mxu0 0
  %3193 = vmatprep.subr.bf16.mxu0 0
  %3194 = vmatpush2.bf16.msra.mxu0 0
  %3195 = vmatprep.subr.bf16.mxu0 0
  %3196 = vmatpush2.bf16.msra.mxu0 0
  %3197 = vmatprep.mubr.bf16.mxu0 0
  %3198 = vmatmul.mubr.bf16.gmra.mxu0 %v3123
  %v3199 = vpop.f32.mrf.mxu0
  %v3200 = vadd.f32 0.0, %v3199
  %v3201 = vpop.f32.mrf.mxu0
  %v3202 = vadd.f32 0.0, %v3201
  %v3203 = vpop.f32.mrf.mxu0
  %v3204 = vpop.f32.mrf.mxu0
  %3205 = vdwg.mxu0
  %v3206 = vadd.f32 %v3119, %v3159
  %v3207 = vadd.f32 %v3120, %v3161
  %v3208 = vadd.f32 %v3121, %v3200
  %v3209 = vadd.f32 %v3122, %v3202
  %v3210 = vxor.u32 %v3206, 2147483648
  %v3211 = vmul.f32 %v3210, 1.442695
  %v3212 = vpow.pop %v3211
  %v3213 = vadd.f32 %v3212, 1.0
  %v3214 = vrcp.pop %v3213
  %v3215 = vmul.f32 1.0, %v3214
  %v3216 = vxor.u32 %v3207, 2147483648
  %v3217 = vmul.f32 %v3216, 1.442695
  %v3218 = vpow.pop %v3217
  %v3219 = vadd.f32 %v3218, 1.0
  %v3220 = vrcp.pop %v3219
  %v3221 = vmul.f32 1.0, %v3220
  %v3222 = vtanh.pop %v3208
  %v3223 = vxor.u32 %v3209, 2147483648
  %v3224 = vmul.f32 %v3223, 1.442695
  %v3225 = vpow.pop %v3224
  %v3226 = vadd.f32 %v3225, 1.0
  %v3227 = vrcp.pop %v3226
  %v3228 = vmul.f32 1.0, %v3227
  %v3229 = vmul.f32 %v3221, %v3115
  %v3230 = vmul.f32 %v3215, %v3222
  %v3231 = vadd.f32 %v3229, %v3230
  %v3232 = vtanh.pop %v3231
  %v3233 = vmul.f32 %v3228, %v3232
  %3234 = vst [vmem:[#allocation3 + $0xa8] sm:$0xff] %v3233
  %v3235 = vld [vmem:[#allocation2 + $0x2c0] sm:$0xff]
  %v3236 = vld [vmem:[#allocation2 + $0x2c8] sm:$0xff]
  %v3237 = vld [vmem:[#allocation2 + $0x2d0] sm:$0xff]
  %v3238 = vld [vmem:[#allocation2 + $0x2d8] sm:$0xff]
  %v3239 = vpack.c.bf16 %v3233, %v3233
  %3240 = vmatprep.subr.bf16.mxu0 %v769
  %3241 = vmatpush1.bf16.msra.mxu0 %v768
  %3242 = vmatprep.subr.bf16.mxu0 %v765
  %3243 = vmatpush1.bf16.msra.mxu0 %v764
  %3244 = vmatprep.subr.bf16.mxu0 %v761
  %3245 = vmatpush1.bf16.msra.mxu0 %v760
  %3246 = vmatprep.subr.bf16.mxu0 %v757
  %3247 = vmatpush1.bf16.msra.mxu0 %v756
  %3248 = vmatprep.subr.bf16.mxu0 %v753
  %3249 = vmatpush1.bf16.msra.mxu0 %v752
  %3250 = vmatprep.subr.bf16.mxu0 %v749
  %3251 = vmatpush1.bf16.msra.mxu0 %v748
  %3252 = vmatprep.subr.bf16.mxu0 %v745
  %3253 = vmatpush1.bf16.msra.mxu0 %v744
  %3254 = vmatprep.subr.bf16.mxu0 %v741
  %3255 = vmatpush1.bf16.msra.mxu0 %v740
  %3256 = vmatprep.subr.bf16.mxu0 0
  %3257 = vmatpush2.bf16.msra.mxu0 0
  %3258 = vmatprep.subr.bf16.mxu0 0
  %3259 = vmatpush2.bf16.msra.mxu0 0
  %3260 = vmatprep.subr.bf16.mxu0 0
  %3261 = vmatpush2.bf16.msra.mxu0 0
  %3262 = vmatprep.subr.bf16.mxu0 0
  %3263 = vmatpush2.bf16.msra.mxu0 0
  %3264 = vmatprep.subr.bf16.mxu0 0
  %3265 = vmatpush2.bf16.msra.mxu0 0
  %3266 = vmatprep.subr.bf16.mxu0 0
  %3267 = vmatpush2.bf16.msra.mxu0 0
  %3268 = vmatprep.subr.bf16.mxu0 0
  %3269 = vmatpush2.bf16.msra.mxu0 0
  %3270 = vmatprep.subr.bf16.mxu0 0
  %3271 = vmatpush2.bf16.msra.mxu0 0
  %3272 = vmatprep.mubr.bf16.mxu0 0
  %3273 = vmatmul.mubr.bf16.gmra.mxu0 %v3239
  %v3274 = vpop.f32.mrf.mxu0
  %v3275 = vadd.f32 0.0, %v3274
  %v3276 = vpop.f32.mrf.mxu0
  %v3277 = vadd.f32 0.0, %v3276
  %v3278 = vpop.f32.mrf.mxu0
  %v3279 = vpop.f32.mrf.mxu0
  %3280 = vdwg.mxu0
  %3281 = vmatprep.subr.bf16.mxu0 %v771
  %3282 = vmatpush1.bf16.msra.mxu0 %v770
  %3283 = vmatprep.subr.bf16.mxu0 %v767
  %3284 = vmatpush1.bf16.msra.mxu0 %v766
  %3285 = vmatprep.subr.bf16.mxu0 %v763
  %3286 = vmatpush1.bf16.msra.mxu0 %v762
  %3287 = vmatprep.subr.bf16.mxu0 %v759
  %3288 = vmatpush1.bf16.msra.mxu0 %v758
  %3289 = vmatprep.subr.bf16.mxu0 %v755
  %3290 = vmatpush1.bf16.msra.mxu0 %v754
  %3291 = vmatprep.subr.bf16.mxu0 %v751
  %3292 = vmatpush1.bf16.msra.mxu0 %v750
  %3293 = vmatprep.subr.bf16.mxu0 %v747
  %3294 = vmatpush1.bf16.msra.mxu0 %v746
  %3295 = vmatprep.subr.bf16.mxu0 %v743
  %3296 = vmatpush1.bf16.msra.mxu0 %v742
  %3297 = vmatprep.subr.bf16.mxu0 0
  %3298 = vmatpush2.bf16.msra.mxu0 0
  %3299 = vmatprep.subr.bf16.mxu0 0
  %3300 = vmatpush2.bf16.msra.mxu0 0
  %3301 = vmatprep.subr.bf16.mxu0 0
  %3302 = vmatpush2.bf16.msra.mxu0 0
  %3303 = vmatprep.subr.bf16.mxu0 0
  %3304 = vmatpush2.bf16.msra.mxu0 0
  %3305 = vmatprep.subr.bf16.mxu0 0
  %3306 = vmatpush2.bf16.msra.mxu0 0
  %3307 = vmatprep.subr.bf16.mxu0 0
  %3308 = vmatpush2.bf16.msra.mxu0 0
  %3309 = vmatprep.subr.bf16.mxu0 0
  %3310 = vmatpush2.bf16.msra.mxu0 0
  %3311 = vmatprep.subr.bf16.mxu0 0
  %3312 = vmatpush2.bf16.msra.mxu0 0
  %3313 = vmatprep.mubr.bf16.mxu0 0
  %3314 = vmatmul.mubr.bf16.gmra.mxu0 %v3239
  %v3315 = vpop.f32.mrf.mxu0
  %v3316 = vadd.f32 0.0, %v3315
  %v3317 = vpop.f32.mrf.mxu0
  %v3318 = vadd.f32 0.0, %v3317
  %v3319 = vpop.f32.mrf.mxu0
  %v3320 = vpop.f32.mrf.mxu0
  %3321 = vdwg.mxu0
  %v3322 = vadd.f32 %v3235, %v3275
  %v3323 = vadd.f32 %v3236, %v3277
  %v3324 = vadd.f32 %v3237, %v3316
  %v3325 = vadd.f32 %v3238, %v3318
  %v3326 = vxor.u32 %v3322, 2147483648
  %v3327 = vmul.f32 %v3326, 1.442695
  %v3328 = vpow.pop %v3327
  %v3329 = vadd.f32 %v3328, 1.0
  %v3330 = vrcp.pop %v3329
  %v3331 = vmul.f32 1.0, %v3330
  %v3332 = vxor.u32 %v3323, 2147483648
  %v3333 = vmul.f32 %v3332, 1.442695
  %v3334 = vpow.pop %v3333
  %v3335 = vadd.f32 %v3334, 1.0
  %v3336 = vrcp.pop %v3335
  %v3337 = vmul.f32 1.0, %v3336
  %v3338 = vtanh.pop %v3324
  %v3339 = vxor.u32 %v3325, 2147483648
  %v3340 = vmul.f32 %v3339, 1.442695
  %v3341 = vpow.pop %v3340
  %v3342 = vadd.f32 %v3341, 1.0
  %v3343 = vrcp.pop %v3342
  %v3344 = vmul.f32 1.0, %v3343
  %v3345 = vmul.f32 %v3337, %v3231
  %v3346 = vmul.f32 %v3331, %v3338
  %v3347 = vadd.f32 %v3345, %v3346
  %v3348 = vtanh.pop %v3347
  %v3349 = vmul.f32 %v3344, %v3348
  %3350 = vst [vmem:[#allocation3 + $0xb0] sm:$0xff] %v3349
  %v3351 = vld [vmem:[#allocation2 + $0x2e0] sm:$0xff]
  %v3352 = vld [vmem:[#allocation2 + $0x2e8] sm:$0xff]
  %v3353 = vld [vmem:[#allocation2 + $0x2f0] sm:$0xff]
  %v3354 = vld [vmem:[#allocation2 + $0x2f8] sm:$0xff]
  %v3355 = vpack.c.bf16 %v3349, %v3349
  %3356 = vmatprep.subr.bf16.mxu0 %v769
  %3357 = vmatpush1.bf16.msra.mxu0 %v768
  %3358 = vmatprep.subr.bf16.mxu0 %v765
  %3359 = vmatpush1.bf16.msra.mxu0 %v764
  %3360 = vmatprep.subr.bf16.mxu0 %v761
  %3361 = vmatpush1.bf16.msra.mxu0 %v760
  %3362 = vmatprep.subr.bf16.mxu0 %v757
  %3363 = vmatpush1.bf16.msra.mxu0 %v756
  %3364 = vmatprep.subr.bf16.mxu0 %v753
  %3365 = vmatpush1.bf16.msra.mxu0 %v752
  %3366 = vmatprep.subr.bf16.mxu0 %v749
  %3367 = vmatpush1.bf16.msra.mxu0 %v748
  %3368 = vmatprep.subr.bf16.mxu0 %v745
  %3369 = vmatpush1.bf16.msra.mxu0 %v744
  %3370 = vmatprep.subr.bf16.mxu0 %v741
  %3371 = vmatpush1.bf16.msra.mxu0 %v740
  %3372 = vmatprep.subr.bf16.mxu0 0
  %3373 = vmatpush2.bf16.msra.mxu0 0
  %3374 = vmatprep.subr.bf16.mxu0 0
  %3375 = vmatpush2.bf16.msra.mxu0 0
  %3376 = vmatprep.subr.bf16.mxu0 0
  %3377 = vmatpush2.bf16.msra.mxu0 0
  %3378 = vmatprep.subr.bf16.mxu0 0
  %3379 = vmatpush2.bf16.msra.mxu0 0
  %3380 = vmatprep.subr.bf16.mxu0 0
  %3381 = vmatpush2.bf16.msra.mxu0 0
  %3382 = vmatprep.subr.bf16.mxu0 0
  %3383 = vmatpush2.bf16.msra.mxu0 0
  %3384 = vmatprep.subr.bf16.mxu0 0
  %3385 = vmatpush2.bf16.msra.mxu0 0
  %3386 = vmatprep.subr.bf16.mxu0 0
  %3387 = vmatpush2.bf16.msra.mxu0 0
  %3388 = vmatprep.mubr.bf16.mxu0 0
  %3389 = vmatmul.mubr.bf16.gmra.mxu0 %v3355
  %v3390 = vpop.f32.mrf.mxu0
  %v3391 = vadd.f32 0.0, %v3390
  %v3392 = vpop.f32.mrf.mxu0
  %v3393 = vadd.f32 0.0, %v3392
  %v3394 = vpop.f32.mrf.mxu0
  %v3395 = vpop.f32.mrf.mxu0
  %3396 = vdwg.mxu0
  %3397 = vmatprep.subr.bf16.mxu0 %v771
  %3398 = vmatpush1.bf16.msra.mxu0 %v770
  %3399 = vmatprep.subr.bf16.mxu0 %v767
  %3400 = vmatpush1.bf16.msra.mxu0 %v766
  %3401 = vmatprep.subr.bf16.mxu0 %v763
  %3402 = vmatpush1.bf16.msra.mxu0 %v762
  %3403 = vmatprep.subr.bf16.mxu0 %v759
  %3404 = vmatpush1.bf16.msra.mxu0 %v758
  %3405 = vmatprep.subr.bf16.mxu0 %v755
  %3406 = vmatpush1.bf16.msra.mxu0 %v754
  %3407 = vmatprep.subr.bf16.mxu0 %v751
  %3408 = vmatpush1.bf16.msra.mxu0 %v750
  %3409 = vmatprep.subr.bf16.mxu0 %v747
  %3410 = vmatpush1.bf16.msra.mxu0 %v746
  %3411 = vmatprep.subr.bf16.mxu0 %v743
  %3412 = vmatpush1.bf16.msra.mxu0 %v742
  %3413 = vmatprep.subr.bf16.mxu0 0
  %3414 = vmatpush2.bf16.msra.mxu0 0
  %3415 = vmatprep.subr.bf16.mxu0 0
  %3416 = vmatpush2.bf16.msra.mxu0 0
  %3417 = vmatprep.subr.bf16.mxu0 0
  %3418 = vmatpush2.bf16.msra.mxu0 0
  %3419 = vmatprep.subr.bf16.mxu0 0
  %3420 = vmatpush2.bf16.msra.mxu0 0
  %3421 = vmatprep.subr.bf16.mxu0 0
  %3422 = vmatpush2.bf16.msra.mxu0 0
  %3423 = vmatprep.subr.bf16.mxu0 0
  %3424 = vmatpush2.bf16.msra.mxu0 0
  %3425 = vmatprep.subr.bf16.mxu0 0
  %3426 = vmatpush2.bf16.msra.mxu0 0
  %3427 = vmatprep.subr.bf16.mxu0 0
  %3428 = vmatpush2.bf16.msra.mxu0 0
  %3429 = vmatprep.mubr.bf16.mxu0 0
  %3430 = vmatmul.mubr.bf16.gmra.mxu0 %v3355
  %v3431 = vpop.f32.mrf.mxu0
  %v3432 = vadd.f32 0.0, %v3431
  %v3433 = vpop.f32.mrf.mxu0
  %v3434 = vadd.f32 0.0, %v3433
  %v3435 = vpop.f32.mrf.mxu0
  %v3436 = vpop.f32.mrf.mxu0
  %3437 = vdwg.mxu0
  %v3438 = vadd.f32 %v3351, %v3391
  %v3439 = vadd.f32 %v3352, %v3393
  %v3440 = vadd.f32 %v3353, %v3432
  %v3441 = vadd.f32 %v3354, %v3434
  %v3442 = vxor.u32 %v3438, 2147483648
  %v3443 = vmul.f32 %v3442, 1.442695
  %v3444 = vpow.pop %v3443
  %v3445 = vadd.f32 %v3444, 1.0
  %v3446 = vrcp.pop %v3445
  %v3447 = vmul.f32 1.0, %v3446
  %v3448 = vxor.u32 %v3439, 2147483648
  %v3449 = vmul.f32 %v3448, 1.442695
  %v3450 = vpow.pop %v3449
  %v3451 = vadd.f32 %v3450, 1.0
  %v3452 = vrcp.pop %v3451
  %v3453 = vmul.f32 1.0, %v3452
  %v3454 = vtanh.pop %v3440
  %v3455 = vxor.u32 %v3441, 2147483648
  %v3456 = vmul.f32 %v3455, 1.442695
  %v3457 = vpow.pop %v3456
  %v3458 = vadd.f32 %v3457, 1.0
  %v3459 = vrcp.pop %v3458
  %v3460 = vmul.f32 1.0, %v3459
  %v3461 = vmul.f32 %v3453, %v3347
  %v3462 = vmul.f32 %v3447, %v3454
  %v3463 = vadd.f32 %v3461, %v3462
  %v3464 = vtanh.pop %v3463
  %v3465 = vmul.f32 %v3460, %v3464
  %3466 = vst [vmem:[#allocation3 + $0xb8] sm:$0xff] %v3465
  %v3467 = vld [vmem:[#allocation3] sm:$0xff]
  %v3468 = vld [vmem:[#allocation3 + $0x8] sm:$0xff]
  %v3469 = vld [vmem:[#allocation3 + $0x10] sm:$0xff]
  %v3470 = vld [vmem:[#allocation3 + $0x18] sm:$0xff]
  %v3471 = vld [vmem:[#allocation3 + $0x20] sm:$0xff]
  %v3472 = vld [vmem:[#allocation3 + $0x28] sm:$0xff]
  %v3473 = vld [vmem:[#allocation3 + $0x30] sm:$0xff]
  %v3474 = vld [vmem:[#allocation3 + $0x38] sm:$0xff]
  %v3475 = vld [vmem:[#allocation3 + $0x40] sm:$0xff]
  %v3476 = vld [vmem:[#allocation3 + $0x48] sm:$0xff]
  %v3477 = vld [vmem:[#allocation3 + $0x50] sm:$0xff]
  %v3478 = vld [vmem:[#allocation3 + $0x58] sm:$0xff]
  %v3479 = vld [vmem:[#allocation3 + $0x60] sm:$0xff]
  %v3480 = vld [vmem:[#allocation3 + $0x68] sm:$0xff]
  %v3481 = vld [vmem:[#allocation3 + $0x70] sm:$0xff]
  %v3482 = vld [vmem:[#allocation3 + $0x78] sm:$0xff]
  %v3483 = vld [vmem:[#allocation3 + $0x80] sm:$0xff]
  %v3484 = vld [vmem:[#allocation3 + $0x88] sm:$0xff]
  %v3485 = vld [vmem:[#allocation3 + $0x90] sm:$0xff]
  %v3486 = vld [vmem:[#allocation3 + $0x98] sm:$0xff]
  %v3487 = vld [vmem:[#allocation3 + $0xa0] sm:$0xff]
  %v3488 = vld [vmem:[#allocation3 + $0xa8] sm:$0xff]
  %v3489 = vld [vmem:[#allocation3 + $0xb0] sm:$0xff]
  %v3490 = vld [vmem:[#allocation3 + $0xb8] sm:$0xff]
  %v3491 = vld [vmem:[%s4] sm:$0xff]
  %v3492 = vld [vmem:[%s4 + $0x8] sm:$0xff]
  %v3493 = vld [vmem:[%s4 + $0x10] sm:$0xff]
  %v3494 = vld [vmem:[%s4 + $0x18] sm:$0xff]
  %v3495 = vld [vmem:[%s4 + $0x20] sm:$0xff]
  %v3496 = vld [vmem:[%s4 + $0x28] sm:$0xff]
  %v3497 = vld [vmem:[%s4 + $0x30] sm:$0xff]
  %v3498 = vld [vmem:[%s4 + $0x38] sm:$0xff]
  %v3499 = vld [vmem:[%s4 + $0x40] sm:$0xff]
  %v3500 = vld [vmem:[%s4 + $0x48] sm:$0xff]
  %v3501 = vld [vmem:[%s4 + $0x50] sm:$0xff]
  %v3502 = vld [vmem:[%s4 + $0x58] sm:$0xff]
  %v3503 = vld [vmem:[%s4 + $0x60] sm:$0xff]
  %v3504 = vld [vmem:[%s4 + $0x68] sm:$0xff]
  %v3505 = vld [vmem:[%s4 + $0x70] sm:$0xff]
  %v3506 = vld [vmem:[%s4 + $0x78] sm:$0xff]
  %v3507 = vld [vmem:[%s5] sm:$0x1]
  %v3509 = vlaneseq
  %v3510 = vshrl.u32 %v3509, 7
  %v3511 = vsub.s32 0, %v3510
  %v3512 = vrot.slane %v3507, %v3511
  %3514 = vmatprep.subr.mxu0 0.0
  %3515 = vmatpush1.msra.mxu0 %v3506
  %3516 = vmatprep.subr.mxu0 0.0
  %3517 = vmatpush1.msra.mxu0 %v3505
  %3518 = vmatprep.subr.mxu0 0.0
  %3519 = vmatpush1.msra.mxu0 %v3504
  %3520 = vmatprep.subr.mxu0 0.0
  %3521 = vmatpush1.msra.mxu0 %v3503
  %3522 = vmatprep.subr.mxu0 0.0
  %3523 = vmatpush1.msra.mxu0 %v3502
  %3524 = vmatprep.subr.mxu0 0.0
  %3525 = vmatpush1.msra.mxu0 %v3501
  %3526 = vmatprep.subr.mxu0 0.0
  %3527 = vmatpush1.msra.mxu0 %v3500
  %3528 = vmatprep.subr.mxu0 0.0
  %3529 = vmatpush1.msra.mxu0 %v3499
  %3530 = vmatprep.subr.mxu0 0.0
  %3531 = vmatpush1.msra.mxu0 %v3498
  %3532 = vmatprep.subr.mxu0 0.0
  %3533 = vmatpush1.msra.mxu0 %v3497
  %3534 = vmatprep.subr.mxu0 0.0
  %3535 = vmatpush1.msra.mxu0 %v3496
  %3536 = vmatprep.subr.mxu0 0.0
  %3537 = vmatpush1.msra.mxu0 %v3495
  %3538 = vmatprep.subr.mxu0 0.0
  %3539 = vmatpush1.msra.mxu0 %v3494
  %3540 = vmatprep.subr.mxu0 0.0
  %3541 = vmatpush1.msra.mxu0 %v3493
  %3542 = vmatprep.subr.mxu0 0.0
  %3543 = vmatpush1.msra.mxu0 %v3492
  %3544 = vmatprep.subr.mxu0 0.0
  %3545 = vmatpush1.msra.mxu0 %v3491
  %3546 = vmatprep.subr.mxu0 0.0
  %3547 = vmatpush2.msra.mxu0 0.0
  %3548 = vmatprep.subr.mxu0 0.0
  %3549 = vmatpush2.msra.mxu0 0.0
  %3550 = vmatprep.subr.mxu0 0.0
  %3551 = vmatpush2.msra.mxu0 0.0
  %3552 = vmatprep.subr.mxu0 0.0
  %3553 = vmatpush2.msra.mxu0 0.0
  %3554 = vmatprep.subr.mxu0 0.0
  %3555 = vmatpush2.msra.mxu0 0.0
  %3556 = vmatprep.subr.mxu0 0.0
  %3557 = vmatpush2.msra.mxu0 0.0
  %3558 = vmatprep.subr.mxu0 0.0
  %3559 = vmatpush2.msra.mxu0 0.0
  %3560 = vmatprep.subr.mxu0 0.0
  %3561 = vmatpush2.msra.mxu0 0.0
  %3562 = vmatprep.subr.mxu0 0.0
  %3563 = vmatpush2.msra.mxu0 0.0
  %3564 = vmatprep.subr.mxu0 0.0
  %3565 = vmatpush2.msra.mxu0 0.0
  %3566 = vmatprep.subr.mxu0 0.0
  %3567 = vmatpush2.msra.mxu0 0.0
  %3568 = vmatprep.subr.mxu0 0.0
  %3569 = vmatpush2.msra.mxu0 0.0
  %3570 = vmatprep.subr.mxu0 0.0
  %3571 = vmatpush2.msra.mxu0 0.0
  %3572 = vmatprep.subr.mxu0 0.0
  %3573 = vmatpush2.msra.mxu0 0.0
  %3574 = vmatprep.subr.mxu0 0.0
  %3575 = vmatpush2.msra.mxu0 0.0
  %3576 = vmatprep.subr.mxu0 0.0
  %3577 = vmatpush2.msra.mxu0 0.0
  %3578 = vmatprep.mubr.f32.mxu0 0.0
  %3579 = vmatmul.mubr.f32.gmra.mxu0 %v3467
  %v3580 = vpop.f32.mrf.mxu0
  %v3581 = vadd.f32 %v3512, %v3580
  %v3582 = vpop.f32.mrf.mxu0
  %3583 = vmatprep.mubr.f32.mxu0 0.0
  %3584 = vmatmul.mubr.f32.gmra.mxu0 %v3468
  %v3585 = vpop.f32.mrf.mxu0
  %v3586 = vadd.f32 %v3512, %v3585
  %v3587 = vpop.f32.mrf.mxu0
  %3588 = vmatprep.mubr.f32.mxu0 0.0
  %3589 = vmatmul.mubr.f32.gmra.mxu0 %v3469
  %v3590 = vpop.f32.mrf.mxu0
  %v3591 = vadd.f32 %v3512, %v3590
  %v3592 = vpop.f32.mrf.mxu0
  %3593 = vmatprep.mubr.f32.mxu0 0.0
  %3594 = vmatmul.mubr.f32.gmra.mxu0 %v3470
  %v3595 = vpop.f32.mrf.mxu0
  %v3596 = vadd.f32 %v3512, %v3595
  %v3597 = vpop.f32.mrf.mxu0
  %3598 = vmatprep.mubr.f32.mxu0 0.0
  %3599 = vmatmul.mubr.f32.gmra.mxu0 %v3471
  %v3600 = vpop.f32.mrf.mxu0
  %v3601 = vadd.f32 %v3512, %v3600
  %v3602 = vpop.f32.mrf.mxu0
  %3603 = vmatprep.mubr.f32.mxu0 0.0
  %3604 = vmatmul.mubr.f32.gmra.mxu0 %v3472
  %v3605 = vpop.f32.mrf.mxu0
  %v3606 = vadd.f32 %v3512, %v3605
  %v3607 = vpop.f32.mrf.mxu0
  %3608 = vmatprep.mubr.f32.mxu0 0.0
  %3609 = vmatmul.mubr.f32.gmra.mxu0 %v3473
  %v3610 = vpop.f32.mrf.mxu0
  %v3611 = vadd.f32 %v3512, %v3610
  %v3612 = vpop.f32.mrf.mxu0
  %3613 = vmatprep.mubr.f32.mxu0 0.0
  %3614 = vmatmul.mubr.f32.gmra.mxu0 %v3474
  %v3615 = vpop.f32.mrf.mxu0
  %v3616 = vadd.f32 %v3512, %v3615
  %v3617 = vpop.f32.mrf.mxu0
  %3618 = vmatprep.mubr.f32.mxu0 0.0
  %3619 = vmatmul.mubr.f32.gmra.mxu0 %v3475
  %v3620 = vpop.f32.mrf.mxu0
  %v3621 = vadd.f32 %v3512, %v3620
  %v3622 = vpop.f32.mrf.mxu0
  %3623 = vmatprep.mubr.f32.mxu0 0.0
  %3624 = vmatmul.mubr.f32.gmra.mxu0 %v3476
  %v3625 = vpop.f32.mrf.mxu0
  %v3626 = vadd.f32 %v3512, %v3625
  %v3627 = vpop.f32.mrf.mxu0
  %3628 = vmatprep.mubr.f32.mxu0 0.0
  %3629 = vmatmul.mubr.f32.gmra.mxu0 %v3477
  %v3630 = vpop.f32.mrf.mxu0
  %v3631 = vadd.f32 %v3512, %v3630
  %v3632 = vpop.f32.mrf.mxu0
  %3633 = vmatprep.mubr.f32.mxu0 0.0
  %3634 = vmatmul.mubr.f32.gmra.mxu0 %v3478
  %v3635 = vpop.f32.mrf.mxu0
  %v3636 = vadd.f32 %v3512, %v3635
  %v3637 = vpop.f32.mrf.mxu0
  %3638 = vmatprep.mubr.f32.mxu0 0.0
  %3639 = vmatmul.mubr.f32.gmra.mxu0 %v3479
  %v3640 = vpop.f32.mrf.mxu0
  %v3641 = vadd.f32 %v3512, %v3640
  %v3642 = vpop.f32.mrf.mxu0
  %3643 = vmatprep.mubr.f32.mxu0 0.0
  %3644 = vmatmul.mubr.f32.gmra.mxu0 %v3480
  %v3645 = vpop.f32.mrf.mxu0
  %v3646 = vadd.f32 %v3512, %v3645
  %v3647 = vpop.f32.mrf.mxu0
  %3648 = vmatprep.mubr.f32.mxu0 0.0
  %3649 = vmatmul.mubr.f32.gmra.mxu0 %v3481
  %v3650 = vpop.f32.mrf.mxu0
  %v3651 = vadd.f32 %v3512, %v3650
  %v3652 = vpop.f32.mrf.mxu0
  %3653 = vmatprep.mubr.f32.mxu0 0.0
  %3654 = vmatmul.mubr.f32.gmra.mxu0 %v3482
  %v3655 = vpop.f32.mrf.mxu0
  %v3656 = vadd.f32 %v3512, %v3655
  %v3657 = vpop.f32.mrf.mxu0
  %3658 = vmatprep.mubr.f32.mxu0 0.0
  %3659 = vmatmul.mubr.f32.gmra.mxu0 %v3483
  %v3660 = vpop.f32.mrf.mxu0
  %v3661 = vadd.f32 %v3512, %v3660
  %v3662 = vpop.f32.mrf.mxu0
  %3663 = vmatprep.mubr.f32.mxu0 0.0
  %3664 = vmatmul.mubr.f32.gmra.mxu0 %v3484
  %v3665 = vpop.f32.mrf.mxu0
  %v3666 = vadd.f32 %v3512, %v3665
  %v3667 = vpop.f32.mrf.mxu0
  %3668 = vmatprep.mubr.f32.mxu0 0.0
  %3669 = vmatmul.mubr.f32.gmra.mxu0 %v3485
  %v3670 = vpop.f32.mrf.mxu0
  %v3671 = vadd.f32 %v3512, %v3670
  %v3672 = vpop.f32.mrf.mxu0
  %3673 = vmatprep.mubr.f32.mxu0 0.0
  %3674 = vmatmul.mubr.f32.gmra.mxu0 %v3486
  %v3675 = vpop.f32.mrf.mxu0
  %v3676 = vadd.f32 %v3512, %v3675
  %v3677 = vpop.f32.mrf.mxu0
  %3678 = vmatprep.mubr.f32.mxu0 0.0
  %3679 = vmatmul.mubr.f32.gmra.mxu0 %v3487
  %v3680 = vpop.f32.mrf.mxu0
  %v3681 = vadd.f32 %v3512, %v3680
  %v3682 = vpop.f32.mrf.mxu0
  %3683 = vmatprep.mubr.f32.mxu0 0.0
  %3684 = vmatmul.mubr.f32.gmra.mxu0 %v3488
  %v3685 = vpop.f32.mrf.mxu0
  %v3686 = vadd.f32 %v3512, %v3685
  %v3687 = vpop.f32.mrf.mxu0
  %3688 = vmatprep.mubr.f32.mxu0 0.0
  %3689 = vmatmul.mubr.f32.gmra.mxu0 %v3489
  %v3690 = vpop.f32.mrf.mxu0
  %v3691 = vadd.f32 %v3512, %v3690
  %v3692 = vpop.f32.mrf.mxu0
  %3693 = vmatprep.mubr.f32.mxu0 0.0
  %3694 = vmatmul.mubr.f32.gmra.mxu0 %v3490
  %v3695 = vpop.f32.mrf.mxu0
  %v3696 = vadd.f32 %v3512, %v3695
  %v3697 = vpop.f32.mrf.mxu0
  %3698 = vdwg.mxu0
  %3699 = vst [vmem:[%s6] sm:$0xff] %v3581
  %3700 = vst [vmem:[%s6 + $0x8] sm:$0xff] %v3586
  %3701 = vst [vmem:[%s6 + $0x10] sm:$0xff] %v3591
  %3702 = vst [vmem:[%s6 + $0x18] sm:$0xff] %v3596
  %3703 = vst [vmem:[%s6 + $0x20] sm:$0xff] %v3601
  %3704 = vst [vmem:[%s6 + $0x28] sm:$0xff] %v3606
  %3705 = vst [vmem:[%s6 + $0x30] sm:$0xff] %v3611
  %3706 = vst [vmem:[%s6 + $0x38] sm:$0xff] %v3616
  %3707 = vst [vmem:[%s6 + $0x40] sm:$0xff] %v3621
  %3708 = vst [vmem:[%s6 + $0x48] sm:$0xff] %v3626
  %3709 = vst [vmem:[%s6 + $0x50] sm:$0xff] %v3631
  %3710 = vst [vmem:[%s6 + $0x58] sm:$0xff] %v3636
  %3711 = vst [vmem:[%s6 + $0x60] sm:$0xff] %v3641
  %3712 = vst [vmem:[%s6 + $0x68] sm:$0xff] %v3646
  %3713 = vst [vmem:[%s6 + $0x70] sm:$0xff] %v3651
  %3714 = vst [vmem:[%s6 + $0x78] sm:$0xff] %v3656
  %3715 = vst [vmem:[%s6 + $0x80] sm:$0xff] %v3661
  %3716 = vst [vmem:[%s6 + $0x88] sm:$0xff] %v3666
  %3717 = vst [vmem:[%s6 + $0x90] sm:$0xff] %v3671
  %3718 = vst [vmem:[%s6 + $0x98] sm:$0xff] %v3676
  %3719 = vst [vmem:[%s6 + $0xa0] sm:$0xff] %v3681
  %3720 = vst [vmem:[%s6 + $0xa8] sm:$0xff] %v3686
  %3721 = vst [vmem:[%s6 + $0xb0] sm:$0xff] %v3691
  %3722 = vst [vmem:[%s6 + $0xb8] sm:$0xff] %v3696
  // Predicated region
  $region26: #{model_forward.1} parent=0 // pred_check
    _
  $region27: #{model_forward.1} parent=0 // pred_check_branch
    %3724 = sbr.rel (0) target = $region29
  $region28: #{model_forward.1} parent=0 // pred_region
    _
  $region29: #{model_forward.1} parent=0 // pred_fallthru
    _
  // Predicated region
  $region30: #{model_forward.1} parent=0 // pred_check
    _
  $region31: #{model_forward.1} parent=0 // pred_check_branch
    %3726 = sbr.rel (0) target = $region33
  $region32: #{model_forward.1} parent=0 // pred_region
    _
  $region33: #{model_forward.1} parent=0 // pred_fallthru
    _

</llo_original>
